<compile_context>
chip_gen: v6e
topology: v6e:2x2x1
jax: 0.10.0
libtpu: 0.0.40
codegen_flags: <defaults>
</compile_context>

<pallas_src>
import numpy as np
import jax
import jax.numpy as jnp
from jax import lax
from jax.experimental import pallas as pl
from jax.experimental.pallas import tpu as pltpu

# ------------------------- configuration -----------------------------------
B = 2                 # batch
CIN_IMG = 3           # image channels
FEAT_C = 8            # feature_channels (small stand-in for 512)
H = W = 4             # image patch spatial (small stand-in for 64)
HF = WF = 2           # feature patch spatial (small stand-in for 4)
S = H * W             # flattened spatial = 16
BS = B * S            # batch-folded rows  = 32
CIN = CIN_IMG + FEAT_C                     # 11 real conv1 input channels
CP = 128              # padded channel / lane width used everywhere in-kernel
C1, C2, C3 = 128, 64, 32
FC_IN = C3 * S        # 512 == 32*4*4 (matches nn.Linear(32*4*4, 128))
FC_H = 128
OUT = 3


# ------------------------- glue helpers (plain numpy) ----------------------
def interp_matrix(n_out, n_in):
    """1-D bilinear interpolation matrix, PyTorch align_corners=False."""
    m = np.zeros((n_out, n_in), np.float32)
    scale = n_in / n_out
    for o in range(n_out):
        src = (o + 0.5) * scale - 0.5
        i0 = int(np.floor(src))
        frac = src - i0
        i0c = min(max(i0, 0), n_in - 1)
        i1c = min(max(i0 + 1, 0), n_in - 1)
        m[o, i0c] += 1.0 - frac
        m[o, i1c] += frac
    return m


def shift_matrices(h, w):
    """9 zero-padded spatial-shift matrices for a 3x3 'same' conv."""
    s = np.zeros((9, h * w, h * w), np.float32)
    for k in range(9):
        dy, dx = k // 3 - 1, k % 3 - 1
        for y in range(h):
            for x in range(w):
                yy, xx = y + dy, x + dx
                if 0 <= yy < h and 0 <= xx < w:
                    s[k, y * w + x, yy * w + xx] = 1.0
    return s


# ------------------------- Pallas kernel ------------------------------------
def size_agent_kernel(x0_ref, shift_ref, w1_ref, b1_ref, w2_ref, b2_ref,
                      w3_ref, b3_ref, fcsel_ref, fw1_ref, fb1_ref,
                      fw2_ref, fb2_ref, out_ref, col_ref, fccol_ref):
    def conv3x3_relu(x, w_ref, b_ref):
        # x: [BS, CP]  ->  relu(3x3 'same' conv): [BS, CP]
        # (1) all 9 spatial taps (block-diagonal over batch) in ONE matmul.
        sh = jnp.dot(shift_ref[...], x,
                     preferred_element_type=jnp.float32)        # [9*BS, CP]
        # (2) regroup taps into lanes (im2col) with (8,128)-aligned stores.
        for k in range(9):
            col_ref[:, k * CP:(k + 1) * CP] = sh[k * BS:(k + 1) * BS, :]
        # (3) one K = 9*128 channel matmul.
        acc = jnp.dot(col_ref[...], w_ref[...],
                      preferred_element_type=jnp.float32)        # [BS, CP]
        return jnp.maximum(acc + b_ref[...], 0.0)

    h = conv3x3_relu(x0_ref[...], w1_ref, b1_ref)                # [BS, CP]
    h = conv3x3_relu(h, w2_ref, b2_ref)                          # [BS, CP]
    h = conv3x3_relu(h, w3_ref, b3_ref)                          # [BS, CP]

    # fc1: flatten (spatial, channel) per batch with a constant row-permutation
    # matmul + 16 aligned stores, then ONE K = S*CP contraction.
    g = jnp.dot(fcsel_ref[...], h,
                preferred_element_type=jnp.float32)              # [S*8, CP]
    for s in range(S):
        fccol_ref[:, s * CP:(s + 1) * CP] = g[s * 8:(s + 1) * 8, :]
    y = jnp.dot(fccol_ref[...], fw1_ref[...],
                preferred_element_type=jnp.float32)              # [8, FC_H]
    y = jnp.maximum(y + fb1_ref[...], 0.0)

    # fc2 into a lane-dense padded tile.
    a = jnp.dot(y, fw2_ref[...],
                preferred_element_type=jnp.float32) + fb2_ref[...]   # [8, CP]

    # action[:, 2] = sigmoid(action[:, 2])
    col_idx = lax.broadcasted_iota(jnp.int32, a.shape, 1)
    out_ref[...] = jnp.where(col_idx == 2, jax.nn.sigmoid(a), a)


# ------------------------- wrapper ------------------------------------------
def size_agent_forward(image_nchw, features_nchw, params):
    # ---- wrapper-side glue (plain XLA): upsample + concat + zero padding ----
    mh = jnp.asarray(interp_matrix(H, HF))
    mw = jnp.asarray(interp_matrix(W, WF))
    img = jnp.transpose(image_nchw, (0, 2, 3, 1))                 # [B,H,W,3]
    feat = jnp.transpose(features_nchw, (0, 2, 3, 1))             # [B,HF,WF,FC]
    up = jnp.einsum("oi,pj,bijc->bopc", mh, mw, feat)             # [B,H,W,FC]
    x0 = jnp.concatenate([img, up], axis=-1).reshape(BS, CIN)     # [BS, 11]
    x0 = jnp.pad(x0, ((0, 0), (0, CP - CIN)))                     # [BS, CP]

    # stacked, per-batch block-diagonal 3x3 shift matrices: [9*BS, BS]
    shift = shift_matrices(H, W)                                  # [9, S, S]
    eye_b = np.eye(B, dtype=np.float32)
    shift_all = jnp.asarray(
        np.stack([np.kron(eye_b, shift[k]) for k in range(9)]
                 ).reshape(9 * BS, BS))

    # conv weights: HWIO, zero-padded to CP in/out channels, flattened so row
    # index = (3*ky + kx)*CP + cin  (matches the im2col lane layout).
    def conv_w(w):
        _, _, ci, co = w.shape
        w = jnp.pad(w, ((0, 0), (0, 0), (0, CP - ci), (0, CP - co)))
        return w.reshape(9 * CP, CP)

    def pad_bias(b):
        return jnp.pad(b, (0, CP - b.shape[0])).reshape(1, CP)

    w1 = conv_w(params["w1"]); b1 = pad_bias(params["b1"])
    w2 = conv_w(params["w2"]); b2 = pad_bias(params["b2"])
    w3 = conv_w(params["w3"]); b3 = pad_bias(params["b3"])

    # fc1: PyTorch NCHW flatten order (row = c*S + s)  ->  kernel layout
    # (row = s*CP + c), zero-padded over the padded channels.
    fw1 = params["fc1_w"].reshape(C3, S, FC_H).transpose(1, 0, 2)  # [S,C3,FC_H]
    fw1 = jnp.pad(fw1, ((0, 0), (0, CP - C3), (0, 0))).reshape(S * CP, FC_H)
    fb1 = params["fc1_b"].reshape(1, FC_H)
    fw2 = jnp.pad(params["fc2_w"], ((0, 0), (0, CP - OUT)))        # [FC_H, CP]
    fb2 = jnp.pad(params["fc2_b"], (0, CP - OUT)).reshape(1, CP)

    # constant row-permutation: rows s*8 + b pick activation row b*S + s.
    fcsel = np.zeros((S * 8, BS), np.float32)
    for s in range(S):
        for b in range(B):
            fcsel[s * 8 + b, b * S + s] = 1.0
    fcsel = jnp.asarray(fcsel)

    out = pl.pallas_call(
        size_agent_kernel,
        out_shape=jax.ShapeDtypeStruct((8, CP), jnp.float32),
        scratch_shapes=[
            pltpu.VMEM((BS, 9 * CP), jnp.float32),     # im2col buffer (shared by all convs)
            pltpu.VMEM((8, S * CP), jnp.float32),      # fc1 flatten buffer
        ],
        cost_estimate=pl.CostEstimate(flops=41_000_000,
                                      transcendentals=1024,
                                      bytes_accessed=3_000_000),
    )(x0, shift_all, w1, b1, w2, b2, w3, b3, fcsel, fw1, fb1, fw2, fb2)

    return out[:B, :OUT]


# ------------------------- pure-JAX reference -------------------------------
def reference_forward(image_nchw, features_nchw, params):
    img = jnp.transpose(image_nchw, (0, 2, 3, 1))
    feat = jnp.transpose(features_nchw, (0, 2, 3, 1))
    mh = jnp.asarray(interp_matrix(H, HF))
    mw = jnp.asarray(interp_matrix(W, WF))
    up = jnp.einsum("oi,pj,bijc->bopc", mh, mw, feat)
    x = jnp.concatenate([img, up], axis=-1)
    dn = ("NHWC", "HWIO", "NHWC")
    for wk, bk in (("w1", "b1"), ("w2", "b2"), ("w3", "b3")):
        x = jax.nn.relu(
            lax.conv_general_dilated(x, params[wk], (1, 1), "SAME",
                                     dimension_numbers=dn) + params[bk])
    # PyTorch's .view(B, -1) on NCHW flattens (c, h, w):
    flat = jnp.transpose(x, (0, 3, 1, 2)).reshape(x.shape[0], -1)
    y = jax.nn.relu(flat @ params["fc1_w"] + params["fc1_b"])
    a = y @ params["fc2_w"] + params["fc2_b"]
    return a.at[:, 2].set(jax.nn.sigmoid(a[:, 2]))


# ------------------------- main ----------------------------------------------
if __name__ == "__main__":
    key = jax.random.PRNGKey(0)
    keys = jax.random.split(key, 12)

    def norm(k, shape, scale):
        return scale * jax.random.normal(k, shape, jnp.float32)

    params = {
        "w1": norm(keys[0], (3, 3, CIN, C1), 1.0 / np.sqrt(9 * CIN)),
        "b1": norm(keys[1], (C1,), 0.1),
        "w2": norm(keys[2], (3, 3, C1, C2), 1.0 / np.sqrt(9 * C1)),
        "b2": norm(keys[3], (C2,), 0.1),
        "w3": norm(keys[4], (3, 3, C2, C3), 1.0 / np.sqrt(9 * C2)),
        "b3": norm(keys[5], (C3,), 0.1),
        "fc1_w": norm(keys[6], (FC_IN, FC_H), 1.0 / np.sqrt(FC_IN)),
        "fc1_b": norm(keys[7], (FC_H,), 0.1),
        "fc2_w": norm(keys[8], (FC_H, OUT), 1.0 / np.sqrt(FC_H)),
        "fc2_b": norm(keys[9], (OUT,), 0.1),
    }

    image_patch = jax.random.normal(keys[10], (B, CIN_IMG, H, W), jnp.float32)
    features_patch = jax.random.normal(keys[11], (B, FEAT_C, HF, WF), jnp.float32)

    out = size_agent_forward(image_patch, features_patch, params)
    out = jax.block_until_ready(out)

    ref = jax.block_until_ready(reference_forward(image_patch, features_patch, params))
    np.testing.assert_allclose(np.array(out), np.array(ref), rtol=2e-2, atol=2e-2)

    print("KERNEL_OK")
</pallas_src>

<mosaic_0001>
module attributes {stable_mosaic.version = 11 : i64} {
  func.func @size_agent_kernel(%arg0: memref<32x128xf32, #tpu.memory_space<vmem>>, %arg1: memref<288x32xf32, #tpu.memory_space<vmem>>, %arg2: memref<1152x128xf32, #tpu.memory_space<vmem>>, %arg3: memref<1x128xf32, #tpu.memory_space<vmem>>, %arg4: memref<1152x128xf32, #tpu.memory_space<vmem>>, %arg5: memref<1x128xf32, #tpu.memory_space<vmem>>, %arg6: memref<1152x128xf32, #tpu.memory_space<vmem>>, %arg7: memref<1x128xf32, #tpu.memory_space<vmem>>, %arg8: memref<128x32xf32, #tpu.memory_space<vmem>>, %arg9: memref<2048x128xf32, #tpu.memory_space<vmem>>, %arg10: memref<1x128xf32, #tpu.memory_space<vmem>>, %arg11: memref<128x128xf32, #tpu.memory_space<vmem>>, %arg12: memref<1x128xf32, #tpu.memory_space<vmem>>, %arg13: memref<8x128xf32, #tpu.memory_space<vmem>>, %arg14: memref<32x1152xf32, #tpu.memory_space<vmem>>, %arg15: memref<8x2048xf32, #tpu.memory_space<vmem>>) attributes {dimension_semantics = [], scalar_prefetch = 0 : i64, scratch_operands = 2 : i64, tpu.core_type = #tpu.core_type<tc>} {
    %c0 = arith.constant 0 : index
    %c0_0 = arith.constant 0 : index
    %0 = vector.load %arg0[%c0, %c0_0] : memref<32x128xf32, #tpu.memory_space<vmem>>, vector<32x128xf32>
    %c0_1 = arith.constant 0 : index
    %c0_2 = arith.constant 0 : index
    %1 = vector.load %arg1[%c0_1, %c0_2] : memref<288x32xf32, #tpu.memory_space<vmem>>, vector<288x32xf32>
    %cst = arith.constant dense<0.000000e+00> : vector<288x128xf32>
    %2 = tpu.matmul %1, %0, %cst {dimension_numbers = #tpu.dot_dimension_numbers<[1], [0], [0], [1], [0, 0, 1, 1], [], []>} : vector<288x32xf32>, vector<32x128xf32>, vector<288x128xf32> -> vector<288x128xf32>
    %3 = vector.extract_strided_slice %2 {offsets = [0, 0], sizes = [32, 128], strides = [1, 1]} : vector<288x128xf32> to vector<32x128xf32>
    %c0_3 = arith.constant 0 : index
    %c0_4 = arith.constant 0 : index
    %4 = vector.load %arg14[%c0_3, %c0_4] : memref<32x1152xf32, #tpu.memory_space<vmem>>, vector<32x128xf32>
    tpu.vector_store %arg14[%c0_3, %c0_4], %3 {strides = array<i32>} : memref<32x1152xf32, #tpu.memory_space<vmem>>, vector<32x128xf32>,
    %5 = vector.extract_strided_slice %2 {offsets = [32, 0], sizes = [32, 128], strides = [1, 1]} : vector<288x128xf32> to vector<32x128xf32>
    %c0_5 = arith.constant 0 : index
    %c128 = arith.constant 128 : index
    %6 = vector.load %arg14[%c0_5, %c128] : memref<32x1152xf32, #tpu.memory_space<vmem>>, vector<32x128xf32>
    tpu.vector_store %arg14[%c0_5, %c128], %5 {strides = array<i32>} : memref<32x1152xf32, #tpu.memory_space<vmem>>, vector<32x128xf32>,
    %7 = vector.extract_strided_slice %2 {offsets = [64, 0], sizes = [32, 128], strides = [1, 1]} : vector<288x128xf32> to vector<32x128xf32>
    %c0_6 = arith.constant 0 : index
    %c256 = arith.constant 256 : index
    %8 = vector.load %arg14[%c0_6, %c256] : memref<32x1152xf32, #tpu.memory_space<vmem>>, vector<32x128xf32>
    tpu.vector_store %arg14[%c0_6, %c256], %7 {strides = array<i32>} : memref<32x1152xf32, #tpu.memory_space<vmem>>, vector<32x128xf32>,
    %9 = vector.extract_strided_slice %2 {offsets = [96, 0], sizes = [32, 128], strides = [1, 1]} : vector<288x128xf32> to vector<32x128xf32>
    %c0_7 = arith.constant 0 : index
    %c384 = arith.constant 384 : index
    %10 = vector.load %arg14[%c0_7, %c384] : memref<32x1152xf32, #tpu.memory_space<vmem>>, vector<32x128xf32>
    tpu.vector_store %arg14[%c0_7, %c384], %9 {strides = array<i32>} : memref<32x1152xf32, #tpu.memory_space<vmem>>, vector<32x128xf32>,
    %11 = vector.extract_strided_slice %2 {offsets = [128, 0], sizes = [32, 128], strides = [1, 1]} : vector<288x128xf32> to vector<32x128xf32>
    %c0_8 = arith.constant 0 : index
    %c512 = arith.constant 512 : index
    %12 = vector.load %arg14[%c0_8, %c512] : memref<32x1152xf32, #tpu.memory_space<vmem>>, vector<32x128xf32>
    tpu.vector_store %arg14[%c0_8, %c512], %11 {strides = array<i32>} : memref<32x1152xf32, #tpu.memory_space<vmem>>, vector<32x128xf32>,
    %13 = vector.extract_strided_slice %2 {offsets = [160, 0], sizes = [32, 128], strides = [1, 1]} : vector<288x128xf32> to vector<32x128xf32>
    %c0_9 = arith.constant 0 : index
    %c640 = arith.constant 640 : index
    %14 = vector.load %arg14[%c0_9, %c640] : memref<32x1152xf32, #tpu.memory_space<vmem>>, vector<32x128xf32>
    tpu.vector_store %arg14[%c0_9, %c640], %13 {strides = array<i32>} : memref<32x1152xf32, #tpu.memory_space<vmem>>, vector<32x128xf32>,
    %15 = vector.extract_strided_slice %2 {offsets = [192, 0], sizes = [32, 128], strides = [1, 1]} : vector<288x128xf32> to vector<32x128xf32>
    %c0_10 = arith.constant 0 : index
    %c768 = arith.constant 768 : index
    %16 = vector.load %arg14[%c0_10, %c768] : memref<32x1152xf32, #tpu.memory_space<vmem>>, vector<32x128xf32>
    tpu.vector_store %arg14[%c0_10, %c768], %15 {strides = array<i32>} : memref<32x1152xf32, #tpu.memory_space<vmem>>, vector<32x128xf32>,
    %17 = vector.extract_strided_slice %2 {offsets = [224, 0], sizes = [32, 128], strides = [1, 1]} : vector<288x128xf32> to vector<32x128xf32>
    %c0_11 = arith.constant 0 : index
    %c896 = arith.constant 896 : index
    %18 = vector.load %arg14[%c0_11, %c896] : memref<32x1152xf32, #tpu.memory_space<vmem>>, vector<32x128xf32>
    tpu.vector_store %arg14[%c0_11, %c896], %17 {strides = array<i32>} : memref<32x1152xf32, #tpu.memory_space<vmem>>, vector<32x128xf32>,
    %19 = vector.extract_strided_slice %2 {offsets = [256, 0], sizes = [32, 128], strides = [1, 1]} : vector<288x128xf32> to vector<32x128xf32>
    %c0_12 = arith.constant 0 : index
    %c1024 = arith.constant 1024 : index
    %20 = vector.load %arg14[%c0_12, %c1024] : memref<32x1152xf32, #tpu.memory_space<vmem>>, vector<32x128xf32>
    tpu.vector_store %arg14[%c0_12, %c1024], %19 {strides = array<i32>} : memref<32x1152xf32, #tpu.memory_space<vmem>>, vector<32x128xf32>,
    %c0_13 = arith.constant 0 : index
    %c0_14 = arith.constant 0 : index
    %21 = vector.load %arg14[%c0_13, %c0_14] : memref<32x1152xf32, #tpu.memory_space<vmem>>, vector<32x1152xf32>
    %c0_15 = arith.constant 0 : index
    %c0_16 = arith.constant 0 : index
    %22 = vector.load %arg2[%c0_15, %c0_16] : memref<1152x128xf32, #tpu.memory_space<vmem>>, vector<1152x128xf32>
    %cst_17 = arith.constant dense<0.000000e+00> : vector<32x128xf32>
    %23 = tpu.matmul %21, %22, %cst_17 {dimension_numbers = #tpu.dot_dimension_numbers<[1], [0], [0], [1], [0, 0, 1, 1], [], []>} : vector<32x1152xf32>, vector<1152x128xf32>, vector<32x128xf32> -> vector<32x128xf32>
    %c0_18 = arith.constant 0 : index
    %c0_19 = arith.constant 0 : index
    %24 = vector.load %arg3[%c0_18, %c0_19] : memref<1x128xf32, #tpu.memory_space<vmem>>, vector<1x128xf32>
    %25 = vector.broadcast %24 : vector<1x128xf32> to vector<32x128xf32>
    %26 = arith.addf %23, %25 : vector<32x128xf32>
    %cst_20 = arith.constant 0.000000e+00 : f32
    %27 = vector.broadcast %cst_20 : f32 to vector<32x128xf32>
    %28 = arith.maximumf %26, %27 : vector<32x128xf32>
    %c0_21 = arith.constant 0 : index
    %c0_22 = arith.constant 0 : index
    %29 = vector.load %arg1[%c0_21, %c0_22] : memref<288x32xf32, #tpu.memory_space<vmem>>, vector<288x32xf32>
    %cst_23 = arith.constant dense<0.000000e+00> : vector<288x128xf32>
    %30 = tpu.matmul %29, %28, %cst_23 {dimension_numbers = #tpu.dot_dimension_numbers<[1], [0], [0], [1], [0, 0, 1, 1], [], []>} : vector<288x32xf32>, vector<32x128xf32>, vector<288x128xf32> -> vector<288x128xf32>
    %31 = vector.extract_strided_slice %30 {offsets = [0, 0], sizes = [32, 128], strides = [1, 1]} : vector<288x128xf32> to vector<32x128xf32>
    %c0_24 = arith.constant 0 : index
    %c0_25 = arith.constant 0 : index
    %32 = vector.load %arg14[%c0_24, %c0_25] : memref<32x1152xf32, #tpu.memory_space<vmem>>, vector<32x128xf32>
    tpu.vector_store %arg14[%c0_24, %c0_25], %31 {strides = array<i32>} : memref<32x1152xf32, #tpu.memory_space<vmem>>, vector<32x128xf32>,
    %33 = vector.extract_strided_slice %30 {offsets = [32, 0], sizes = [32, 128], strides = [1, 1]} : vector<288x128xf32> to vector<32x128xf32>
    %c0_26 = arith.constant 0 : index
    %c128_27 = arith.constant 128 : index
    %34 = vector.load %arg14[%c0_26, %c128_27] : memref<32x1152xf32, #tpu.memory_space<vmem>>, vector<32x128xf32>
    tpu.vector_store %arg14[%c0_26, %c128_27], %33 {strides = array<i32>} : memref<32x1152xf32, #tpu.memory_space<vmem>>, vector<32x128xf32>,
    %35 = vector.extract_strided_slice %30 {offsets = [64, 0], sizes = [32, 128], strides = [1, 1]} : vector<288x128xf32> to vector<32x128xf32>
    %c0_28 = arith.constant 0 : index
    %c256_29 = arith.constant 256 : index
    %36 = vector.load %arg14[%c0_28, %c256_29] : memref<32x1152xf32, #tpu.memory_space<vmem>>, vector<32x128xf32>
    tpu.vector_store %arg14[%c0_28, %c256_29], %35 {strides = array<i32>} : memref<32x1152xf32, #tpu.memory_space<vmem>>, vector<32x128xf32>,
    %37 = vector.extract_strided_slice %30 {offsets = [96, 0], sizes = [32, 128], strides = [1, 1]} : vector<288x128xf32> to vector<32x128xf32>
    %c0_30 = arith.constant 0 : index
    %c384_31 = arith.constant 384 : index
    %38 = vector.load %arg14[%c0_30, %c384_31] : memref<32x1152xf32, #tpu.memory_space<vmem>>, vector<32x128xf32>
    tpu.vector_store %arg14[%c0_30, %c384_31], %37 {strides = array<i32>} : memref<32x1152xf32, #tpu.memory_space<vmem>>, vector<32x128xf32>,
    %39 = vector.extract_strided_slice %30 {offsets = [128, 0], sizes = [32, 128], strides = [1, 1]} : vector<288x128xf32> to vector<32x128xf32>
    %c0_32 = arith.constant 0 : index
    %c512_33 = arith.constant 512 : index
    %40 = vector.load %arg14[%c0_32, %c512_33] : memref<32x1152xf32, #tpu.memory_space<vmem>>, vector<32x128xf32>
    tpu.vector_store %arg14[%c0_32, %c512_33], %39 {strides = array<i32>} : memref<32x1152xf32, #tpu.memory_space<vmem>>, vector<32x128xf32>,
    %41 = vector.extract_strided_slice %30 {offsets = [160, 0], sizes = [32, 128], strides = [1, 1]} : vector<288x128xf32> to vector<32x128xf32>
    %c0_34 = arith.constant 0 : index
    %c640_35 = arith.constant 640 : index
    %42 = vector.load %arg14[%c0_34, %c640_35] : memref<32x1152xf32, #tpu.memory_space<vmem>>, vector<32x128xf32>
    tpu.vector_store %arg14[%c0_34, %c640_35], %41 {strides = array<i32>} : memref<32x1152xf32, #tpu.memory_space<vmem>>, vector<32x128xf32>,
    %43 = vector.extract_strided_slice %30 {offsets = [192, 0], sizes = [32, 128], strides = [1, 1]} : vector<288x128xf32> to vector<32x128xf32>
    %c0_36 = arith.constant 0 : index
    %c768_37 = arith.constant 768 : index
    %44 = vector.load %arg14[%c0_36, %c768_37] : memref<32x1152xf32, #tpu.memory_space<vmem>>, vector<32x128xf32>
    tpu.vector_store %arg14[%c0_36, %c768_37], %43 {strides = array<i32>} : memref<32x1152xf32, #tpu.memory_space<vmem>>, vector<32x128xf32>,
    %45 = vector.extract_strided_slice %30 {offsets = [224, 0], sizes = [32, 128], strides = [1, 1]} : vector<288x128xf32> to vector<32x128xf32>
    %c0_38 = arith.constant 0 : index
    %c896_39 = arith.constant 896 : index
    %46 = vector.load %arg14[%c0_38, %c896_39] : memref<32x1152xf32, #tpu.memory_space<vmem>>, vector<32x128xf32>
    tpu.vector_store %arg14[%c0_38, %c896_39], %45 {strides = array<i32>} : memref<32x1152xf32, #tpu.memory_space<vmem>>, vector<32x128xf32>,
    %47 = vector.extract_strided_slice %30 {offsets = [256, 0], sizes = [32, 128], strides = [1, 1]} : vector<288x128xf32> to vector<32x128xf32>
    %c0_40 = arith.constant 0 : index
    %c1024_41 = arith.constant 1024 : index
    %48 = vector.load %arg14[%c0_40, %c1024_41] : memref<32x1152xf32, #tpu.memory_space<vmem>>, vector<32x128xf32>
    tpu.vector_store %arg14[%c0_40, %c1024_41], %47 {strides = array<i32>} : memref<32x1152xf32, #tpu.memory_space<vmem>>, vector<32x128xf32>,
    %c0_42 = arith.constant 0 : index
    %c0_43 = arith.constant 0 : index
    %49 = vector.load %arg14[%c0_42, %c0_43] : memref<32x1152xf32, #tpu.memory_space<vmem>>, vector<32x1152xf32>
    %c0_44 = arith.constant 0 : index
    %c0_45 = arith.constant 0 : index
    %50 = vector.load %arg4[%c0_44, %c0_45] : memref<1152x128xf32, #tpu.memory_space<vmem>>, vector<1152x128xf32>
    %cst_46 = arith.constant dense<0.000000e+00> : vector<32x128xf32>
    %51 = tpu.matmul %49, %50, %cst_46 {dimension_numbers = #tpu.dot_dimension_numbers<[1], [0], [0], [1], [0, 0, 1, 1], [], []>} : vector<32x1152xf32>, vector<1152x128xf32>, vector<32x128xf32> -> vector<32x128xf32>
    %c0_47 = arith.constant 0 : index
    %c0_48 = arith.constant 0 : index
    %52 = vector.load %arg5[%c0_47, %c0_48] : memref<1x128xf32, #tpu.memory_space<vmem>>, vector<1x128xf32>
    %53 = vector.broadcast %52 : vector<1x128xf32> to vector<32x128xf32>
    %54 = arith.addf %51, %53 : vector<32x128xf32>
    %cst_49 = arith.constant 0.000000e+00 : f32
    %55 = vector.broadcast %cst_49 : f32 to vector<32x128xf32>
    %56 = arith.maximumf %54, %55 : vector<32x128xf32>
    %c0_50 = arith.constant 0 : index
    %c0_51 = arith.constant 0 : index
    %57 = vector.load %arg1[%c0_50, %c0_51] : memref<288x32xf32, #tpu.memory_space<vmem>>, vector<288x32xf32>
    %cst_52 = arith.constant dense<0.000000e+00> : vector<288x128xf32>
    %58 = tpu.matmul %57, %56, %cst_52 {dimension_numbers = #tpu.dot_dimension_numbers<[1], [0], [0], [1], [0, 0, 1, 1], [], []>} : vector<288x32xf32>, vector<32x128xf32>, vector<288x128xf32> -> vector<288x128xf32>
    %59 = vector.extract_strided_slice %58 {offsets = [0, 0], sizes = [32, 128], strides = [1, 1]} : vector<288x128xf32> to vector<32x128xf32>
    %c0_53 = arith.constant 0 : index
    %c0_54 = arith.constant 0 : index
    %60 = vector.load %arg14[%c0_53, %c0_54] : memref<32x1152xf32, #tpu.memory_space<vmem>>, vector<32x128xf32>
    tpu.vector_store %arg14[%c0_53, %c0_54], %59 {strides = array<i32>} : memref<32x1152xf32, #tpu.memory_space<vmem>>, vector<32x128xf32>,
    %61 = vector.extract_strided_slice %58 {offsets = [32, 0], sizes = [32, 128], strides = [1, 1]} : vector<288x128xf32> to vector<32x128xf32>
    %c0_55 = arith.constant 0 : index
    %c128_56 = arith.constant 128 : index
    %62 = vector.load %arg14[%c0_55, %c128_56] : memref<32x1152xf32, #tpu.memory_space<vmem>>, vector<32x128xf32>
    tpu.vector_store %arg14[%c0_55, %c128_56], %61 {strides = array<i32>} : memref<32x1152xf32, #tpu.memory_space<vmem>>, vector<32x128xf32>,
    %63 = vector.extract_strided_slice %58 {offsets = [64, 0], sizes = [32, 128], strides = [1, 1]} : vector<288x128xf32> to vector<32x128xf32>
    %c0_57 = arith.constant 0 : index
    %c256_58 = arith.constant 256 : index
    %64 = vector.load %arg14[%c0_57, %c256_58] : memref<32x1152xf32, #tpu.memory_space<vmem>>, vector<32x128xf32>
    tpu.vector_store %arg14[%c0_57, %c256_58], %63 {strides = array<i32>} : memref<32x1152xf32, #tpu.memory_space<vmem>>, vector<32x128xf32>,
    %65 = vector.extract_strided_slice %58 {offsets = [96, 0], sizes = [32, 128], strides = [1, 1]} : vector<288x128xf32> to vector<32x128xf32>
    %c0_59 = arith.constant 0 : index
    %c384_60 = arith.constant 384 : index
    %66 = vector.load %arg14[%c0_59, %c384_60] : memref<32x1152xf32, #tpu.memory_space<vmem>>, vector<32x128xf32>
    tpu.vector_store %arg14[%c0_59, %c384_60], %65 {strides = array<i32>} : memref<32x1152xf32, #tpu.memory_space<vmem>>, vector<32x128xf32>,
    %67 = vector.extract_strided_slice %58 {offsets = [128, 0], sizes = [32, 128], strides = [1, 1]} : vector<288x128xf32> to vector<32x128xf32>
    %c0_61 = arith.constant 0 : index
    %c512_62 = arith.constant 512 : index
    %68 = vector.load %arg14[%c0_61, %c512_62] : memref<32x1152xf32, #tpu.memory_space<vmem>>, vector<32x128xf32>
    tpu.vector_store %arg14[%c0_61, %c512_62], %67 {strides = array<i32>} : memref<32x1152xf32, #tpu.memory_space<vmem>>, vector<32x128xf32>,
    %69 = vector.extract_strided_slice %58 {offsets = [160, 0], sizes = [32, 128], strides = [1, 1]} : vector<288x128xf32> to vector<32x128xf32>
    %c0_63 = arith.constant 0 : index
    %c640_64 = arith.constant 640 : index
    %70 = vector.load %arg14[%c0_63, %c640_64] : memref<32x1152xf32, #tpu.memory_space<vmem>>, vector<32x128xf32>
    tpu.vector_store %arg14[%c0_63, %c640_64], %69 {strides = array<i32>} : memref<32x1152xf32, #tpu.memory_space<vmem>>, vector<32x128xf32>,
    %71 = vector.extract_strided_slice %58 {offsets = [192, 0], sizes = [32, 128], strides = [1, 1]} : vector<288x128xf32> to vector<32x128xf32>
    %c0_65 = arith.constant 0 : index
    %c768_66 = arith.constant 768 : index
    %72 = vector.load %arg14[%c0_65, %c768_66] : memref<32x1152xf32, #tpu.memory_space<vmem>>, vector<32x128xf32>
    tpu.vector_store %arg14[%c0_65, %c768_66], %71 {strides = array<i32>} : memref<32x1152xf32, #tpu.memory_space<vmem>>, vector<32x128xf32>,
    %73 = vector.extract_strided_slice %58 {offsets = [224, 0], sizes = [32, 128], strides = [1, 1]} : vector<288x128xf32> to vector<32x128xf32>
    %c0_67 = arith.constant 0 : index
    %c896_68 = arith.constant 896 : index
    %74 = vector.load %arg14[%c0_67, %c896_68] : memref<32x1152xf32, #tpu.memory_space<vmem>>, vector<32x128xf32>
    tpu.vector_store %arg14[%c0_67, %c896_68], %73 {strides = array<i32>} : memref<32x1152xf32, #tpu.memory_space<vmem>>, vector<32x128xf32>,
    %75 = vector.extract_strided_slice %58 {offsets = [256, 0], sizes = [32, 128], strides = [1, 1]} : vector<288x128xf32> to vector<32x128xf32>
    %c0_69 = arith.constant 0 : index
    %c1024_70 = arith.constant 1024 : index
    %76 = vector.load %arg14[%c0_69, %c1024_70] : memref<32x1152xf32, #tpu.memory_space<vmem>>, vector<32x128xf32>
    tpu.vector_store %arg14[%c0_69, %c1024_70], %75 {strides = array<i32>} : memref<32x1152xf32, #tpu.memory_space<vmem>>, vector<32x128xf32>,
    %c0_71 = arith.constant 0 : index
    %c0_72 = arith.constant 0 : index
    %77 = vector.load %arg14[%c0_71, %c0_72] : memref<32x1152xf32, #tpu.memory_space<vmem>>, vector<32x1152xf32>
    %c0_73 = arith.constant 0 : index
    %c0_74 = arith.constant 0 : index
    %78 = vector.load %arg6[%c0_73, %c0_74] : memref<1152x128xf32, #tpu.memory_space<vmem>>, vector<1152x128xf32>
    %cst_75 = arith.constant dense<0.000000e+00> : vector<32x128xf32>
    %79 = tpu.matmul %77, %78, %cst_75 {dimension_numbers = #tpu.dot_dimension_numbers<[1], [0], [0], [1], [0, 0, 1, 1], [], []>} : vector<32x1152xf32>, vector<1152x128xf32>, vector<32x128xf32> -> vector<32x128xf32>
    %c0_76 = arith.constant 0 : index
    %c0_77 = arith.constant 0 : index
    %80 = vector.load %arg7[%c0_76, %c0_77] : memref<1x128xf32, #tpu.memory_space<vmem>>, vector<1x128xf32>
    %81 = vector.broadcast %80 : vector<1x128xf32> to vector<32x128xf32>
    %82 = arith.addf %79, %81 : vector<32x128xf32>
    %cst_78 = arith.constant 0.000000e+00 : f32
    %83 = vector.broadcast %cst_78 : f32 to vector<32x128xf32>
    %84 = arith.maximumf %82, %83 : vector<32x128xf32>
    %c0_79 = arith.constant 0 : index
    %c0_80 = arith.constant 0 : index
    %85 = vector.load %arg8[%c0_79, %c0_80] : memref<128x32xf32, #tpu.memory_space<vmem>>, vector<128x32xf32>
    %cst_81 = arith.constant dense<0.000000e+00> : vector<128x128xf32>
    %86 = tpu.matmul %85, %84, %cst_81 {dimension_numbers = #tpu.dot_dimension_numbers<[1], [0], [0], [1], [0, 0, 1, 1], [], []>} : vector<128x32xf32>, vector<32x128xf32>, vector<128x128xf32> -> vector<128x128xf32>
    %87 = vector.extract_strided_slice %86 {offsets = [0, 0], sizes = [8, 128], strides = [1, 1]} : vector<128x128xf32> to vector<8x128xf32>
    %c0_82 = arith.constant 0 : index
    %c0_83 = arith.constant 0 : index
    %88 = vector.load %arg15[%c0_82, %c0_83] : memref<8x2048xf32, #tpu.memory_space<vmem>>, vector<8x128xf32>
    tpu.vector_store %arg15[%c0_82, %c0_83], %87 {strides = array<i32>} : memref<8x2048xf32, #tpu.memory_space<vmem>>, vector<8x128xf32>,
    %89 = vector.extract_strided_slice %86 {offsets = [8, 0], sizes = [8, 128], strides = [1, 1]} : vector<128x128xf32> to vector<8x128xf32>
    %c0_84 = arith.constant 0 : index
    %c128_85 = arith.constant 128 : index
    %90 = vector.load %arg15[%c0_84, %c128_85] : memref<8x2048xf32, #tpu.memory_space<vmem>>, vector<8x128xf32>
    tpu.vector_store %arg15[%c0_84, %c128_85], %89 {strides = array<i32>} : memref<8x2048xf32, #tpu.memory_space<vmem>>, vector<8x128xf32>,
    %91 = vector.extract_strided_slice %86 {offsets = [16, 0], sizes = [8, 128], strides = [1, 1]} : vector<128x128xf32> to vector<8x128xf32>
    %c0_86 = arith.constant 0 : index
    %c256_87 = arith.constant 256 : index
    %92 = vector.load %arg15[%c0_86, %c256_87] : memref<8x2048xf32, #tpu.memory_space<vmem>>, vector<8x128xf32>
    tpu.vector_store %arg15[%c0_86, %c256_87], %91 {strides = array<i32>} : memref<8x2048xf32, #tpu.memory_space<vmem>>, vector<8x128xf32>,
    %93 = vector.extract_strided_slice %86 {offsets = [24, 0], sizes = [8, 128], strides = [1, 1]} : vector<128x128xf32> to vector<8x128xf32>
    %c0_88 = arith.constant 0 : index
    %c384_89 = arith.constant 384 : index
    %94 = vector.load %arg15[%c0_88, %c384_89] : memref<8x2048xf32, #tpu.memory_space<vmem>>, vector<8x128xf32>
    tpu.vector_store %arg15[%c0_88, %c384_89], %93 {strides = array<i32>} : memref<8x2048xf32, #tpu.memory_space<vmem>>, vector<8x128xf32>,
    %95 = vector.extract_strided_slice %86 {offsets = [32, 0], sizes = [8, 128], strides = [1, 1]} : vector<128x128xf32> to vector<8x128xf32>
    %c0_90 = arith.constant 0 : index
    %c512_91 = arith.constant 512 : index
    %96 = vector.load %arg15[%c0_90, %c512_91] : memref<8x2048xf32, #tpu.memory_space<vmem>>, vector<8x128xf32>
    tpu.vector_store %arg15[%c0_90, %c512_91], %95 {strides = array<i32>} : memref<8x2048xf32, #tpu.memory_space<vmem>>, vector<8x128xf32>,
    %97 = vector.extract_strided_slice %86 {offsets = [40, 0], sizes = [8, 128], strides = [1, 1]} : vector<128x128xf32> to vector<8x128xf32>
    %c0_92 = arith.constant 0 : index
    %c640_93 = arith.constant 640 : index
    %98 = vector.load %arg15[%c0_92, %c640_93] : memref<8x2048xf32, #tpu.memory_space<vmem>>, vector<8x128xf32>
    tpu.vector_store %arg15[%c0_92, %c640_93], %97 {strides = array<i32>} : memref<8x2048xf32, #tpu.memory_space<vmem>>, vector<8x128xf32>,
    %99 = vector.extract_strided_slice %86 {offsets = [48, 0], sizes = [8, 128], strides = [1, 1]} : vector<128x128xf32> to vector<8x128xf32>
    %c0_94 = arith.constant 0 : index
    %c768_95 = arith.constant 768 : index
    %100 = vector.load %arg15[%c0_94, %c768_95] : memref<8x2048xf32, #tpu.memory_space<vmem>>, vector<8x128xf32>
    tpu.vector_store %arg15[%c0_94, %c768_95], %99 {strides = array<i32>} : memref<8x2048xf32, #tpu.memory_space<vmem>>, vector<8x128xf32>,
    %101 = vector.extract_strided_slice %86 {offsets = [56, 0], sizes = [8, 128], strides = [1, 1]} : vector<128x128xf32> to vector<8x128xf32>
    %c0_96 = arith.constant 0 : index
    %c896_97 = arith.constant 896 : index
    %102 = vector.load %arg15[%c0_96, %c896_97] : memref<8x2048xf32, #tpu.memory_space<vmem>>, vector<8x128xf32>
    tpu.vector_store %arg15[%c0_96, %c896_97], %101 {strides = array<i32>} : memref<8x2048xf32, #tpu.memory_space<vmem>>, vector<8x128xf32>,
    %103 = vector.extract_strided_slice %86 {offsets = [64, 0], sizes = [8, 128], strides = [1, 1]} : vector<128x128xf32> to vector<8x128xf32>
    %c0_98 = arith.constant 0 : index
    %c1024_99 = arith.constant 1024 : index
    %104 = vector.load %arg15[%c0_98, %c1024_99] : memref<8x2048xf32, #tpu.memory_space<vmem>>, vector<8x128xf32>
    tpu.vector_store %arg15[%c0_98, %c1024_99], %103 {strides = array<i32>} : memref<8x2048xf32, #tpu.memory_space<vmem>>, vector<8x128xf32>,
    %105 = vector.extract_strided_slice %86 {offsets = [72, 0], sizes = [8, 128], strides = [1, 1]} : vector<128x128xf32> to vector<8x128xf32>
    %c0_100 = arith.constant 0 : index
    %c1152 = arith.constant 1152 : index
    %106 = vector.load %arg15[%c0_100, %c1152] : memref<8x2048xf32, #tpu.memory_space<vmem>>, vector<8x128xf32>
    tpu.vector_store %arg15[%c0_100, %c1152], %105 {strides = array<i32>} : memref<8x2048xf32, #tpu.memory_space<vmem>>, vector<8x128xf32>,
    %107 = vector.extract_strided_slice %86 {offsets = [80, 0], sizes = [8, 128], strides = [1, 1]} : vector<128x128xf32> to vector<8x128xf32>
    %c0_101 = arith.constant 0 : index
    %c1280 = arith.constant 1280 : index
    %108 = vector.load %arg15[%c0_101, %c1280] : memref<8x2048xf32, #tpu.memory_space<vmem>>, vector<8x128xf32>
    tpu.vector_store %arg15[%c0_101, %c1280], %107 {strides = array<i32>} : memref<8x2048xf32, #tpu.memory_space<vmem>>, vector<8x128xf32>,
    %109 = vector.extract_strided_slice %86 {offsets = [88, 0], sizes = [8, 128], strides = [1, 1]} : vector<128x128xf32> to vector<8x128xf32>
    %c0_102 = arith.constant 0 : index
    %c1408 = arith.constant 1408 : index
    %110 = vector.load %arg15[%c0_102, %c1408] : memref<8x2048xf32, #tpu.memory_space<vmem>>, vector<8x128xf32>
    tpu.vector_store %arg15[%c0_102, %c1408], %109 {strides = array<i32>} : memref<8x2048xf32, #tpu.memory_space<vmem>>, vector<8x128xf32>,
    %111 = vector.extract_strided_slice %86 {offsets = [96, 0], sizes = [8, 128], strides = [1, 1]} : vector<128x128xf32> to vector<8x128xf32>
    %c0_103 = arith.constant 0 : index
    %c1536 = arith.constant 1536 : index
    %112 = vector.load %arg15[%c0_103, %c1536] : memref<8x2048xf32, #tpu.memory_space<vmem>>, vector<8x128xf32>
    tpu.vector_store %arg15[%c0_103, %c1536], %111 {strides = array<i32>} : memref<8x2048xf32, #tpu.memory_space<vmem>>, vector<8x128xf32>,
    %113 = vector.extract_strided_slice %86 {offsets = [104, 0], sizes = [8, 128], strides = [1, 1]} : vector<128x128xf32> to vector<8x128xf32>
    %c0_104 = arith.constant 0 : index
    %c1664 = arith.constant 1664 : index
    %114 = vector.load %arg15[%c0_104, %c1664] : memref<8x2048xf32, #tpu.memory_space<vmem>>, vector<8x128xf32>
    tpu.vector_store %arg15[%c0_104, %c1664], %113 {strides = array<i32>} : memref<8x2048xf32, #tpu.memory_space<vmem>>, vector<8x128xf32>,
    %115 = vector.extract_strided_slice %86 {offsets = [112, 0], sizes = [8, 128], strides = [1, 1]} : vector<128x128xf32> to vector<8x128xf32>
    %c0_105 = arith.constant 0 : index
    %c1792 = arith.constant 1792 : index
    %116 = vector.load %arg15[%c0_105, %c1792] : memref<8x2048xf32, #tpu.memory_space<vmem>>, vector<8x128xf32>
    tpu.vector_store %arg15[%c0_105, %c1792], %115 {strides = array<i32>} : memref<8x2048xf32, #tpu.memory_space<vmem>>, vector<8x128xf32>,
    %117 = vector.extract_strided_slice %86 {offsets = [120, 0], sizes = [8, 128], strides = [1, 1]} : vector<128x128xf32> to vector<8x128xf32>
    %c0_106 = arith.constant 0 : index
    %c1920 = arith.constant 1920 : index
    %118 = vector.load %arg15[%c0_106, %c1920] : memref<8x2048xf32, #tpu.memory_space<vmem>>, vector<8x128xf32>
    tpu.vector_store %arg15[%c0_106, %c1920], %117 {strides = array<i32>} : memref<8x2048xf32, #tpu.memory_space<vmem>>, vector<8x128xf32>,
    %c0_107 = arith.constant 0 : index
    %c0_108 = arith.constant 0 : index
    %119 = vector.load %arg15[%c0_107, %c0_108] : memref<8x2048xf32, #tpu.memory_space<vmem>>, vector<8x2048xf32>
    %c0_109 = arith.constant 0 : index
    %c0_110 = arith.constant 0 : index
    %120 = vector.load %arg9[%c0_109, %c0_110] : memref<2048x128xf32, #tpu.memory_space<vmem>>, vector<2048x128xf32>
    %cst_111 = arith.constant dense<0.000000e+00> : vector<8x128xf32>
    %121 = tpu.matmul %119, %120, %cst_111 {dimension_numbers = #tpu.dot_dimension_numbers<[1], [0], [0], [1], [0, 0, 1, 1], [], []>} : vector<8x2048xf32>, vector<2048x128xf32>, vector<8x128xf32> -> vector<8x128xf32>
    %c0_112 = arith.constant 0 : index
    %c0_113 = arith.constant 0 : index
    %122 = vector.load %arg10[%c0_112, %c0_113] : memref<1x128xf32, #tpu.memory_space<vmem>>, vector<1x128xf32>
    %123 = vector.broadcast %122 : vector<1x128xf32> to vector<8x128xf32>
    %124 = arith.addf %121, %123 : vector<8x128xf32>
    %cst_114 = arith.constant 0.000000e+00 : f32
    %125 = vector.broadcast %cst_114 : f32 to vector<8x128xf32>
    %126 = arith.maximumf %124, %125 : vector<8x128xf32>
    %c0_115 = arith.constant 0 : index
    %c0_116 = arith.constant 0 : index
    %127 = vector.load %arg11[%c0_115, %c0_116] : memref<128x128xf32, #tpu.memory_space<vmem>>, vector<128x128xf32>
    %cst_117 = arith.constant dense<0.000000e+00> : vector<8x128xf32>
    %128 = tpu.matmul %126, %127, %cst_117 {dimension_numbers = #tpu.dot_dimension_numbers<[1], [0], [0], [1], [0, 0, 1, 1], [], []>} : vector<8x128xf32>, vector<128x128xf32>, vector<8x128xf32> -> vector<8x128xf32>
    %c0_118 = arith.constant 0 : index
    %c0_119 = arith.constant 0 : index
    %129 = vector.load %arg12[%c0_118, %c0_119] : memref<1x128xf32, #tpu.memory_space<vmem>>, vector<1x128xf32>
    %130 = vector.broadcast %129 : vector<1x128xf32> to vector<8x128xf32>
    %131 = arith.addf %128, %130 : vector<8x128xf32>
    %132 = tpu.iota {dimensions = array<i32: 1>} : vector<8x128xi32>
    %c2_i32 = arith.constant 2 : i32
    %133 = vector.broadcast %c2_i32 : i32 to vector<8x128xi32>
    %134 = arith.cmpi eq, %132, %133 : vector<8x128xi32>
    %135 = arith.negf %131 : vector<8x128xf32>
    %136 = math.exp %135 : vector<8x128xf32>
    %cst_120 = arith.constant 1.000000e+00 : f32
    %137 = vector.broadcast %cst_120 : f32 to vector<8x128xf32>
    %138 = arith.addf %137, %136 : vector<8x128xf32>
    %139 = arith.divf %137, %138 : vector<8x128xf32>
    %140 = arith.select %134, %139, %131 : vector<8x128xi1>, vector<8x128xf32>
    %c0_121 = arith.constant 0 : index
    %c0_122 = arith.constant 0 : index
    %141 = vector.load %arg13[%c0_121, %c0_122] : memref<8x128xf32, #tpu.memory_space<vmem>>, vector<8x128xf32>
    tpu.vector_store %arg13[%c0_121, %c0_122], %140 {strides = array<i32>} : memref<8x128xf32, #tpu.memory_space<vmem>>, vector<8x128xf32>,
    return
  }
}

</mosaic_0001>

<llo_original>
// kernel: tpu_custom_call.1
$region0: #{tpu_custom_call.1}
  #allocation0 [shape = 'u32[]', space=smem, size = 0x4, offset = 0x4, fixed_abs, tag = 'smem constant byte address 0x4 - core index']
  #allocation1 [shape = 'u32[144,128]{1,0:T(1,128)}', space=vmem, size = 0x12000, scoped, tag = 'internal scratch']
  #allocation2 [shape = 'f32[32,1152]{1,0:T(8,128)}', space=vmem, size = 0x24000, scoped, tag = 'scratch operand']
  #allocation3 [shape = 'f32[8,2048]{1,0:T(8,128)}', space=vmem, size = 0x10000, scoped, tag = 'scratch operand']
  %s0 = inlined_call_operand.vmem [shape: f32[32,128], index: 0, kind: input, shape index: {}]
  %s1 = inlined_call_operand.vmem [shape: f32[288,32], index: 1, kind: input, shape index: {}]
  %s2 = inlined_call_operand.hbm [shape: f32[1152,128], index: 2, kind: input, shape index: {}]
  %s3 = inlined_call_operand.vmem [shape: f32[1,128], index: 3, kind: input, shape index: {}]
  %s4 = inlined_call_operand.hbm [shape: f32[1152,128], index: 4, kind: input, shape index: {}]
  %s5 = inlined_call_operand.vmem [shape: f32[1,128], index: 5, kind: input, shape index: {}]
  %s6 = inlined_call_operand.hbm [shape: f32[1152,128], index: 6, kind: input, shape index: {}]
  %s7 = inlined_call_operand.vmem [shape: f32[1,128], index: 7, kind: input, shape index: {}]
  %s8 = inlined_call_operand.vmem [shape: f32[128,32], index: 8, kind: input, shape index: {}]
  %s9 = inlined_call_operand.hbm [shape: f32[2048,128], index: 9, kind: input, shape index: {}]
  %s10 = inlined_call_operand.vmem [shape: f32[1,128], index: 10, kind: input, shape index: {}]
  %s11 = inlined_call_operand.vmem [shape: f32[128,128], index: 11, kind: input, shape index: {}]
  %s12 = inlined_call_operand.vmem [shape: f32[1,128], index: 12, kind: input, shape index: {}]
  %s13 = inlined_call_operand.hbm [shape: f32[8,128], index: 13, kind: output, shape index: {}]
  %s14 = sld [smem:[#allocation0]]
  $region78: #{tpu_custom_call.1} parent=0
    _
  %s16 = ssub.s32 1, %s14
  %s17 = scalar_select 0, %s16, %s14
  $region1: #{tpu_custom_call.1} parent=0
    #allocation4 [shape = 'u8[589824]{0}', space=vmem, size = 0x90000, scoped, tag = 'input window, operand 2, single buffered']
    #allocation5 [shape = 's32[1]{0}', space=sflag, size = 0x4, scoped, tag = 'scoped memory for tpu_custom_call.1']
    #allocation6 [shape = 's32[1]{0}', space=sflag, size = 0x4, scoped, tag = 'scoped memory for tpu_custom_call.1']
    #allocation7 [shape = 'u8[589824]{0}', space=vmem, size = 0x90000, scoped, tag = 'input window, operand 4, single buffered']
    #allocation8 [shape = 's32[1]{0}', space=sflag, size = 0x4, scoped, tag = 'scoped memory for tpu_custom_call.1']
    #allocation9 [shape = 'u8[589824]{0}', space=vmem, size = 0x90000, scoped, tag = 'input window, operand 6, single buffered']
    #allocation10 [shape = 'u8[1048576]{0}', space=vmem, size = 0x100000, scoped, tag = 'input window, operand 9, single buffered']
    #allocation11 [shape = 's32[1]{0}', space=sflag, size = 0x4, scoped, tag = 'scoped memory for tpu_custom_call.1']
    #allocation12 [shape = 'u8[4096]{0}', space=vmem, size = 0x1000, scoped, tag = 'output window, operand 0, single buffered']
    %18 = vsyncpa [#allocation5], 0
    %19 = vsyncpa [#allocation8], 0
    %20 = vsyncpa [#allocation11], 0
    %21 = vsyncpa [#allocation6], 0
    // Predicated region
    $region2: #{tpu_custom_call.1} parent=1 // pred_check
      _
    $region3: #{tpu_custom_call.1} parent=1 // pred_check_branch
      %23 = sbr.rel (0) target = $region5
    $region4: #{tpu_custom_call.1} parent=1 // pred_region
      _
    $region5: #{tpu_custom_call.1} parent=1 // pred_fallthru
      _
    // Predicated region
    $region6: #{tpu_custom_call.1} parent=1 // pred_check
      _
    $region7: #{tpu_custom_call.1} parent=1 // pred_check_branch
      %25 = sbr.rel (0) target = $region9
    $region8: #{tpu_custom_call.1} parent=1 // pred_region
      _
    $region9: #{tpu_custom_call.1} parent=1 // pred_fallthru
      _
    // Predicated region
    $region10: #{tpu_custom_call.1} parent=1 // pred_check
      _
    $region11: #{tpu_custom_call.1} parent=1 // pred_check_branch
      %27 = sbr.rel (0) target = $region13
    $region12: #{tpu_custom_call.1} parent=1 // pred_region
      %s29 = ssub.s32 18432, 18432
      %30 = vsyncadd [#allocation5], %s29
      %s31 = sshll.u32 [#allocation4], 4
      %s32 = int_to_ptr.vmem [resolvable:$true] %s31
      %37 = dma.hbm_to_vmem [thread:$0]  %s2, 18432, %s32, [#allocation5], 128, 128, 8
    $region13: #{tpu_custom_call.1} parent=1 // pred_fallthru
      _
    // Predicated region
    $region14: #{tpu_custom_call.1} parent=1 // pred_check
      _
    $region15: #{tpu_custom_call.1} parent=1 // pred_check_branch
      %39 = sbr.rel (0) target = $region17
    $region16: #{tpu_custom_call.1} parent=1 // pred_region
      _
    $region17: #{tpu_custom_call.1} parent=1 // pred_fallthru
      _
    // Predicated region
    $region18: #{tpu_custom_call.1} parent=1 // pred_check
      _
    $region19: #{tpu_custom_call.1} parent=1 // pred_check_branch
      %41 = sbr.rel (0) target = $region21
    $region20: #{tpu_custom_call.1} parent=1 // pred_region
      %s43 = ssub.s32 18432, 18432
      %44 = vsyncadd [#allocation8], %s43
      %s45 = sshll.u32 [#allocation7], 4
      %s46 = int_to_ptr.vmem [resolvable:$true] %s45
      %51 = dma.hbm_to_vmem [thread:$0]  %s4, 18432, %s46, [#allocation8], 128, 128, 8
    $region21: #{tpu_custom_call.1} parent=1 // pred_fallthru
      _
    // Predicated region
    $region22: #{tpu_custom_call.1} parent=1 // pred_check
      _
    $region23: #{tpu_custom_call.1} parent=1 // pred_check_branch
      %53 = sbr.rel (0) target = $region25
    $region24: #{tpu_custom_call.1} parent=1 // pred_region
      _
    $region25: #{tpu_custom_call.1} parent=1 // pred_fallthru
      _
    // Predicated region
    $region26: #{tpu_custom_call.1} parent=1 // pred_check
      _
    $region27: #{tpu_custom_call.1} parent=1 // pred_check_branch
      %55 = sbr.rel (0) target = $region29
    $region28: #{tpu_custom_call.1} parent=1 // pred_region
      %s57 = ssub.s32 18432, 18432
      %58 = vsyncadd [#allocation8], %s57
      %s59 = sshll.u32 [#allocation9], 4
      %s60 = int_to_ptr.vmem [resolvable:$true] %s59
      %65 = dma.hbm_to_vmem [thread:$0]  %s6, 18432, %s60, [#allocation8], 128, 128, 8
    $region29: #{tpu_custom_call.1} parent=1 // pred_fallthru
      _
    // Predicated region
    $region30: #{tpu_custom_call.1} parent=1 // pred_check
      _
    $region31: #{tpu_custom_call.1} parent=1 // pred_check_branch
      %67 = sbr.rel (0) target = $region33
    $region32: #{tpu_custom_call.1} parent=1 // pred_region
      _
    $region33: #{tpu_custom_call.1} parent=1 // pred_fallthru
      _
    // Predicated region
    $region34: #{tpu_custom_call.1} parent=1 // pred_check
      _
    $region35: #{tpu_custom_call.1} parent=1 // pred_check_branch
      %69 = sbr.rel (0) target = $region37
    $region36: #{tpu_custom_call.1} parent=1 // pred_region
      _
    $region37: #{tpu_custom_call.1} parent=1 // pred_fallthru
      _
    // Predicated region
    $region38: #{tpu_custom_call.1} parent=1 // pred_check
      _
    $region39: #{tpu_custom_call.1} parent=1 // pred_check_branch
      %71 = sbr.rel (0) target = $region41
    $region40: #{tpu_custom_call.1} parent=1 // pred_region
      %s73 = ssub.s32 32768, 32768
      %74 = vsyncadd [#allocation11], %s73
      %s75 = sshll.u32 [#allocation10], 4
      %s76 = int_to_ptr.vmem [resolvable:$true] %s75
      %81 = dma.hbm_to_vmem [thread:$0]  %s9, 32768, %s76, [#allocation11], 128, 128, 8
    $region41: #{tpu_custom_call.1} parent=1 // pred_fallthru
      _
    // Predicated region
    $region42: #{tpu_custom_call.1} parent=1 // pred_check
      _
    $region43: #{tpu_custom_call.1} parent=1 // pred_check_branch
      %83 = sbr.rel (0) target = $region45
    $region44: #{tpu_custom_call.1} parent=1 // pred_region
      _
    $region45: #{tpu_custom_call.1} parent=1 // pred_fallthru
      _
    // Predicated region
    $region46: #{tpu_custom_call.1} parent=1 // pred_check
      _
    $region47: #{tpu_custom_call.1} parent=1 // pred_check_branch
      %85 = sbr.rel (0) target = $region49
    $region48: #{tpu_custom_call.1} parent=1 // pred_region
      _
    $region49: #{tpu_custom_call.1} parent=1 // pred_fallthru
      _
    // Predicated region
    $region50: #{tpu_custom_call.1} parent=1 // pred_check
      _
    $region51: #{tpu_custom_call.1} parent=1 // pred_check_branch
      %87 = sbr.rel (0) target = $region53
    $region52: #{tpu_custom_call.1} parent=1 // pred_region
      _
    $region53: #{tpu_custom_call.1} parent=1 // pred_fallthru
      _
    // Predicated region
    $region54: #{tpu_custom_call.1} parent=1 // pred_check
      _
    $region55: #{tpu_custom_call.1} parent=1 // pred_check_branch
      %89 = sbr.rel (0) target = $region57
    $region56: #{tpu_custom_call.1} parent=1 // pred_region
      %90 = dma.done [#allocation5], 18432
    $region57: #{tpu_custom_call.1} parent=1 // pred_fallthru
      _
    // Predicated region
    $region58: #{tpu_custom_call.1} parent=1 // pred_check
      _
    $region59: #{tpu_custom_call.1} parent=1 // pred_check_branch
      %92 = sbr.rel (0) target = $region61
    $region60: #{tpu_custom_call.1} parent=1 // pred_region
      %93 = dma.done [#allocation8], 18432
    $region61: #{tpu_custom_call.1} parent=1 // pred_fallthru
      _
    // Predicated region
    $region62: #{tpu_custom_call.1} parent=1 // pred_check
      _
    $region63: #{tpu_custom_call.1} parent=1 // pred_check_branch
      %95 = sbr.rel (0) target = $region65
    $region64: #{tpu_custom_call.1} parent=1 // pred_region
      %96 = dma.done [#allocation8], 18432
    $region65: #{tpu_custom_call.1} parent=1 // pred_fallthru
      _
    // Predicated region
    $region66: #{tpu_custom_call.1} parent=1 // pred_check
      _
    $region67: #{tpu_custom_call.1} parent=1 // pred_check_branch
      %98 = sbr.rel (0) target = $region69
    $region68: #{tpu_custom_call.1} parent=1 // pred_region
      %99 = dma.done [#allocation11], 32768
    $region69: #{tpu_custom_call.1} parent=1 // pred_fallthru
      _
    %v100 = vld [vmem:[%s0] sm:$0xff]
    %v101 = vld [vmem:[%s0 + $0x8] sm:$0xff]
    %v102 = vld [vmem:[%s0 + $0x10] sm:$0xff]
    %v103 = vld [vmem:[%s0 + $0x18] sm:$0xff]
    %v104 = vld [vmem:[%s1] sm:$0xff]
    %v105 = vld [vmem:[%s1 + $0x8] sm:$0xff]
    %v106 = vld [vmem:[%s1 + $0x10] sm:$0xff]
    %v107 = vld [vmem:[%s1 + $0x18] sm:$0xff]
    %v108 = vld [vmem:[%s1 + $0x20] sm:$0xff]
    %v109 = vld [vmem:[%s1 + $0x28] sm:$0xff]
    %v110 = vld [vmem:[%s1 + $0x30] sm:$0xff]
    %v111 = vld [vmem:[%s1 + $0x38] sm:$0xff]
    %v112 = vld [vmem:[%s1 + $0x40] sm:$0xff]
    %v113 = vld [vmem:[%s1 + $0x48] sm:$0xff]
    %v114 = vld [vmem:[%s1 + $0x50] sm:$0xff]
    %v115 = vld [vmem:[%s1 + $0x58] sm:$0xff]
    %v116 = vld [vmem:[%s1 + $0x60] sm:$0xff]
    %v117 = vld [vmem:[%s1 + $0x68] sm:$0xff]
    %v118 = vld [vmem:[%s1 + $0x70] sm:$0xff]
    %v119 = vld [vmem:[%s1 + $0x78] sm:$0xff]
    %v120 = vld [vmem:[%s1 + $0x80] sm:$0xff]
    %v121 = vld [vmem:[%s1 + $0x88] sm:$0xff]
    %v122 = vld [vmem:[%s1 + $0x90] sm:$0xff]
    %v123 = vld [vmem:[%s1 + $0x98] sm:$0xff]
    %v124 = vld [vmem:[%s1 + $0xa0] sm:$0xff]
    %v125 = vld [vmem:[%s1 + $0xa8] sm:$0xff]
    %v126 = vld [vmem:[%s1 + $0xb0] sm:$0xff]
    %v127 = vld [vmem:[%s1 + $0xb8] sm:$0xff]
    %v128 = vld [vmem:[%s1 + $0xc0] sm:$0xff]
    %v129 = vld [vmem:[%s1 + $0xc8] sm:$0xff]
    %v130 = vld [vmem:[%s1 + $0xd0] sm:$0xff]
    %v131 = vld [vmem:[%s1 + $0xd8] sm:$0xff]
    %v132 = vld [vmem:[%s1 + $0xe0] sm:$0xff]
    %v133 = vld [vmem:[%s1 + $0xe8] sm:$0xff]
    %v134 = vld [vmem:[%s1 + $0xf0] sm:$0xff]
    %v135 = vld [vmem:[%s1 + $0xf8] sm:$0xff]
    %v136 = vld [vmem:[%s1 + $0x100] sm:$0xff]
    %v137 = vld [vmem:[%s1 + $0x108] sm:$0xff]
    %v138 = vld [vmem:[%s1 + $0x110] sm:$0xff]
    %v139 = vld [vmem:[%s1 + $0x118] sm:$0xff]
    %vm140 = vcmask 261120
    %v142 = vsel %vm140, %v104, 0
    %v145 = vsel %vm140, %v105, 0
    %v148 = vsel %vm140, %v106, 0
    %v151 = vsel %vm140, %v107, 0
    %v154 = vsel %vm140, %v108, 0
    %v157 = vsel %vm140, %v109, 0
    %v160 = vsel %vm140, %v110, 0
    %v163 = vsel %vm140, %v111, 0
    %v166 = vsel %vm140, %v112, 0
    %v169 = vsel %vm140, %v113, 0
    %v172 = vsel %vm140, %v114, 0
    %v175 = vsel %vm140, %v115, 0
    %v178 = vsel %vm140, %v116, 0
    %v181 = vsel %vm140, %v117, 0
    %v184 = vsel %vm140, %v118, 0
    %v187 = vsel %vm140, %v119, 0
    %v190 = vsel %vm140, %v120, 0
    %v193 = vsel %vm140, %v121, 0
    %v196 = vsel %vm140, %v122, 0
    %v199 = vsel %vm140, %v123, 0
    %v202 = vsel %vm140, %v124, 0
    %v205 = vsel %vm140, %v125, 0
    %v208 = vsel %vm140, %v126, 0
    %v211 = vsel %vm140, %v127, 0
    %v214 = vsel %vm140, %v128, 0
    %v217 = vsel %vm140, %v129, 0
    %v220 = vsel %vm140, %v130, 0
    %v223 = vsel %vm140, %v131, 0
    %v226 = vsel %vm140, %v132, 0
    %v229 = vsel %vm140, %v133, 0
    %v232 = vsel %vm140, %v134, 0
    %v235 = vsel %vm140, %v135, 0
    %v238 = vsel %vm140, %v136, 0
    %v241 = vsel %vm140, %v137, 0
    %v244 = vsel %vm140, %v138, 0
    %v247 = vsel %vm140, %v139, 0
    %249 = vmatprep.subr.mxu0 0.0
    %250 = vmatpush1.msra.mxu0 0.0
    %251 = vmatprep.subr.mxu0 0.0
    %252 = vmatpush1.msra.mxu0 0.0
    %253 = vmatprep.subr.mxu0 0.0
    %254 = vmatpush1.msra.mxu0 0.0
    %255 = vmatprep.subr.mxu0 0.0
    %256 = vmatpush1.msra.mxu0 0.0
    %257 = vmatprep.subr.mxu0 0.0
    %258 = vmatpush1.msra.mxu0 0.0
    %259 = vmatprep.subr.mxu0 0.0
    %260 = vmatpush1.msra.mxu0 0.0
    %261 = vmatprep.subr.mxu0 0.0
    %262 = vmatpush1.msra.mxu0 0.0
    %263 = vmatprep.subr.mxu0 0.0
    %264 = vmatpush1.msra.mxu0 0.0
    %265 = vmatprep.subr.mxu0 0.0
    %266 = vmatpush1.msra.mxu0 0.0
    %267 = vmatprep.subr.mxu0 0.0
    %268 = vmatpush1.msra.mxu0 0.0
    %269 = vmatprep.subr.mxu0 0.0
    %270 = vmatpush1.msra.mxu0 0.0
    %271 = vmatprep.subr.mxu0 0.0
    %272 = vmatpush1.msra.mxu0 0.0
    %273 = vmatprep.subr.mxu0 0.0
    %274 = vmatpush1.msra.mxu0 %v103
    %275 = vmatprep.subr.mxu0 0.0
    %276 = vmatpush1.msra.mxu0 %v102
    %277 = vmatprep.subr.mxu0 0.0
    %278 = vmatpush1.msra.mxu0 %v101
    %279 = vmatprep.subr.mxu0 0.0
    %280 = vmatpush1.msra.mxu0 %v100
    %281 = vmatprep.subr.mxu0 0.0
    %282 = vmatpush2.msra.mxu0 0.0
    %283 = vmatprep.subr.mxu0 0.0
    %284 = vmatpush2.msra.mxu0 0.0
    %285 = vmatprep.subr.mxu0 0.0
    %286 = vmatpush2.msra.mxu0 0.0
    %287 = vmatprep.subr.mxu0 0.0
    %288 = vmatpush2.msra.mxu0 0.0
    %289 = vmatprep.subr.mxu0 0.0
    %290 = vmatpush2.msra.mxu0 0.0
    %291 = vmatprep.subr.mxu0 0.0
    %292 = vmatpush2.msra.mxu0 0.0
    %293 = vmatprep.subr.mxu0 0.0
    %294 = vmatpush2.msra.mxu0 0.0
    %295 = vmatprep.subr.mxu0 0.0
    %296 = vmatpush2.msra.mxu0 0.0
    %297 = vmatprep.subr.mxu0 0.0
    %298 = vmatpush2.msra.mxu0 0.0
    %299 = vmatprep.subr.mxu0 0.0
    %300 = vmatpush2.msra.mxu0 0.0
    %301 = vmatprep.subr.mxu0 0.0
    %302 = vmatpush2.msra.mxu0 0.0
    %303 = vmatprep.subr.mxu0 0.0
    %304 = vmatpush2.msra.mxu0 0.0
    %305 = vmatprep.subr.mxu0 0.0
    %306 = vmatpush2.msra.mxu0 0.0
    %307 = vmatprep.subr.mxu0 0.0
    %308 = vmatpush2.msra.mxu0 0.0
    %309 = vmatprep.subr.mxu0 0.0
    %310 = vmatpush2.msra.mxu0 0.0
    %311 = vmatprep.subr.mxu0 0.0
    %312 = vmatpush2.msra.mxu0 0.0
    %313 = vmatprep.mubr.f32.mxu0 0.0
    %314 = vmatmul.mubr.f32.gmra.mxu0 %v142
    %v315 = vpop.f32.mrf.mxu0
    %v316 = vadd.f32 0.0, %v315
    %v317 = vpop.f32.mrf.mxu0
    %318 = vmatprep.mubr.f32.mxu0 0.0
    %319 = vmatmul.mubr.f32.gmra.mxu0 %v145
    %v320 = vpop.f32.mrf.mxu0
    %v321 = vadd.f32 0.0, %v320
    %v322 = vpop.f32.mrf.mxu0
    %323 = vmatprep.mubr.f32.mxu0 0.0
    %324 = vmatmul.mubr.f32.gmra.mxu0 %v148
    %v325 = vpop.f32.mrf.mxu0
    %v326 = vadd.f32 0.0, %v325
    %v327 = vpop.f32.mrf.mxu0
    %328 = vmatprep.mubr.f32.mxu0 0.0
    %329 = vmatmul.mubr.f32.gmra.mxu0 %v151
    %v330 = vpop.f32.mrf.mxu0
    %v331 = vadd.f32 0.0, %v330
    %v332 = vpop.f32.mrf.mxu0
    %333 = vmatprep.mubr.f32.mxu0 0.0
    %334 = vmatmul.mubr.f32.gmra.mxu0 %v154
    %v335 = vpop.f32.mrf.mxu0
    %v336 = vadd.f32 0.0, %v335
    %v337 = vpop.f32.mrf.mxu0
    %338 = vmatprep.mubr.f32.mxu0 0.0
    %339 = vmatmul.mubr.f32.gmra.mxu0 %v157
    %v340 = vpop.f32.mrf.mxu0
    %v341 = vadd.f32 0.0, %v340
    %v342 = vpop.f32.mrf.mxu0
    %343 = vmatprep.mubr.f32.mxu0 0.0
    %344 = vmatmul.mubr.f32.gmra.mxu0 %v160
    %v345 = vpop.f32.mrf.mxu0
    %v346 = vadd.f32 0.0, %v345
    %v347 = vpop.f32.mrf.mxu0
    %348 = vmatprep.mubr.f32.mxu0 0.0
    %349 = vmatmul.mubr.f32.gmra.mxu0 %v163
    %v350 = vpop.f32.mrf.mxu0
    %v351 = vadd.f32 0.0, %v350
    %v352 = vpop.f32.mrf.mxu0
    %353 = vmatprep.mubr.f32.mxu0 0.0
    %354 = vmatmul.mubr.f32.gmra.mxu0 %v166
    %v355 = vpop.f32.mrf.mxu0
    %v356 = vadd.f32 0.0, %v355
    %v357 = vpop.f32.mrf.mxu0
    %358 = vmatprep.mubr.f32.mxu0 0.0
    %359 = vmatmul.mubr.f32.gmra.mxu0 %v169
    %v360 = vpop.f32.mrf.mxu0
    %v361 = vadd.f32 0.0, %v360
    %v362 = vpop.f32.mrf.mxu0
    %363 = vmatprep.mubr.f32.mxu0 0.0
    %364 = vmatmul.mubr.f32.gmra.mxu0 %v172
    %v365 = vpop.f32.mrf.mxu0
    %v366 = vadd.f32 0.0, %v365
    %v367 = vpop.f32.mrf.mxu0
    %368 = vmatprep.mubr.f32.mxu0 0.0
    %369 = vmatmul.mubr.f32.gmra.mxu0 %v175
    %v370 = vpop.f32.mrf.mxu0
    %v371 = vadd.f32 0.0, %v370
    %v372 = vpop.f32.mrf.mxu0
    %373 = vmatprep.mubr.f32.mxu0 0.0
    %374 = vmatmul.mubr.f32.gmra.mxu0 %v178
    %v375 = vpop.f32.mrf.mxu0
    %v376 = vadd.f32 0.0, %v375
    %v377 = vpop.f32.mrf.mxu0
    %378 = vmatprep.mubr.f32.mxu0 0.0
    %379 = vmatmul.mubr.f32.gmra.mxu0 %v181
    %v380 = vpop.f32.mrf.mxu0
    %v381 = vadd.f32 0.0, %v380
    %v382 = vpop.f32.mrf.mxu0
    %383 = vmatprep.mubr.f32.mxu0 0.0
    %384 = vmatmul.mubr.f32.gmra.mxu0 %v184
    %v385 = vpop.f32.mrf.mxu0
    %v386 = vadd.f32 0.0, %v385
    %v387 = vpop.f32.mrf.mxu0
    %388 = vmatprep.mubr.f32.mxu0 0.0
    %389 = vmatmul.mubr.f32.gmra.mxu0 %v187
    %v390 = vpop.f32.mrf.mxu0
    %v391 = vadd.f32 0.0, %v390
    %v392 = vpop.f32.mrf.mxu0
    %393 = vmatprep.mubr.f32.mxu0 0.0
    %394 = vmatmul.mubr.f32.gmra.mxu0 %v190
    %v395 = vpop.f32.mrf.mxu0
    %v396 = vadd.f32 0.0, %v395
    %v397 = vpop.f32.mrf.mxu0
    %398 = vmatprep.mubr.f32.mxu0 0.0
    %399 = vmatmul.mubr.f32.gmra.mxu0 %v193
    %v400 = vpop.f32.mrf.mxu0
    %v401 = vadd.f32 0.0, %v400
    %v402 = vpop.f32.mrf.mxu0
    %403 = vmatprep.mubr.f32.mxu0 0.0
    %404 = vmatmul.mubr.f32.gmra.mxu0 %v196
    %v405 = vpop.f32.mrf.mxu0
    %v406 = vadd.f32 0.0, %v405
    %v407 = vpop.f32.mrf.mxu0
    %408 = vmatprep.mubr.f32.mxu0 0.0
    %409 = vmatmul.mubr.f32.gmra.mxu0 %v199
    %v410 = vpop.f32.mrf.mxu0
    %v411 = vadd.f32 0.0, %v410
    %v412 = vpop.f32.mrf.mxu0
    %413 = vmatprep.mubr.f32.mxu0 0.0
    %414 = vmatmul.mubr.f32.gmra.mxu0 %v202
    %v415 = vpop.f32.mrf.mxu0
    %v416 = vadd.f32 0.0, %v415
    %v417 = vpop.f32.mrf.mxu0
    %418 = vmatprep.mubr.f32.mxu0 0.0
    %419 = vmatmul.mubr.f32.gmra.mxu0 %v205
    %v420 = vpop.f32.mrf.mxu0
    %v421 = vadd.f32 0.0, %v420
    %v422 = vpop.f32.mrf.mxu0
    %423 = vmatprep.mubr.f32.mxu0 0.0
    %424 = vmatmul.mubr.f32.gmra.mxu0 %v208
    %v425 = vpop.f32.mrf.mxu0
    %v426 = vadd.f32 0.0, %v425
    %v427 = vpop.f32.mrf.mxu0
    %428 = vmatprep.mubr.f32.mxu0 0.0
    %429 = vmatmul.mubr.f32.gmra.mxu0 %v211
    %v430 = vpop.f32.mrf.mxu0
    %v431 = vadd.f32 0.0, %v430
    %v432 = vpop.f32.mrf.mxu0
    %433 = vmatprep.mubr.f32.mxu0 0.0
    %434 = vmatmul.mubr.f32.gmra.mxu0 %v214
    %v435 = vpop.f32.mrf.mxu0
    %v436 = vadd.f32 0.0, %v435
    %v437 = vpop.f32.mrf.mxu0
    %438 = vmatprep.mubr.f32.mxu0 0.0
    %439 = vmatmul.mubr.f32.gmra.mxu0 %v217
    %v440 = vpop.f32.mrf.mxu0
    %v441 = vadd.f32 0.0, %v440
    %v442 = vpop.f32.mrf.mxu0
    %443 = vmatprep.mubr.f32.mxu0 0.0
    %444 = vmatmul.mubr.f32.gmra.mxu0 %v220
    %v445 = vpop.f32.mrf.mxu0
    %v446 = vadd.f32 0.0, %v445
    %v447 = vpop.f32.mrf.mxu0
    %448 = vmatprep.mubr.f32.mxu0 0.0
    %449 = vmatmul.mubr.f32.gmra.mxu0 %v223
    %v450 = vpop.f32.mrf.mxu0
    %v451 = vadd.f32 0.0, %v450
    %v452 = vpop.f32.mrf.mxu0
    %453 = vmatprep.mubr.f32.mxu0 0.0
    %454 = vmatmul.mubr.f32.gmra.mxu0 %v226
    %v455 = vpop.f32.mrf.mxu0
    %v456 = vadd.f32 0.0, %v455
    %v457 = vpop.f32.mrf.mxu0
    %458 = vmatprep.mubr.f32.mxu0 0.0
    %459 = vmatmul.mubr.f32.gmra.mxu0 %v229
    %v460 = vpop.f32.mrf.mxu0
    %v461 = vadd.f32 0.0, %v460
    %v462 = vpop.f32.mrf.mxu0
    %463 = vmatprep.mubr.f32.mxu0 0.0
    %464 = vmatmul.mubr.f32.gmra.mxu0 %v232
    %v465 = vpop.f32.mrf.mxu0
    %v466 = vadd.f32 0.0, %v465
    %v467 = vpop.f32.mrf.mxu0
    %468 = vmatprep.mubr.f32.mxu0 0.0
    %469 = vmatmul.mubr.f32.gmra.mxu0 %v235
    %v470 = vpop.f32.mrf.mxu0
    %v471 = vadd.f32 0.0, %v470
    %v472 = vpop.f32.mrf.mxu0
    %473 = vmatprep.mubr.f32.mxu0 0.0
    %474 = vmatmul.mubr.f32.gmra.mxu0 %v238
    %v475 = vpop.f32.mrf.mxu0
    %v476 = vadd.f32 0.0, %v475
    %v477 = vpop.f32.mrf.mxu0
    %478 = vmatprep.mubr.f32.mxu0 0.0
    %479 = vmatmul.mubr.f32.gmra.mxu0 %v241
    %v480 = vpop.f32.mrf.mxu0
    %v481 = vadd.f32 0.0, %v480
    %v482 = vpop.f32.mrf.mxu0
    %483 = vmatprep.mubr.f32.mxu0 0.0
    %484 = vmatmul.mubr.f32.gmra.mxu0 %v244
    %v485 = vpop.f32.mrf.mxu0
    %v486 = vadd.f32 0.0, %v485
    %v487 = vpop.f32.mrf.mxu0
    %488 = vmatprep.mubr.f32.mxu0 0.0
    %489 = vmatmul.mubr.f32.gmra.mxu0 %v247
    %v490 = vpop.f32.mrf.mxu0
    %v491 = vadd.f32 0.0, %v490
    %v492 = vpop.f32.mrf.mxu0
    %493 = vdwg.mxu0
    %494 = vst [vmem:[#allocation2] sm:$0xff] %v316
    %495 = vst [vmem:[#allocation2 + $0x48] sm:$0xff] %v321
    %496 = vst [vmem:[#allocation2 + $0x90] sm:$0xff] %v326
    %497 = vst [vmem:[#allocation2 + $0xd8] sm:$0xff] %v331
    %498 = vst [vmem:[#allocation2 + $0x8] sm:$0xff] %v336
    %499 = vst [vmem:[#allocation2 + $0x50] sm:$0xff] %v341
    %500 = vst [vmem:[#allocation2 + $0x98] sm:$0xff] %v346
    %501 = vst [vmem:[#allocation2 + $0xe0] sm:$0xff] %v351
    %502 = vst [vmem:[#allocation2 + $0x10] sm:$0xff] %v356
    %503 = vst [vmem:[#allocation2 + $0x58] sm:$0xff] %v361
    %504 = vst [vmem:[#allocation2 + $0xa0] sm:$0xff] %v366
    %505 = vst [vmem:[#allocation2 + $0xe8] sm:$0xff] %v371
    %506 = vst [vmem:[#allocation2 + $0x18] sm:$0xff] %v376
    %507 = vst [vmem:[#allocation2 + $0x60] sm:$0xff] %v381
    %508 = vst [vmem:[#allocation2 + $0xa8] sm:$0xff] %v386
    %509 = vst [vmem:[#allocation2 + $0xf0] sm:$0xff] %v391
    %510 = vst [vmem:[#allocation2 + $0x20] sm:$0xff] %v396
    %511 = vst [vmem:[#allocation2 + $0x68] sm:$0xff] %v401
    %512 = vst [vmem:[#allocation2 + $0xb0] sm:$0xff] %v406
    %513 = vst [vmem:[#allocation2 + $0xf8] sm:$0xff] %v411
    %514 = vst [vmem:[#allocation2 + $0x28] sm:$0xff] %v416
    %515 = vst [vmem:[#allocation2 + $0x70] sm:$0xff] %v421
    %516 = vst [vmem:[#allocation2 + $0xb8] sm:$0xff] %v426
    %517 = vst [vmem:[#allocation2 + $0x100] sm:$0xff] %v431
    %518 = vst [vmem:[#allocation2 + $0x30] sm:$0xff] %v436
    %519 = vst [vmem:[#allocation2 + $0x78] sm:$0xff] %v441
    %520 = vst [vmem:[#allocation2 + $0xc0] sm:$0xff] %v446
    %521 = vst [vmem:[#allocation2 + $0x108] sm:$0xff] %v451
    %522 = vst [vmem:[#allocation2 + $0x38] sm:$0xff] %v456
    %523 = vst [vmem:[#allocation2 + $0x80] sm:$0xff] %v461
    %524 = vst [vmem:[#allocation2 + $0xc8] sm:$0xff] %v466
    %525 = vst [vmem:[#allocation2 + $0x110] sm:$0xff] %v471
    %526 = vst [vmem:[#allocation2 + $0x40] sm:$0xff] %v476
    %527 = vst [vmem:[#allocation2 + $0x88] sm:$0xff] %v481
    %528 = vst [vmem:[#allocation2 + $0xd0] sm:$0xff] %v486
    %529 = vst [vmem:[#allocation2 + $0x118] sm:$0xff] %v491
    %v530 = vld [vmem:[#allocation2] sm:$0xff]
    %v531 = vld [vmem:[#allocation2 + $0x8] sm:$0xff]
    %v532 = vld [vmem:[#allocation2 + $0x10] sm:$0xff]
    %v533 = vld [vmem:[#allocation2 + $0x18] sm:$0xff]
    %v534 = vld [vmem:[#allocation2 + $0x20] sm:$0xff]
    %v535 = vld [vmem:[#allocation2 + $0x28] sm:$0xff]
    %v536 = vld [vmem:[#allocation2 + $0x30] sm:$0xff]
    %v537 = vld [vmem:[#allocation2 + $0x38] sm:$0xff]
    %v538 = vld [vmem:[#allocation2 + $0x40] sm:$0xff]
    %v539 = vld [vmem:[#allocation2 + $0x48] sm:$0xff]
    %v540 = vld [vmem:[#allocation2 + $0x50] sm:$0xff]
    %v541 = vld [vmem:[#allocation2 + $0x58] sm:$0xff]
    %v542 = vld [vmem:[#allocation2 + $0x60] sm:$0xff]
    %v543 = vld [vmem:[#allocation2 + $0x68] sm:$0xff]
    %v544 = vld [vmem:[#allocation2 + $0x70] sm:$0xff]
    %v545 = vld [vmem:[#allocation2 + $0x78] sm:$0xff]
    %v546 = vld [vmem:[#allocation2 + $0x80] sm:$0xff]
    %v547 = vld [vmem:[#allocation2 + $0x88] sm:$0xff]
    %v548 = vld [vmem:[#allocation2 + $0x90] sm:$0xff]
    %v549 = vld [vmem:[#allocation2 + $0x98] sm:$0xff]
    %v550 = vld [vmem:[#allocation2 + $0xa0] sm:$0xff]
    %v551 = vld [vmem:[#allocation2 + $0xa8] sm:$0xff]
    %v552 = vld [vmem:[#allocation2 + $0xb0] sm:$0xff]
    %v553 = vld [vmem:[#allocation2 + $0xb8] sm:$0xff]
    %v554 = vld [vmem:[#allocation2 + $0xc0] sm:$0xff]
    %v555 = vld [vmem:[#allocation2 + $0xc8] sm:$0xff]
    %v556 = vld [vmem:[#allocation2 + $0xd0] sm:$0xff]
    %v557 = vld [vmem:[#allocation2 + $0xd8] sm:$0xff]
    %v558 = vld [vmem:[#allocation2 + $0xe0] sm:$0xff]
    %v559 = vld [vmem:[#allocation2 + $0xe8] sm:$0xff]
    %v560 = vld [vmem:[#allocation2 + $0xf0] sm:$0xff]
    %v561 = vld [vmem:[#allocation2 + $0xf8] sm:$0xff]
    %v562 = vld [vmem:[#allocation2 + $0x100] sm:$0xff]
    %v563 = vld [vmem:[#allocation2 + $0x108] sm:$0xff]
    %v564 = vld [vmem:[#allocation2 + $0x110] sm:$0xff]
    %v565 = vld [vmem:[#allocation2 + $0x118] sm:$0xff]
    %v566 = vld [vmem:[#allocation4] sm:$0xff]
    %v567 = vld [vmem:[#allocation4 + $0x8] sm:$0xff]
    %v568 = vld [vmem:[#allocation4 + $0x10] sm:$0xff]
    %v569 = vld [vmem:[#allocation4 + $0x18] sm:$0xff]
    %v570 = vld [vmem:[#allocation4 + $0x20] sm:$0xff]
    %v571 = vld [vmem:[#allocation4 + $0x28] sm:$0xff]
    %v572 = vld [vmem:[#allocation4 + $0x30] sm:$0xff]
    %v573 = vld [vmem:[#allocation4 + $0x38] sm:$0xff]
    %v574 = vld [vmem:[#allocation4 + $0x40] sm:$0xff]
    %v575 = vld [vmem:[#allocation4 + $0x48] sm:$0xff]
    %v576 = vld [vmem:[#allocation4 + $0x50] sm:$0xff]
    %v577 = vld [vmem:[#allocation4 + $0x58] sm:$0xff]
    %v578 = vld [vmem:[#allocation4 + $0x60] sm:$0xff]
    %v579 = vld [vmem:[#allocation4 + $0x68] sm:$0xff]
    %v580 = vld [vmem:[#allocation4 + $0x70] sm:$0xff]
    %v581 = vld [vmem:[#allocation4 + $0x78] sm:$0xff]
    %v582 = vld [vmem:[#allocation4 + $0x80] sm:$0xff]
    %v583 = vld [vmem:[#allocation4 + $0x88] sm:$0xff]
    %v584 = vld [vmem:[#allocation4 + $0x90] sm:$0xff]
    %v585 = vld [vmem:[#allocation4 + $0x98] sm:$0xff]
    %v586 = vld [vmem:[#allocation4 + $0xa0] sm:$0xff]
    %v587 = vld [vmem:[#allocation4 + $0xa8] sm:$0xff]
    %v588 = vld [vmem:[#allocation4 + $0xb0] sm:$0xff]
    %v589 = vld [vmem:[#allocation4 + $0xb8] sm:$0xff]
    %v590 = vld [vmem:[#allocation4 + $0xc0] sm:$0xff]
    %v591 = vld [vmem:[#allocation4 + $0xc8] sm:$0xff]
    %v592 = vld [vmem:[#allocation4 + $0xd0] sm:$0xff]
    %v593 = vld [vmem:[#allocation4 + $0xd8] sm:$0xff]
    %v594 = vld [vmem:[#allocation4 + $0xe0] sm:$0xff]
    %v595 = vld [vmem:[#allocation4 + $0xe8] sm:$0xff]
    %v596 = vld [vmem:[#allocation4 + $0xf0] sm:$0xff]
    %v597 = vld [vmem:[#allocation4 + $0xf8] sm:$0xff]
    %v598 = vld [vmem:[#allocation4 + $0x100] sm:$0xff]
    %v599 = vld [vmem:[#allocation4 + $0x108] sm:$0xff]
    %v600 = vld [vmem:[#allocation4 + $0x110] sm:$0xff]
    %v601 = vld [vmem:[#allocation4 + $0x118] sm:$0xff]
    %v602 = vld [vmem:[#allocation4 + $0x120] sm:$0xff]
    %v603 = vld [vmem:[#allocation4 + $0x128] sm:$0xff]
    %v604 = vld [vmem:[#allocation4 + $0x130] sm:$0xff]
    %v605 = vld [vmem:[#allocation4 + $0x138] sm:$0xff]
    %v606 = vld [vmem:[#allocation4 + $0x140] sm:$0xff]
    %v607 = vld [vmem:[#allocation4 + $0x148] sm:$0xff]
    %v608 = vld [vmem:[#allocation4 + $0x150] sm:$0xff]
    %v609 = vld [vmem:[#allocation4 + $0x158] sm:$0xff]
    %v610 = vld [vmem:[#allocation4 + $0x160] sm:$0xff]
    %v611 = vld [vmem:[#allocation4 + $0x168] sm:$0xff]
    %v612 = vld [vmem:[#allocation4 + $0x170] sm:$0xff]
    %v613 = vld [vmem:[#allocation4 + $0x178] sm:$0xff]
    %v614 = vld [vmem:[#allocation4 + $0x180] sm:$0xff]
    %v615 = vld [vmem:[#allocation4 + $0x188] sm:$0xff]
    %v616 = vld [vmem:[#allocation4 + $0x190] sm:$0xff]
    %v617 = vld [vmem:[#allocation4 + $0x198] sm:$0xff]
    %v618 = vld [vmem:[#allocation4 + $0x1a0] sm:$0xff]
    %v619 = vld [vmem:[#allocation4 + $0x1a8] sm:$0xff]
    %v620 = vld [vmem:[#allocation4 + $0x1b0] sm:$0xff]
    %v621 = vld [vmem:[#allocation4 + $0x1b8] sm:$0xff]
    %v622 = vld [vmem:[#allocation4 + $0x1c0] sm:$0xff]
    %v623 = vld [vmem:[#allocation4 + $0x1c8] sm:$0xff]
    %v624 = vld [vmem:[#allocation4 + $0x1d0] sm:$0xff]
    %v625 = vld [vmem:[#allocation4 + $0x1d8] sm:$0xff]
    %v626 = vld [vmem:[#allocation4 + $0x1e0] sm:$0xff]
    %v627 = vld [vmem:[#allocation4 + $0x1e8] sm:$0xff]
    %v628 = vld [vmem:[#allocation4 + $0x1f0] sm:$0xff]
    %v629 = vld [vmem:[#allocation4 + $0x1f8] sm:$0xff]
    %v630 = vld [vmem:[#allocation4 + $0x200] sm:$0xff]
    %v631 = vld [vmem:[#allocation4 + $0x208] sm:$0xff]
    %v632 = vld [vmem:[#allocation4 + $0x210] sm:$0xff]
    %v633 = vld [vmem:[#allocation4 + $0x218] sm:$0xff]
    %v634 = vld [vmem:[#allocation4 + $0x220] sm:$0xff]
    %v635 = vld [vmem:[#allocation4 + $0x228] sm:$0xff]
    %v636 = vld [vmem:[#allocation4 + $0x230] sm:$0xff]
    %v637 = vld [vmem:[#allocation4 + $0x238] sm:$0xff]
    %v638 = vld [vmem:[#allocation4 + $0x240] sm:$0xff]
    %v639 = vld [vmem:[#allocation4 + $0x248] sm:$0xff]
    %v640 = vld [vmem:[#allocation4 + $0x250] sm:$0xff]
    %v641 = vld [vmem:[#allocation4 + $0x258] sm:$0xff]
    %v642 = vld [vmem:[#allocation4 + $0x260] sm:$0xff]
    %v643 = vld [vmem:[#allocation4 + $0x268] sm:$0xff]
    %v644 = vld [vmem:[#allocation4 + $0x270] sm:$0xff]
    %v645 = vld [vmem:[#allocation4 + $0x278] sm:$0xff]
    %v646 = vld [vmem:[#allocation4 + $0x280] sm:$0xff]
    %v647 = vld [vmem:[#allocation4 + $0x288] sm:$0xff]
    %v648 = vld [vmem:[#allocation4 + $0x290] sm:$0xff]
    %v649 = vld [vmem:[#allocation4 + $0x298] sm:$0xff]
    %v650 = vld [vmem:[#allocation4 + $0x2a0] sm:$0xff]
    %v651 = vld [vmem:[#allocation4 + $0x2a8] sm:$0xff]
    %v652 = vld [vmem:[#allocation4 + $0x2b0] sm:$0xff]
    %v653 = vld [vmem:[#allocation4 + $0x2b8] sm:$0xff]
    %v654 = vld [vmem:[#allocation4 + $0x2c0] sm:$0xff]
    %v655 = vld [vmem:[#allocation4 + $0x2c8] sm:$0xff]
    %v656 = vld [vmem:[#allocation4 + $0x2d0] sm:$0xff]
    %v657 = vld [vmem:[#allocation4 + $0x2d8] sm:$0xff]
    %v658 = vld [vmem:[#allocation4 + $0x2e0] sm:$0xff]
    %v659 = vld [vmem:[#allocation4 + $0x2e8] sm:$0xff]
    %v660 = vld [vmem:[#allocation4 + $0x2f0] sm:$0xff]
    %v661 = vld [vmem:[#allocation4 + $0x2f8] sm:$0xff]
    %v662 = vld [vmem:[#allocation4 + $0x300] sm:$0xff]
    %v663 = vld [vmem:[#allocation4 + $0x308] sm:$0xff]
    %v664 = vld [vmem:[#allocation4 + $0x310] sm:$0xff]
    %v665 = vld [vmem:[#allocation4 + $0x318] sm:$0xff]
    %v666 = vld [vmem:[#allocation4 + $0x320] sm:$0xff]
    %v667 = vld [vmem:[#allocation4 + $0x328] sm:$0xff]
    %v668 = vld [vmem:[#allocation4 + $0x330] sm:$0xff]
    %v669 = vld [vmem:[#allocation4 + $0x338] sm:$0xff]
    %v670 = vld [vmem:[#allocation4 + $0x340] sm:$0xff]
    %v671 = vld [vmem:[#allocation4 + $0x348] sm:$0xff]
    %v672 = vld [vmem:[#allocation4 + $0x350] sm:$0xff]
    %v673 = vld [vmem:[#allocation4 + $0x358] sm:$0xff]
    %v674 = vld [vmem:[#allocation4 + $0x360] sm:$0xff]
    %v675 = vld [vmem:[#allocation4 + $0x368] sm:$0xff]
    %v676 = vld [vmem:[#allocation4 + $0x370] sm:$0xff]
    %v677 = vld [vmem:[#allocation4 + $0x378] sm:$0xff]
    %v678 = vld [vmem:[#allocation4 + $0x380] sm:$0xff]
    %v679 = vld [vmem:[#allocation4 + $0x388] sm:$0xff]
    %v680 = vld [vmem:[#allocation4 + $0x390] sm:$0xff]
    %v681 = vld [vmem:[#allocation4 + $0x398] sm:$0xff]
    %v682 = vld [vmem:[#allocation4 + $0x3a0] sm:$0xff]
    %v683 = vld [vmem:[#allocation4 + $0x3a8] sm:$0xff]
    %v684 = vld [vmem:[#allocation4 + $0x3b0] sm:$0xff]
    %v685 = vld [vmem:[#allocation4 + $0x3b8] sm:$0xff]
    %v686 = vld [vmem:[#allocation4 + $0x3c0] sm:$0xff]
    %v687 = vld [vmem:[#allocation4 + $0x3c8] sm:$0xff]
    %v688 = vld [vmem:[#allocation4 + $0x3d0] sm:$0xff]
    %v689 = vld [vmem:[#allocation4 + $0x3d8] sm:$0xff]
    %v690 = vld [vmem:[#allocation4 + $0x3e0] sm:$0xff]
    %v691 = vld [vmem:[#allocation4 + $0x3e8] sm:$0xff]
    %v692 = vld [vmem:[#allocation4 + $0x3f0] sm:$0xff]
    %v693 = vld [vmem:[#allocation4 + $0x3f8] sm:$0xff]
    %v694 = vld [vmem:[#allocation4 + $0x400] sm:$0xff]
    %v695 = vld [vmem:[#allocation4 + $0x408] sm:$0xff]
    %v696 = vld [vmem:[#allocation4 + $0x410] sm:$0xff]
    %v697 = vld [vmem:[#allocation4 + $0x418] sm:$0xff]
    %v698 = vld [vmem:[#allocation4 + $0x420] sm:$0xff]
    %v699 = vld [vmem:[#allocation4 + $0x428] sm:$0xff]
    %v700 = vld [vmem:[#allocation4 + $0x430] sm:$0xff]
    %v701 = vld [vmem:[#allocation4 + $0x438] sm:$0xff]
    %v702 = vld [vmem:[#allocation4 + $0x440] sm:$0xff]
    %v703 = vld [vmem:[#allocation4 + $0x448] sm:$0xff]
    %v704 = vld [vmem:[#allocation4 + $0x450] sm:$0xff]
    %v705 = vld [vmem:[#allocation4 + $0x458] sm:$0xff]
    %v706 = vld [vmem:[#allocation4 + $0x460] sm:$0xff]
    %v707 = vld [vmem:[#allocation4 + $0x468] sm:$0xff]
    %v708 = vld [vmem:[#allocation4 + $0x470] sm:$0xff]
    %v709 = vld [vmem:[#allocation4 + $0x478] sm:$0xff]
    %v710 = vld [vmem:[%s3] sm:$0x1]
    %v712 = vlaneseq
    %v713 = vshrl.u32 %v712, 7
    %v714 = vsub.s32 0, %v713
    %v715 = vrot.slane %v710, %v714
    %717 = vmatprep.subr.mxu0 0.0
    %718 = vmatpush1.msra.mxu0 %v581
    %719 = vmatprep.subr.mxu0 0.0
    %720 = vmatpush1.msra.mxu0 %v580
    %721 = vmatprep.subr.mxu0 0.0
    %722 = vmatpush1.msra.mxu0 %v579
    %723 = vmatprep.subr.mxu0 0.0
    %724 = vmatpush1.msra.mxu0 %v578
    %725 = vmatprep.subr.mxu0 0.0
    %726 = vmatpush1.msra.mxu0 %v577
    %727 = vmatprep.subr.mxu0 0.0
    %728 = vmatpush1.msra.mxu0 %v576
    %729 = vmatprep.subr.mxu0 0.0
    %730 = vmatpush1.msra.mxu0 %v575
    %731 = vmatprep.subr.mxu0 0.0
    %732 = vmatpush1.msra.mxu0 %v574
    %733 = vmatprep.subr.mxu0 0.0
    %734 = vmatpush1.msra.mxu0 %v573
    %735 = vmatprep.subr.mxu0 0.0
    %736 = vmatpush1.msra.mxu0 %v572
    %737 = vmatprep.subr.mxu0 0.0
    %738 = vmatpush1.msra.mxu0 %v571
    %739 = vmatprep.subr.mxu0 0.0
    %740 = vmatpush1.msra.mxu0 %v570
    %741 = vmatprep.subr.mxu0 0.0
    %742 = vmatpush1.msra.mxu0 %v569
    %743 = vmatprep.subr.mxu0 0.0
    %744 = vmatpush1.msra.mxu0 %v568
    %745 = vmatprep.subr.mxu0 0.0
    %746 = vmatpush1.msra.mxu0 %v567
    %747 = vmatprep.subr.mxu0 0.0
    %748 = vmatpush1.msra.mxu0 %v566
    %749 = vmatprep.subr.mxu0 0.0
    %750 = vmatpush2.msra.mxu0 %v597
    %751 = vmatprep.subr.mxu0 0.0
    %752 = vmatpush2.msra.mxu0 %v596
    %753 = vmatprep.subr.mxu0 0.0
    %754 = vmatpush2.msra.mxu0 %v595
    %755 = vmatprep.subr.mxu0 0.0
    %756 = vmatpush2.msra.mxu0 %v594
    %757 = vmatprep.subr.mxu0 0.0
    %758 = vmatpush2.msra.mxu0 %v593
    %759 = vmatprep.subr.mxu0 0.0
    %760 = vmatpush2.msra.mxu0 %v592
    %761 = vmatprep.subr.mxu0 0.0
    %762 = vmatpush2.msra.mxu0 %v591
    %763 = vmatprep.subr.mxu0 0.0
    %764 = vmatpush2.msra.mxu0 %v590
    %765 = vmatprep.subr.mxu0 0.0
    %766 = vmatpush2.msra.mxu0 %v589
    %767 = vmatprep.subr.mxu0 0.0
    %768 = vmatpush2.msra.mxu0 %v588
    %769 = vmatprep.subr.mxu0 0.0
    %770 = vmatpush2.msra.mxu0 %v587
    %771 = vmatprep.subr.mxu0 0.0
    %772 = vmatpush2.msra.mxu0 %v586
    %773 = vmatprep.subr.mxu0 0.0
    %774 = vmatpush2.msra.mxu0 %v585
    %775 = vmatprep.subr.mxu0 0.0
    %776 = vmatpush2.msra.mxu0 %v584
    %777 = vmatprep.subr.mxu0 0.0
    %778 = vmatpush2.msra.mxu0 %v583
    %779 = vmatprep.subr.mxu0 0.0
    %780 = vmatpush2.msra.mxu0 %v582
    %781 = vmatprep.mubr.f32.mxu0 %v531
    %782 = vmatmul.mubr.f32.gmra.mxu0 %v530
    %v783 = vpop.f32.mrf.mxu0
    %v784 = vadd.f32 %v715, %v783
    %v785 = vpop.f32.mrf.mxu0
    %786 = vmatprep.mubr.f32.mxu0 %v540
    %787 = vmatmul.mubr.f32.gmra.mxu0 %v539
    %v788 = vpop.f32.mrf.mxu0
    %v789 = vadd.f32 %v715, %v788
    %v790 = vpop.f32.mrf.mxu0
    %791 = vmatprep.mubr.f32.mxu0 %v549
    %792 = vmatmul.mubr.f32.gmra.mxu0 %v548
    %v793 = vpop.f32.mrf.mxu0
    %v794 = vadd.f32 %v715, %v793
    %v795 = vpop.f32.mrf.mxu0
    %796 = vmatprep.mubr.f32.mxu0 %v558
    %797 = vmatmul.mubr.f32.gmra.mxu0 %v557
    %v798 = vpop.f32.mrf.mxu0
    %v799 = vadd.f32 %v715, %v798
    %v800 = vpop.f32.mrf.mxu0
    %801 = vdwg.mxu0
    %802 = vmatprep.subr.mxu0 0.0
    %803 = vmatpush1.msra.mxu0 %v613
    %804 = vmatprep.subr.mxu0 0.0
    %805 = vmatpush1.msra.mxu0 %v612
    %806 = vmatprep.subr.mxu0 0.0
    %807 = vmatpush1.msra.mxu0 %v611
    %808 = vmatprep.subr.mxu0 0.0
    %809 = vmatpush1.msra.mxu0 %v610
    %810 = vmatprep.subr.mxu0 0.0
    %811 = vmatpush1.msra.mxu0 %v609
    %812 = vmatprep.subr.mxu0 0.0
    %813 = vmatpush1.msra.mxu0 %v608
    %814 = vmatprep.subr.mxu0 0.0
    %815 = vmatpush1.msra.mxu0 %v607
    %816 = vmatprep.subr.mxu0 0.0
    %817 = vmatpush1.msra.mxu0 %v606
    %818 = vmatprep.subr.mxu0 0.0
    %819 = vmatpush1.msra.mxu0 %v605
    %820 = vmatprep.subr.mxu0 0.0
    %821 = vmatpush1.msra.mxu0 %v604
    %822 = vmatprep.subr.mxu0 0.0
    %823 = vmatpush1.msra.mxu0 %v603
    %824 = vmatprep.subr.mxu0 0.0
    %825 = vmatpush1.msra.mxu0 %v602
    %826 = vmatprep.subr.mxu0 0.0
    %827 = vmatpush1.msra.mxu0 %v601
    %828 = vmatprep.subr.mxu0 0.0
    %829 = vmatpush1.msra.mxu0 %v600
    %830 = vmatprep.subr.mxu0 0.0
    %831 = vmatpush1.msra.mxu0 %v599
    %832 = vmatprep.subr.mxu0 0.0
    %833 = vmatpush1.msra.mxu0 %v598
    %834 = vmatprep.subr.mxu0 0.0
    %835 = vmatpush2.msra.mxu0 %v629
    %836 = vmatprep.subr.mxu0 0.0
    %837 = vmatpush2.msra.mxu0 %v628
    %838 = vmatprep.subr.mxu0 0.0
    %839 = vmatpush2.msra.mxu0 %v627
    %840 = vmatprep.subr.mxu0 0.0
    %841 = vmatpush2.msra.mxu0 %v626
    %842 = vmatprep.subr.mxu0 0.0
    %843 = vmatpush2.msra.mxu0 %v625
    %844 = vmatprep.subr.mxu0 0.0
    %845 = vmatpush2.msra.mxu0 %v624
    %846 = vmatprep.subr.mxu0 0.0
    %847 = vmatpush2.msra.mxu0 %v623
    %848 = vmatprep.subr.mxu0 0.0
    %849 = vmatpush2.msra.mxu0 %v622
    %850 = vmatprep.subr.mxu0 0.0
    %851 = vmatpush2.msra.mxu0 %v621
    %852 = vmatprep.subr.mxu0 0.0
    %853 = vmatpush2.msra.mxu0 %v620
    %854 = vmatprep.subr.mxu0 0.0
    %855 = vmatpush2.msra.mxu0 %v619
    %856 = vmatprep.subr.mxu0 0.0
    %857 = vmatpush2.msra.mxu0 %v618
    %858 = vmatprep.subr.mxu0 0.0
    %859 = vmatpush2.msra.mxu0 %v617
    %860 = vmatprep.subr.mxu0 0.0
    %861 = vmatpush2.msra.mxu0 %v616
    %862 = vmatprep.subr.mxu0 0.0
    %863 = vmatpush2.msra.mxu0 %v615
    %864 = vmatprep.subr.mxu0 0.0
    %865 = vmatpush2.msra.mxu0 %v614
    %866 = vmatprep.mubr.f32.mxu0 %v533
    %867 = vmatmul.mubr.f32.gmra.mxu0 %v532
    %v868 = vpop.f32.mrf.mxu0
    %v869 = vadd.f32 %v784, %v868
    %v870 = vpop.f32.mrf.mxu0
    %871 = vmatprep.mubr.f32.mxu0 %v542
    %872 = vmatmul.mubr.f32.gmra.mxu0 %v541
    %v873 = vpop.f32.mrf.mxu0
    %v874 = vadd.f32 %v789, %v873
    %v875 = vpop.f32.mrf.mxu0
    %876 = vmatprep.mubr.f32.mxu0 %v551
    %877 = vmatmul.mubr.f32.gmra.mxu0 %v550
    %v878 = vpop.f32.mrf.mxu0
    %v879 = vadd.f32 %v794, %v878
    %v880 = vpop.f32.mrf.mxu0
    %881 = vmatprep.mubr.f32.mxu0 %v560
    %882 = vmatmul.mubr.f32.gmra.mxu0 %v559
    %v883 = vpop.f32.mrf.mxu0
    %v884 = vadd.f32 %v799, %v883
    %v885 = vpop.f32.mrf.mxu0
    %886 = vdwg.mxu0
    %887 = vmatprep.subr.mxu0 0.0
    %888 = vmatpush1.msra.mxu0 %v645
    %889 = vmatprep.subr.mxu0 0.0
    %890 = vmatpush1.msra.mxu0 %v644
    %891 = vmatprep.subr.mxu0 0.0
    %892 = vmatpush1.msra.mxu0 %v643
    %893 = vmatprep.subr.mxu0 0.0
    %894 = vmatpush1.msra.mxu0 %v642
    %895 = vmatprep.subr.mxu0 0.0
    %896 = vmatpush1.msra.mxu0 %v641
    %897 = vmatprep.subr.mxu0 0.0
    %898 = vmatpush1.msra.mxu0 %v640
    %899 = vmatprep.subr.mxu0 0.0
    %900 = vmatpush1.msra.mxu0 %v639
    %901 = vmatprep.subr.mxu0 0.0
    %902 = vmatpush1.msra.mxu0 %v638
    %903 = vmatprep.subr.mxu0 0.0
    %904 = vmatpush1.msra.mxu0 %v637
    %905 = vmatprep.subr.mxu0 0.0
    %906 = vmatpush1.msra.mxu0 %v636
    %907 = vmatprep.subr.mxu0 0.0
    %908 = vmatpush1.msra.mxu0 %v635
    %909 = vmatprep.subr.mxu0 0.0
    %910 = vmatpush1.msra.mxu0 %v634
    %911 = vmatprep.subr.mxu0 0.0
    %912 = vmatpush1.msra.mxu0 %v633
    %913 = vmatprep.subr.mxu0 0.0
    %914 = vmatpush1.msra.mxu0 %v632
    %915 = vmatprep.subr.mxu0 0.0
    %916 = vmatpush1.msra.mxu0 %v631
    %917 = vmatprep.subr.mxu0 0.0
    %918 = vmatpush1.msra.mxu0 %v630
    %919 = vmatprep.subr.mxu0 0.0
    %920 = vmatpush2.msra.mxu0 %v661
    %921 = vmatprep.subr.mxu0 0.0
    %922 = vmatpush2.msra.mxu0 %v660
    %923 = vmatprep.subr.mxu0 0.0
    %924 = vmatpush2.msra.mxu0 %v659
    %925 = vmatprep.subr.mxu0 0.0
    %926 = vmatpush2.msra.mxu0 %v658
    %927 = vmatprep.subr.mxu0 0.0
    %928 = vmatpush2.msra.mxu0 %v657
    %929 = vmatprep.subr.mxu0 0.0
    %930 = vmatpush2.msra.mxu0 %v656
    %931 = vmatprep.subr.mxu0 0.0
    %932 = vmatpush2.msra.mxu0 %v655
    %933 = vmatprep.subr.mxu0 0.0
    %934 = vmatpush2.msra.mxu0 %v654
    %935 = vmatprep.subr.mxu0 0.0
    %936 = vmatpush2.msra.mxu0 %v653
    %937 = vmatprep.subr.mxu0 0.0
    %938 = vmatpush2.msra.mxu0 %v652
    %939 = vmatprep.subr.mxu0 0.0
    %940 = vmatpush2.msra.mxu0 %v651
    %941 = vmatprep.subr.mxu0 0.0
    %942 = vmatpush2.msra.mxu0 %v650
    %943 = vmatprep.subr.mxu0 0.0
    %944 = vmatpush2.msra.mxu0 %v649
    %945 = vmatprep.subr.mxu0 0.0
    %946 = vmatpush2.msra.mxu0 %v648
    %947 = vmatprep.subr.mxu0 0.0
    %948 = vmatpush2.msra.mxu0 %v647
    %949 = vmatprep.subr.mxu0 0.0
    %950 = vmatpush2.msra.mxu0 %v646
    %951 = vmatprep.mubr.f32.mxu0 %v535
    %952 = vmatmul.mubr.f32.gmra.mxu0 %v534
    %v953 = vpop.f32.mrf.mxu0
    %v954 = vadd.f32 %v869, %v953
    %v955 = vpop.f32.mrf.mxu0
    %956 = vmatprep.mubr.f32.mxu0 %v544
    %957 = vmatmul.mubr.f32.gmra.mxu0 %v543
    %v958 = vpop.f32.mrf.mxu0
    %v959 = vadd.f32 %v874, %v958
    %v960 = vpop.f32.mrf.mxu0
    %961 = vmatprep.mubr.f32.mxu0 %v553
    %962 = vmatmul.mubr.f32.gmra.mxu0 %v552
    %v963 = vpop.f32.mrf.mxu0
    %v964 = vadd.f32 %v879, %v963
    %v965 = vpop.f32.mrf.mxu0
    %966 = vmatprep.mubr.f32.mxu0 %v562
    %967 = vmatmul.mubr.f32.gmra.mxu0 %v561
    %v968 = vpop.f32.mrf.mxu0
    %v969 = vadd.f32 %v884, %v968
    %v970 = vpop.f32.mrf.mxu0
    %971 = vdwg.mxu0
    %972 = vmatprep.subr.mxu0 0.0
    %973 = vmatpush1.msra.mxu0 %v677
    %974 = vmatprep.subr.mxu0 0.0
    %975 = vmatpush1.msra.mxu0 %v676
    %976 = vmatprep.subr.mxu0 0.0
    %977 = vmatpush1.msra.mxu0 %v675
    %978 = vmatprep.subr.mxu0 0.0
    %979 = vmatpush1.msra.mxu0 %v674
    %980 = vmatprep.subr.mxu0 0.0
    %981 = vmatpush1.msra.mxu0 %v673
    %982 = vmatprep.subr.mxu0 0.0
    %983 = vmatpush1.msra.mxu0 %v672
    %984 = vmatprep.subr.mxu0 0.0
    %985 = vmatpush1.msra.mxu0 %v671
    %986 = vmatprep.subr.mxu0 0.0
    %987 = vmatpush1.msra.mxu0 %v670
    %988 = vmatprep.subr.mxu0 0.0
    %989 = vmatpush1.msra.mxu0 %v669
    %990 = vmatprep.subr.mxu0 0.0
    %991 = vmatpush1.msra.mxu0 %v668
    %992 = vmatprep.subr.mxu0 0.0
    %993 = vmatpush1.msra.mxu0 %v667
    %994 = vmatprep.subr.mxu0 0.0
    %995 = vmatpush1.msra.mxu0 %v666
    %996 = vmatprep.subr.mxu0 0.0
    %997 = vmatpush1.msra.mxu0 %v665
    %998 = vmatprep.subr.mxu0 0.0
    %999 = vmatpush1.msra.mxu0 %v664
    %1000 = vmatprep.subr.mxu0 0.0
    %1001 = vmatpush1.msra.mxu0 %v663
    %1002 = vmatprep.subr.mxu0 0.0
    %1003 = vmatpush1.msra.mxu0 %v662
    %1004 = vmatprep.subr.mxu0 0.0
    %1005 = vmatpush2.msra.mxu0 %v693
    %1006 = vmatprep.subr.mxu0 0.0
    %1007 = vmatpush2.msra.mxu0 %v692
    %1008 = vmatprep.subr.mxu0 0.0
    %1009 = vmatpush2.msra.mxu0 %v691
    %1010 = vmatprep.subr.mxu0 0.0
    %1011 = vmatpush2.msra.mxu0 %v690
    %1012 = vmatprep.subr.mxu0 0.0
    %1013 = vmatpush2.msra.mxu0 %v689
    %1014 = vmatprep.subr.mxu0 0.0
    %1015 = vmatpush2.msra.mxu0 %v688
    %1016 = vmatprep.subr.mxu0 0.0
    %1017 = vmatpush2.msra.mxu0 %v687
    %1018 = vmatprep.subr.mxu0 0.0
    %1019 = vmatpush2.msra.mxu0 %v686
    %1020 = vmatprep.subr.mxu0 0.0
    %1021 = vmatpush2.msra.mxu0 %v685
    %1022 = vmatprep.subr.mxu0 0.0
    %1023 = vmatpush2.msra.mxu0 %v684
    %1024 = vmatprep.subr.mxu0 0.0
    %1025 = vmatpush2.msra.mxu0 %v683
    %1026 = vmatprep.subr.mxu0 0.0
    %1027 = vmatpush2.msra.mxu0 %v682
    %1028 = vmatprep.subr.mxu0 0.0
    %1029 = vmatpush2.msra.mxu0 %v681
    %1030 = vmatprep.subr.mxu0 0.0
    %1031 = vmatpush2.msra.mxu0 %v680
    %1032 = vmatprep.subr.mxu0 0.0
    %1033 = vmatpush2.msra.mxu0 %v679
    %1034 = vmatprep.subr.mxu0 0.0
    %1035 = vmatpush2.msra.mxu0 %v678
    %1036 = vmatprep.mubr.f32.mxu0 %v537
    %1037 = vmatmul.mubr.f32.gmra.mxu0 %v536
    %v1038 = vpop.f32.mrf.mxu0
    %v1039 = vadd.f32 %v954, %v1038
    %v1040 = vpop.f32.mrf.mxu0
    %1041 = vmatprep.mubr.f32.mxu0 %v546
    %1042 = vmatmul.mubr.f32.gmra.mxu0 %v545
    %v1043 = vpop.f32.mrf.mxu0
    %v1044 = vadd.f32 %v959, %v1043
    %v1045 = vpop.f32.mrf.mxu0
    %1046 = vmatprep.mubr.f32.mxu0 %v555
    %1047 = vmatmul.mubr.f32.gmra.mxu0 %v554
    %v1048 = vpop.f32.mrf.mxu0
    %v1049 = vadd.f32 %v964, %v1048
    %v1050 = vpop.f32.mrf.mxu0
    %1051 = vmatprep.mubr.f32.mxu0 %v564
    %1052 = vmatmul.mubr.f32.gmra.mxu0 %v563
    %v1053 = vpop.f32.mrf.mxu0
    %v1054 = vadd.f32 %v969, %v1053
    %v1055 = vpop.f32.mrf.mxu0
    %1056 = vdwg.mxu0
    %1057 = vmatprep.subr.mxu0 0.0
    %1058 = vmatpush1.msra.mxu0 %v709
    %1059 = vmatprep.subr.mxu0 0.0
    %1060 = vmatpush1.msra.mxu0 %v708
    %1061 = vmatprep.subr.mxu0 0.0
    %1062 = vmatpush1.msra.mxu0 %v707
    %1063 = vmatprep.subr.mxu0 0.0
    %1064 = vmatpush1.msra.mxu0 %v706
    %1065 = vmatprep.subr.mxu0 0.0
    %1066 = vmatpush1.msra.mxu0 %v705
    %1067 = vmatprep.subr.mxu0 0.0
    %1068 = vmatpush1.msra.mxu0 %v704
    %1069 = vmatprep.subr.mxu0 0.0
    %1070 = vmatpush1.msra.mxu0 %v703
    %1071 = vmatprep.subr.mxu0 0.0
    %1072 = vmatpush1.msra.mxu0 %v702
    %1073 = vmatprep.subr.mxu0 0.0
    %1074 = vmatpush1.msra.mxu0 %v701
    %1075 = vmatprep.subr.mxu0 0.0
    %1076 = vmatpush1.msra.mxu0 %v700
    %1077 = vmatprep.subr.mxu0 0.0
    %1078 = vmatpush1.msra.mxu0 %v699
    %1079 = vmatprep.subr.mxu0 0.0
    %1080 = vmatpush1.msra.mxu0 %v698
    %1081 = vmatprep.subr.mxu0 0.0
    %1082 = vmatpush1.msra.mxu0 %v697
    %1083 = vmatprep.subr.mxu0 0.0
    %1084 = vmatpush1.msra.mxu0 %v696
    %1085 = vmatprep.subr.mxu0 0.0
    %1086 = vmatpush1.msra.mxu0 %v695
    %1087 = vmatprep.subr.mxu0 0.0
    %1088 = vmatpush1.msra.mxu0 %v694
    %1089 = vmatprep.subr.mxu0 0.0
    %1090 = vmatpush2.msra.mxu0 0.0
    %1091 = vmatprep.subr.mxu0 0.0
    %1092 = vmatpush2.msra.mxu0 0.0
    %1093 = vmatprep.subr.mxu0 0.0
    %1094 = vmatpush2.msra.mxu0 0.0
    %1095 = vmatprep.subr.mxu0 0.0
    %1096 = vmatpush2.msra.mxu0 0.0
    %1097 = vmatprep.subr.mxu0 0.0
    %1098 = vmatpush2.msra.mxu0 0.0
    %1099 = vmatprep.subr.mxu0 0.0
    %1100 = vmatpush2.msra.mxu0 0.0
    %1101 = vmatprep.subr.mxu0 0.0
    %1102 = vmatpush2.msra.mxu0 0.0
    %1103 = vmatprep.subr.mxu0 0.0
    %1104 = vmatpush2.msra.mxu0 0.0
    %1105 = vmatprep.subr.mxu0 0.0
    %1106 = vmatpush2.msra.mxu0 0.0
    %1107 = vmatprep.subr.mxu0 0.0
    %1108 = vmatpush2.msra.mxu0 0.0
    %1109 = vmatprep.subr.mxu0 0.0
    %1110 = vmatpush2.msra.mxu0 0.0
    %1111 = vmatprep.subr.mxu0 0.0
    %1112 = vmatpush2.msra.mxu0 0.0
    %1113 = vmatprep.subr.mxu0 0.0
    %1114 = vmatpush2.msra.mxu0 0.0
    %1115 = vmatprep.subr.mxu0 0.0
    %1116 = vmatpush2.msra.mxu0 0.0
    %1117 = vmatprep.subr.mxu0 0.0
    %1118 = vmatpush2.msra.mxu0 0.0
    %1119 = vmatprep.subr.mxu0 0.0
    %1120 = vmatpush2.msra.mxu0 0.0
    %1121 = vmatprep.mubr.f32.mxu0 0.0
    %1122 = vmatmul.mubr.f32.gmra.mxu0 %v538
    %v1123 = vpop.f32.mrf.mxu0
    %v1124 = vadd.f32 %v1039, %v1123
    %v1125 = vpop.f32.mrf.mxu0
    %1126 = vmatprep.mubr.f32.mxu0 0.0
    %1127 = vmatmul.mubr.f32.gmra.mxu0 %v547
    %v1128 = vpop.f32.mrf.mxu0
    %v1129 = vadd.f32 %v1044, %v1128
    %v1130 = vpop.f32.mrf.mxu0
    %1131 = vmatprep.mubr.f32.mxu0 0.0
    %1132 = vmatmul.mubr.f32.gmra.mxu0 %v556
    %v1133 = vpop.f32.mrf.mxu0
    %v1134 = vadd.f32 %v1049, %v1133
    %v1135 = vpop.f32.mrf.mxu0
    %1136 = vmatprep.mubr.f32.mxu0 0.0
    %1137 = vmatmul.mubr.f32.gmra.mxu0 %v565
    %v1138 = vpop.f32.mrf.mxu0
    %v1139 = vadd.f32 %v1054, %v1138
    %v1140 = vpop.f32.mrf.mxu0
    %1141 = vdwg.mxu0
    %v1142 = vmax.f32 %v1124, 0.0
    %v1143 = vmax.f32 %v1129, 0.0
    %v1144 = vmax.f32 %v1134, 0.0
    %v1145 = vmax.f32 %v1139, 0.0
    %v1146 = vld [vmem:[%s1] sm:$0xff]
    %v1147 = vld [vmem:[%s1 + $0x8] sm:$0xff]
    %v1148 = vld [vmem:[%s1 + $0x10] sm:$0xff]
    %v1149 = vld [vmem:[%s1 + $0x18] sm:$0xff]
    %v1150 = vld [vmem:[%s1 + $0x20] sm:$0xff]
    %v1151 = vld [vmem:[%s1 + $0x28] sm:$0xff]
    %v1152 = vld [vmem:[%s1 + $0x30] sm:$0xff]
    %v1153 = vld [vmem:[%s1 + $0x38] sm:$0xff]
    %v1154 = vld [vmem:[%s1 + $0x40] sm:$0xff]
    %v1155 = vld [vmem:[%s1 + $0x48] sm:$0xff]
    %v1156 = vld [vmem:[%s1 + $0x50] sm:$0xff]
    %v1157 = vld [vmem:[%s1 + $0x58] sm:$0xff]
    %v1158 = vld [vmem:[%s1 + $0x60] sm:$0xff]
    %v1159 = vld [vmem:[%s1 + $0x68] sm:$0xff]
    %v1160 = vld [vmem:[%s1 + $0x70] sm:$0xff]
    %v1161 = vld [vmem:[%s1 + $0x78] sm:$0xff]
    %v1162 = vld [vmem:[%s1 + $0x80] sm:$0xff]
    %v1163 = vld [vmem:[%s1 + $0x88] sm:$0xff]
    %v1164 = vld [vmem:[%s1 + $0x90] sm:$0xff]
    %v1165 = vld [vmem:[%s1 + $0x98] sm:$0xff]
    %v1166 = vld [vmem:[%s1 + $0xa0] sm:$0xff]
    %v1167 = vld [vmem:[%s1 + $0xa8] sm:$0xff]
    %v1168 = vld [vmem:[%s1 + $0xb0] sm:$0xff]
    %v1169 = vld [vmem:[%s1 + $0xb8] sm:$0xff]
    %v1170 = vld [vmem:[%s1 + $0xc0] sm:$0xff]
    %v1171 = vld [vmem:[%s1 + $0xc8] sm:$0xff]
    %v1172 = vld [vmem:[%s1 + $0xd0] sm:$0xff]
    %v1173 = vld [vmem:[%s1 + $0xd8] sm:$0xff]
    %v1174 = vld [vmem:[%s1 + $0xe0] sm:$0xff]
    %v1175 = vld [vmem:[%s1 + $0xe8] sm:$0xff]
    %v1176 = vld [vmem:[%s1 + $0xf0] sm:$0xff]
    %v1177 = vld [vmem:[%s1 + $0xf8] sm:$0xff]
    %v1178 = vld [vmem:[%s1 + $0x100] sm:$0xff]
    %v1179 = vld [vmem:[%s1 + $0x108] sm:$0xff]
    %v1180 = vld [vmem:[%s1 + $0x110] sm:$0xff]
    %v1181 = vld [vmem:[%s1 + $0x118] sm:$0xff]
    %v1183 = vsel %vm140, %v1146, 0
    %v1186 = vsel %vm140, %v1147, 0
    %v1189 = vsel %vm140, %v1148, 0
    %v1192 = vsel %vm140, %v1149, 0
    %v1195 = vsel %vm140, %v1150, 0
    %v1198 = vsel %vm140, %v1151, 0
    %v1201 = vsel %vm140, %v1152, 0
    %v1204 = vsel %vm140, %v1153, 0
    %v1207 = vsel %vm140, %v1154, 0
    %v1210 = vsel %vm140, %v1155, 0
    %v1213 = vsel %vm140, %v1156, 0
    %v1216 = vsel %vm140, %v1157, 0
    %v1219 = vsel %vm140, %v1158, 0
    %v1222 = vsel %vm140, %v1159, 0
    %v1225 = vsel %vm140, %v1160, 0
    %v1228 = vsel %vm140, %v1161, 0
    %v1231 = vsel %vm140, %v1162, 0
    %v1234 = vsel %vm140, %v1163, 0
    %v1237 = vsel %vm140, %v1164, 0
    %v1240 = vsel %vm140, %v1165, 0
    %v1243 = vsel %vm140, %v1166, 0
    %v1246 = vsel %vm140, %v1167, 0
    %v1249 = vsel %vm140, %v1168, 0
    %v1252 = vsel %vm140, %v1169, 0
    %v1255 = vsel %vm140, %v1170, 0
    %v1258 = vsel %vm140, %v1171, 0
    %v1261 = vsel %vm140, %v1172, 0
    %v1264 = vsel %vm140, %v1173, 0
    %v1267 = vsel %vm140, %v1174, 0
    %v1270 = vsel %vm140, %v1175, 0
    %v1273 = vsel %vm140, %v1176, 0
    %v1276 = vsel %vm140, %v1177, 0
    %v1279 = vsel %vm140, %v1178, 0
    %v1282 = vsel %vm140, %v1179, 0
    %v1285 = vsel %vm140, %v1180, 0
    %v1288 = vsel %vm140, %v1181, 0
    %1290 = vmatprep.subr.mxu0 0.0
    %1291 = vmatpush1.msra.mxu0 0.0
    %1292 = vmatprep.subr.mxu0 0.0
    %1293 = vmatpush1.msra.mxu0 0.0
    %1294 = vmatprep.subr.mxu0 0.0
    %1295 = vmatpush1.msra.mxu0 0.0
    %1296 = vmatprep.subr.mxu0 0.0
    %1297 = vmatpush1.msra.mxu0 0.0
    %1298 = vmatprep.subr.mxu0 0.0
    %1299 = vmatpush1.msra.mxu0 0.0
    %1300 = vmatprep.subr.mxu0 0.0
    %1301 = vmatpush1.msra.mxu0 0.0
    %1302 = vmatprep.subr.mxu0 0.0
    %1303 = vmatpush1.msra.mxu0 0.0
    %1304 = vmatprep.subr.mxu0 0.0
    %1305 = vmatpush1.msra.mxu0 0.0
    %1306 = vmatprep.subr.mxu0 0.0
    %1307 = vmatpush1.msra.mxu0 0.0
    %1308 = vmatprep.subr.mxu0 0.0
    %1309 = vmatpush1.msra.mxu0 0.0
    %1310 = vmatprep.subr.mxu0 0.0
    %1311 = vmatpush1.msra.mxu0 0.0
    %1312 = vmatprep.subr.mxu0 0.0
    %1313 = vmatpush1.msra.mxu0 0.0
    %1314 = vmatprep.subr.mxu0 0.0
    %1315 = vmatpush1.msra.mxu0 %v1145
    %1316 = vmatprep.subr.mxu0 0.0
    %1317 = vmatpush1.msra.mxu0 %v1144
    %1318 = vmatprep.subr.mxu0 0.0
    %1319 = vmatpush1.msra.mxu0 %v1143
    %1320 = vmatprep.subr.mxu0 0.0
    %1321 = vmatpush1.msra.mxu0 %v1142
    %1322 = vmatprep.subr.mxu0 0.0
    %1323 = vmatpush2.msra.mxu0 0.0
    %1324 = vmatprep.subr.mxu0 0.0
    %1325 = vmatpush2.msra.mxu0 0.0
    %1326 = vmatprep.subr.mxu0 0.0
    %1327 = vmatpush2.msra.mxu0 0.0
    %1328 = vmatprep.subr.mxu0 0.0
    %1329 = vmatpush2.msra.mxu0 0.0
    %1330 = vmatprep.subr.mxu0 0.0
    %1331 = vmatpush2.msra.mxu0 0.0
    %1332 = vmatprep.subr.mxu0 0.0
    %1333 = vmatpush2.msra.mxu0 0.0
    %1334 = vmatprep.subr.mxu0 0.0
    %1335 = vmatpush2.msra.mxu0 0.0
    %1336 = vmatprep.subr.mxu0 0.0
    %1337 = vmatpush2.msra.mxu0 0.0
    %1338 = vmatprep.subr.mxu0 0.0
    %1339 = vmatpush2.msra.mxu0 0.0
    %1340 = vmatprep.subr.mxu0 0.0
    %1341 = vmatpush2.msra.mxu0 0.0
    %1342 = vmatprep.subr.mxu0 0.0
    %1343 = vmatpush2.msra.mxu0 0.0
    %1344 = vmatprep.subr.mxu0 0.0
    %1345 = vmatpush2.msra.mxu0 0.0
    %1346 = vmatprep.subr.mxu0 0.0
    %1347 = vmatpush2.msra.mxu0 0.0
    %1348 = vmatprep.subr.mxu0 0.0
    %1349 = vmatpush2.msra.mxu0 0.0
    %1350 = vmatprep.subr.mxu0 0.0
    %1351 = vmatpush2.msra.mxu0 0.0
    %1352 = vmatprep.subr.mxu0 0.0
    %1353 = vmatpush2.msra.mxu0 0.0
    %1354 = vmatprep.mubr.f32.mxu0 0.0
    %1355 = vmatmul.mubr.f32.gmra.mxu0 %v1183
    %v1356 = vpop.f32.mrf.mxu0
    %v1357 = vadd.f32 0.0, %v1356
    %v1358 = vpop.f32.mrf.mxu0
    %1359 = vmatprep.mubr.f32.mxu0 0.0
    %1360 = vmatmul.mubr.f32.gmra.mxu0 %v1186
    %v1361 = vpop.f32.mrf.mxu0
    %v1362 = vadd.f32 0.0, %v1361
    %v1363 = vpop.f32.mrf.mxu0
    %1364 = vmatprep.mubr.f32.mxu0 0.0
    %1365 = vmatmul.mubr.f32.gmra.mxu0 %v1189
    %v1366 = vpop.f32.mrf.mxu0
    %v1367 = vadd.f32 0.0, %v1366
    %v1368 = vpop.f32.mrf.mxu0
    %1369 = vmatprep.mubr.f32.mxu0 0.0
    %1370 = vmatmul.mubr.f32.gmra.mxu0 %v1192
    %v1371 = vpop.f32.mrf.mxu0
    %v1372 = vadd.f32 0.0, %v1371
    %v1373 = vpop.f32.mrf.mxu0
    %1374 = vmatprep.mubr.f32.mxu0 0.0
    %1375 = vmatmul.mubr.f32.gmra.mxu0 %v1195
    %v1376 = vpop.f32.mrf.mxu0
    %v1377 = vadd.f32 0.0, %v1376
    %v1378 = vpop.f32.mrf.mxu0
    %1379 = vmatprep.mubr.f32.mxu0 0.0
    %1380 = vmatmul.mubr.f32.gmra.mxu0 %v1198
    %v1381 = vpop.f32.mrf.mxu0
    %v1382 = vadd.f32 0.0, %v1381
    %v1383 = vpop.f32.mrf.mxu0
    %1384 = vmatprep.mubr.f32.mxu0 0.0
    %1385 = vmatmul.mubr.f32.gmra.mxu0 %v1201
    %v1386 = vpop.f32.mrf.mxu0
    %v1387 = vadd.f32 0.0, %v1386
    %v1388 = vpop.f32.mrf.mxu0
    %1389 = vmatprep.mubr.f32.mxu0 0.0
    %1390 = vmatmul.mubr.f32.gmra.mxu0 %v1204
    %v1391 = vpop.f32.mrf.mxu0
    %v1392 = vadd.f32 0.0, %v1391
    %v1393 = vpop.f32.mrf.mxu0
    %1394 = vmatprep.mubr.f32.mxu0 0.0
    %1395 = vmatmul.mubr.f32.gmra.mxu0 %v1207
    %v1396 = vpop.f32.mrf.mxu0
    %v1397 = vadd.f32 0.0, %v1396
    %v1398 = vpop.f32.mrf.mxu0
    %1399 = vmatprep.mubr.f32.mxu0 0.0
    %1400 = vmatmul.mubr.f32.gmra.mxu0 %v1210
    %v1401 = vpop.f32.mrf.mxu0
    %v1402 = vadd.f32 0.0, %v1401
    %v1403 = vpop.f32.mrf.mxu0
    %1404 = vmatprep.mubr.f32.mxu0 0.0
    %1405 = vmatmul.mubr.f32.gmra.mxu0 %v1213
    %v1406 = vpop.f32.mrf.mxu0
    %v1407 = vadd.f32 0.0, %v1406
    %v1408 = vpop.f32.mrf.mxu0
    %1409 = vmatprep.mubr.f32.mxu0 0.0
    %1410 = vmatmul.mubr.f32.gmra.mxu0 %v1216
    %v1411 = vpop.f32.mrf.mxu0
    %v1412 = vadd.f32 0.0, %v1411
    %v1413 = vpop.f32.mrf.mxu0
    %1414 = vmatprep.mubr.f32.mxu0 0.0
    %1415 = vmatmul.mubr.f32.gmra.mxu0 %v1219
    %v1416 = vpop.f32.mrf.mxu0
    %v1417 = vadd.f32 0.0, %v1416
    %v1418 = vpop.f32.mrf.mxu0
    %1419 = vmatprep.mubr.f32.mxu0 0.0
    %1420 = vmatmul.mubr.f32.gmra.mxu0 %v1222
    %v1421 = vpop.f32.mrf.mxu0
    %v1422 = vadd.f32 0.0, %v1421
    %v1423 = vpop.f32.mrf.mxu0
    %1424 = vmatprep.mubr.f32.mxu0 0.0
    %1425 = vmatmul.mubr.f32.gmra.mxu0 %v1225
    %v1426 = vpop.f32.mrf.mxu0
    %v1427 = vadd.f32 0.0, %v1426
    %v1428 = vpop.f32.mrf.mxu0
    %1429 = vmatprep.mubr.f32.mxu0 0.0
    %1430 = vmatmul.mubr.f32.gmra.mxu0 %v1228
    %v1431 = vpop.f32.mrf.mxu0
    %v1432 = vadd.f32 0.0, %v1431
    %v1433 = vpop.f32.mrf.mxu0
    %1434 = vmatprep.mubr.f32.mxu0 0.0
    %1435 = vmatmul.mubr.f32.gmra.mxu0 %v1231
    %v1436 = vpop.f32.mrf.mxu0
    %v1437 = vadd.f32 0.0, %v1436
    %v1438 = vpop.f32.mrf.mxu0
    %1439 = vmatprep.mubr.f32.mxu0 0.0
    %1440 = vmatmul.mubr.f32.gmra.mxu0 %v1234
    %v1441 = vpop.f32.mrf.mxu0
    %v1442 = vadd.f32 0.0, %v1441
    %v1443 = vpop.f32.mrf.mxu0
    %1444 = vmatprep.mubr.f32.mxu0 0.0
    %1445 = vmatmul.mubr.f32.gmra.mxu0 %v1237
    %v1446 = vpop.f32.mrf.mxu0
    %v1447 = vadd.f32 0.0, %v1446
    %v1448 = vpop.f32.mrf.mxu0
    %1449 = vmatprep.mubr.f32.mxu0 0.0
    %1450 = vmatmul.mubr.f32.gmra.mxu0 %v1240
    %v1451 = vpop.f32.mrf.mxu0
    %v1452 = vadd.f32 0.0, %v1451
    %v1453 = vpop.f32.mrf.mxu0
    %1454 = vmatprep.mubr.f32.mxu0 0.0
    %1455 = vmatmul.mubr.f32.gmra.mxu0 %v1243
    %v1456 = vpop.f32.mrf.mxu0
    %v1457 = vadd.f32 0.0, %v1456
    %v1458 = vpop.f32.mrf.mxu0
    %1459 = vmatprep.mubr.f32.mxu0 0.0
    %1460 = vmatmul.mubr.f32.gmra.mxu0 %v1246
    %v1461 = vpop.f32.mrf.mxu0
    %v1462 = vadd.f32 0.0, %v1461
    %v1463 = vpop.f32.mrf.mxu0
    %1464 = vmatprep.mubr.f32.mxu0 0.0
    %1465 = vmatmul.mubr.f32.gmra.mxu0 %v1249
    %v1466 = vpop.f32.mrf.mxu0
    %v1467 = vadd.f32 0.0, %v1466
    %v1468 = vpop.f32.mrf.mxu0
    %1469 = vmatprep.mubr.f32.mxu0 0.0
    %1470 = vmatmul.mubr.f32.gmra.mxu0 %v1252
    %v1471 = vpop.f32.mrf.mxu0
    %v1472 = vadd.f32 0.0, %v1471
    %v1473 = vpop.f32.mrf.mxu0
    %1474 = vmatprep.mubr.f32.mxu0 0.0
    %1475 = vmatmul.mubr.f32.gmra.mxu0 %v1255
    %v1476 = vpop.f32.mrf.mxu0
    %v1477 = vadd.f32 0.0, %v1476
    %v1478 = vpop.f32.mrf.mxu0
    %1479 = vmatprep.mubr.f32.mxu0 0.0
    %1480 = vmatmul.mubr.f32.gmra.mxu0 %v1258
    %v1481 = vpop.f32.mrf.mxu0
    %v1482 = vadd.f32 0.0, %v1481
    %v1483 = vpop.f32.mrf.mxu0
    %1484 = vmatprep.mubr.f32.mxu0 0.0
    %1485 = vmatmul.mubr.f32.gmra.mxu0 %v1261
    %v1486 = vpop.f32.mrf.mxu0
    %v1487 = vadd.f32 0.0, %v1486
    %v1488 = vpop.f32.mrf.mxu0
    %1489 = vmatprep.mubr.f32.mxu0 0.0
    %1490 = vmatmul.mubr.f32.gmra.mxu0 %v1264
    %v1491 = vpop.f32.mrf.mxu0
    %v1492 = vadd.f32 0.0, %v1491
    %v1493 = vpop.f32.mrf.mxu0
    %1494 = vmatprep.mubr.f32.mxu0 0.0
    %1495 = vmatmul.mubr.f32.gmra.mxu0 %v1267
    %v1496 = vpop.f32.mrf.mxu0
    %v1497 = vadd.f32 0.0, %v1496
    %v1498 = vpop.f32.mrf.mxu0
    %1499 = vmatprep.mubr.f32.mxu0 0.0
    %1500 = vmatmul.mubr.f32.gmra.mxu0 %v1270
    %v1501 = vpop.f32.mrf.mxu0
    %v1502 = vadd.f32 0.0, %v1501
    %v1503 = vpop.f32.mrf.mxu0
    %1504 = vmatprep.mubr.f32.mxu0 0.0
    %1505 = vmatmul.mubr.f32.gmra.mxu0 %v1273
    %v1506 = vpop.f32.mrf.mxu0
    %v1507 = vadd.f32 0.0, %v1506
    %v1508 = vpop.f32.mrf.mxu0
    %1509 = vmatprep.mubr.f32.mxu0 0.0
    %1510 = vmatmul.mubr.f32.gmra.mxu0 %v1276
    %v1511 = vpop.f32.mrf.mxu0
    %v1512 = vadd.f32 0.0, %v1511
    %v1513 = vpop.f32.mrf.mxu0
    %1514 = vmatprep.mubr.f32.mxu0 0.0
    %1515 = vmatmul.mubr.f32.gmra.mxu0 %v1279
    %v1516 = vpop.f32.mrf.mxu0
    %v1517 = vadd.f32 0.0, %v1516
    %v1518 = vpop.f32.mrf.mxu0
    %1519 = vmatprep.mubr.f32.mxu0 0.0
    %1520 = vmatmul.mubr.f32.gmra.mxu0 %v1282
    %v1521 = vpop.f32.mrf.mxu0
    %v1522 = vadd.f32 0.0, %v1521
    %v1523 = vpop.f32.mrf.mxu0
    %1524 = vmatprep.mubr.f32.mxu0 0.0
    %1525 = vmatmul.mubr.f32.gmra.mxu0 %v1285
    %v1526 = vpop.f32.mrf.mxu0
    %v1527 = vadd.f32 0.0, %v1526
    %v1528 = vpop.f32.mrf.mxu0
    %1529 = vmatprep.mubr.f32.mxu0 0.0
    %1530 = vmatmul.mubr.f32.gmra.mxu0 %v1288
    %v1531 = vpop.f32.mrf.mxu0
    %v1532 = vadd.f32 0.0, %v1531
    %v1533 = vpop.f32.mrf.mxu0
    %1534 = vdwg.mxu0
    %1535 = vst [vmem:[#allocation2] sm:$0xff] %v1357
    %1536 = vst [vmem:[#allocation2 + $0x48] sm:$0xff] %v1362
    %1537 = vst [vmem:[#allocation2 + $0x90] sm:$0xff] %v1367
    %1538 = vst [vmem:[#allocation2 + $0xd8] sm:$0xff] %v1372
    %1539 = vst [vmem:[#allocation2 + $0x8] sm:$0xff] %v1377
    %1540 = vst [vmem:[#allocation2 + $0x50] sm:$0xff] %v1382
    %1541 = vst [vmem:[#allocation2 + $0x98] sm:$0xff] %v1387
    %1542 = vst [vmem:[#allocation2 + $0xe0] sm:$0xff] %v1392
    %1543 = vst [vmem:[#allocation2 + $0x10] sm:$0xff] %v1397
    %1544 = vst [vmem:[#allocation2 + $0x58] sm:$0xff] %v1402
    %1545 = vst [vmem:[#allocation2 + $0xa0] sm:$0xff] %v1407
    %1546 = vst [vmem:[#allocation2 + $0xe8] sm:$0xff] %v1412
    %1547 = vst [vmem:[#allocation2 + $0x18] sm:$0xff] %v1417
    %1548 = vst [vmem:[#allocation2 + $0x60] sm:$0xff] %v1422
    %1549 = vst [vmem:[#allocation2 + $0xa8] sm:$0xff] %v1427
    %1550 = vst [vmem:[#allocation2 + $0xf0] sm:$0xff] %v1432
    %1551 = vst [vmem:[#allocation2 + $0x20] sm:$0xff] %v1437
    %1552 = vst [vmem:[#allocation2 + $0x68] sm:$0xff] %v1442
    %1553 = vst [vmem:[#allocation2 + $0xb0] sm:$0xff] %v1447
    %1554 = vst [vmem:[#allocation2 + $0xf8] sm:$0xff] %v1452
    %1555 = vst [vmem:[#allocation2 + $0x28] sm:$0xff] %v1457
    %1556 = vst [vmem:[#allocation2 + $0x70] sm:$0xff] %v1462
    %1557 = vst [vmem:[#allocation2 + $0xb8] sm:$0xff] %v1467
    %1558 = vst [vmem:[#allocation2 + $0x100] sm:$0xff] %v1472
    %1559 = vst [vmem:[#allocation2 + $0x30] sm:$0xff] %v1477
    %1560 = vst [vmem:[#allocation2 + $0x78] sm:$0xff] %v1482
    %1561 = vst [vmem:[#allocation2 + $0xc0] sm:$0xff] %v1487
    %1562 = vst [vmem:[#allocation2 + $0x108] sm:$0xff] %v1492
    %1563 = vst [vmem:[#allocation2 + $0x38] sm:$0xff] %v1497
    %1564 = vst [vmem:[#allocation2 + $0x80] sm:$0xff] %v1502
    %1565 = vst [vmem:[#allocation2 + $0xc8] sm:$0xff] %v1507
    %1566 = vst [vmem:[#allocation2 + $0x110] sm:$0xff] %v1512
    %1567 = vst [vmem:[#allocation2 + $0x40] sm:$0xff] %v1517
    %1568 = vst [vmem:[#allocation2 + $0x88] sm:$0xff] %v1522
    %1569 = vst [vmem:[#allocation2 + $0xd0] sm:$0xff] %v1527
    %1570 = vst [vmem:[#allocation2 + $0x118] sm:$0xff] %v1532
    %v1571 = vld [vmem:[#allocation2] sm:$0xff]
    %v1572 = vld [vmem:[#allocation2 + $0x8] sm:$0xff]
    %v1573 = vld [vmem:[#allocation2 + $0x10] sm:$0xff]
    %v1574 = vld [vmem:[#allocation2 + $0x18] sm:$0xff]
    %v1575 = vld [vmem:[#allocation2 + $0x20] sm:$0xff]
    %v1576 = vld [vmem:[#allocation2 + $0x28] sm:$0xff]
    %v1577 = vld [vmem:[#allocation2 + $0x30] sm:$0xff]
    %v1578 = vld [vmem:[#allocation2 + $0x38] sm:$0xff]
    %v1579 = vld [vmem:[#allocation2 + $0x40] sm:$0xff]
    %v1580 = vld [vmem:[#allocation2 + $0x48] sm:$0xff]
    %v1581 = vld [vmem:[#allocation2 + $0x50] sm:$0xff]
    %v1582 = vld [vmem:[#allocation2 + $0x58] sm:$0xff]
    %v1583 = vld [vmem:[#allocation2 + $0x60] sm:$0xff]
    %v1584 = vld [vmem:[#allocation2 + $0x68] sm:$0xff]
    %v1585 = vld [vmem:[#allocation2 + $0x70] sm:$0xff]
    %v1586 = vld [vmem:[#allocation2 + $0x78] sm:$0xff]
    %v1587 = vld [vmem:[#allocation2 + $0x80] sm:$0xff]
    %v1588 = vld [vmem:[#allocation2 + $0x88] sm:$0xff]
    %v1589 = vld [vmem:[#allocation2 + $0x90] sm:$0xff]
    %v1590 = vld [vmem:[#allocation2 + $0x98] sm:$0xff]
    %v1591 = vld [vmem:[#allocation2 + $0xa0] sm:$0xff]
    %v1592 = vld [vmem:[#allocation2 + $0xa8] sm:$0xff]
    %v1593 = vld [vmem:[#allocation2 + $0xb0] sm:$0xff]
    %v1594 = vld [vmem:[#allocation2 + $0xb8] sm:$0xff]
    %v1595 = vld [vmem:[#allocation2 + $0xc0] sm:$0xff]
    %v1596 = vld [vmem:[#allocation2 + $0xc8] sm:$0xff]
    %v1597 = vld [vmem:[#allocation2 + $0xd0] sm:$0xff]
    %v1598 = vld [vmem:[#allocation2 + $0xd8] sm:$0xff]
    %v1599 = vld [vmem:[#allocation2 + $0xe0] sm:$0xff]
    %v1600 = vld [vmem:[#allocation2 + $0xe8] sm:$0xff]
    %v1601 = vld [vmem:[#allocation2 + $0xf0] sm:$0xff]
    %v1602 = vld [vmem:[#allocation2 + $0xf8] sm:$0xff]
    %v1603 = vld [vmem:[#allocation2 + $0x100] sm:$0xff]
    %v1604 = vld [vmem:[#allocation2 + $0x108] sm:$0xff]
    %v1605 = vld [vmem:[#allocation2 + $0x110] sm:$0xff]
    %v1606 = vld [vmem:[#allocation2 + $0x118] sm:$0xff]
    %v1607 = vld [vmem:[#allocation7] sm:$0xff]
    %v1608 = vld [vmem:[#allocation7 + $0x8] sm:$0xff]
    %v1609 = vld [vmem:[#allocation7 + $0x10] sm:$0xff]
    %v1610 = vld [vmem:[#allocation7 + $0x18] sm:$0xff]
    %v1611 = vld [vmem:[#allocation7 + $0x20] sm:$0xff]
    %v1612 = vld [vmem:[#allocation7 + $0x28] sm:$0xff]
    %v1613 = vld [vmem:[#allocation7 + $0x30] sm:$0xff]
    %v1614 = vld [vmem:[#allocation7 + $0x38] sm:$0xff]
    %v1615 = vld [vmem:[#allocation7 + $0x40] sm:$0xff]
    %v1616 = vld [vmem:[#allocation7 + $0x48] sm:$0xff]
    %v1617 = vld [vmem:[#allocation7 + $0x50] sm:$0xff]
    %v1618 = vld [vmem:[#allocation7 + $0x58] sm:$0xff]
    %v1619 = vld [vmem:[#allocation7 + $0x60] sm:$0xff]
    %v1620 = vld [vmem:[#allocation7 + $0x68] sm:$0xff]
    %v1621 = vld [vmem:[#allocation7 + $0x70] sm:$0xff]
    %v1622 = vld [vmem:[#allocation7 + $0x78] sm:$0xff]
    %v1623 = vld [vmem:[#allocation7 + $0x80] sm:$0xff]
    %v1624 = vld [vmem:[#allocation7 + $0x88] sm:$0xff]
    %v1625 = vld [vmem:[#allocation7 + $0x90] sm:$0xff]
    %v1626 = vld [vmem:[#allocation7 + $0x98] sm:$0xff]
    %v1627 = vld [vmem:[#allocation7 + $0xa0] sm:$0xff]
    %v1628 = vld [vmem:[#allocation7 + $0xa8] sm:$0xff]
    %v1629 = vld [vmem:[#allocation7 + $0xb0] sm:$0xff]
    %v1630 = vld [vmem:[#allocation7 + $0xb8] sm:$0xff]
    %v1631 = vld [vmem:[#allocation7 + $0xc0] sm:$0xff]
    %v1632 = vld [vmem:[#allocation7 + $0xc8] sm:$0xff]
    %v1633 = vld [vmem:[#allocation7 + $0xd0] sm:$0xff]
    %v1634 = vld [vmem:[#allocation7 + $0xd8] sm:$0xff]
    %v1635 = vld [vmem:[#allocation7 + $0xe0] sm:$0xff]
    %v1636 = vld [vmem:[#allocation7 + $0xe8] sm:$0xff]
    %v1637 = vld [vmem:[#allocation7 + $0xf0] sm:$0xff]
    %v1638 = vld [vmem:[#allocation7 + $0xf8] sm:$0xff]
    %v1639 = vld [vmem:[#allocation7 + $0x100] sm:$0xff]
    %v1640 = vld [vmem:[#allocation7 + $0x108] sm:$0xff]
    %v1641 = vld [vmem:[#allocation7 + $0x110] sm:$0xff]
    %v1642 = vld [vmem:[#allocation7 + $0x118] sm:$0xff]
    %v1643 = vld [vmem:[#allocation7 + $0x120] sm:$0xff]
    %v1644 = vld [vmem:[#allocation7 + $0x128] sm:$0xff]
    %v1645 = vld [vmem:[#allocation7 + $0x130] sm:$0xff]
    %v1646 = vld [vmem:[#allocation7 + $0x138] sm:$0xff]
    %v1647 = vld [vmem:[#allocation7 + $0x140] sm:$0xff]
    %v1648 = vld [vmem:[#allocation7 + $0x148] sm:$0xff]
    %v1649 = vld [vmem:[#allocation7 + $0x150] sm:$0xff]
    %v1650 = vld [vmem:[#allocation7 + $0x158] sm:$0xff]
    %v1651 = vld [vmem:[#allocation7 + $0x160] sm:$0xff]
    %v1652 = vld [vmem:[#allocation7 + $0x168] sm:$0xff]
    %v1653 = vld [vmem:[#allocation7 + $0x170] sm:$0xff]
    %v1654 = vld [vmem:[#allocation7 + $0x178] sm:$0xff]
    %v1655 = vld [vmem:[#allocation7 + $0x180] sm:$0xff]
    %v1656 = vld [vmem:[#allocation7 + $0x188] sm:$0xff]
    %v1657 = vld [vmem:[#allocation7 + $0x190] sm:$0xff]
    %v1658 = vld [vmem:[#allocation7 + $0x198] sm:$0xff]
    %v1659 = vld [vmem:[#allocation7 + $0x1a0] sm:$0xff]
    %v1660 = vld [vmem:[#allocation7 + $0x1a8] sm:$0xff]
    %v1661 = vld [vmem:[#allocation7 + $0x1b0] sm:$0xff]
    %v1662 = vld [vmem:[#allocation7 + $0x1b8] sm:$0xff]
    %v1663 = vld [vmem:[#allocation7 + $0x1c0] sm:$0xff]
    %v1664 = vld [vmem:[#allocation7 + $0x1c8] sm:$0xff]
    %v1665 = vld [vmem:[#allocation7 + $0x1d0] sm:$0xff]
    %v1666 = vld [vmem:[#allocation7 + $0x1d8] sm:$0xff]
    %v1667 = vld [vmem:[#allocation7 + $0x1e0] sm:$0xff]
    %v1668 = vld [vmem:[#allocation7 + $0x1e8] sm:$0xff]
    %v1669 = vld [vmem:[#allocation7 + $0x1f0] sm:$0xff]
    %v1670 = vld [vmem:[#allocation7 + $0x1f8] sm:$0xff]
    %v1671 = vld [vmem:[#allocation7 + $0x200] sm:$0xff]
    %v1672 = vld [vmem:[#allocation7 + $0x208] sm:$0xff]
    %v1673 = vld [vmem:[#allocation7 + $0x210] sm:$0xff]
    %v1674 = vld [vmem:[#allocation7 + $0x218] sm:$0xff]
    %v1675 = vld [vmem:[#allocation7 + $0x220] sm:$0xff]
    %v1676 = vld [vmem:[#allocation7 + $0x228] sm:$0xff]
    %v1677 = vld [vmem:[#allocation7 + $0x230] sm:$0xff]
    %v1678 = vld [vmem:[#allocation7 + $0x238] sm:$0xff]
    %v1679 = vld [vmem:[#allocation7 + $0x240] sm:$0xff]
    %v1680 = vld [vmem:[#allocation7 + $0x248] sm:$0xff]
    %v1681 = vld [vmem:[#allocation7 + $0x250] sm:$0xff]
    %v1682 = vld [vmem:[#allocation7 + $0x258] sm:$0xff]
    %v1683 = vld [vmem:[#allocation7 + $0x260] sm:$0xff]
    %v1684 = vld [vmem:[#allocation7 + $0x268] sm:$0xff]
    %v1685 = vld [vmem:[#allocation7 + $0x270] sm:$0xff]
    %v1686 = vld [vmem:[#allocation7 + $0x278] sm:$0xff]
    %v1687 = vld [vmem:[#allocation7 + $0x280] sm:$0xff]
    %v1688 = vld [vmem:[#allocation7 + $0x288] sm:$0xff]
    %v1689 = vld [vmem:[#allocation7 + $0x290] sm:$0xff]
    %v1690 = vld [vmem:[#allocation7 + $0x298] sm:$0xff]
    %v1691 = vld [vmem:[#allocation7 + $0x2a0] sm:$0xff]
    %v1692 = vld [vmem:[#allocation7 + $0x2a8] sm:$0xff]
    %v1693 = vld [vmem:[#allocation7 + $0x2b0] sm:$0xff]
    %v1694 = vld [vmem:[#allocation7 + $0x2b8] sm:$0xff]
    %v1695 = vld [vmem:[#allocation7 + $0x2c0] sm:$0xff]
    %v1696 = vld [vmem:[#allocation7 + $0x2c8] sm:$0xff]
    %v1697 = vld [vmem:[#allocation7 + $0x2d0] sm:$0xff]
    %v1698 = vld [vmem:[#allocation7 + $0x2d8] sm:$0xff]
    %v1699 = vld [vmem:[#allocation7 + $0x2e0] sm:$0xff]
    %v1700 = vld [vmem:[#allocation7 + $0x2e8] sm:$0xff]
    %v1701 = vld [vmem:[#allocation7 + $0x2f0] sm:$0xff]
    %v1702 = vld [vmem:[#allocation7 + $0x2f8] sm:$0xff]
    %v1703 = vld [vmem:[#allocation7 + $0x300] sm:$0xff]
    %v1704 = vld [vmem:[#allocation7 + $0x308] sm:$0xff]
    %v1705 = vld [vmem:[#allocation7 + $0x310] sm:$0xff]
    %v1706 = vld [vmem:[#allocation7 + $0x318] sm:$0xff]
    %v1707 = vld [vmem:[#allocation7 + $0x320] sm:$0xff]
    %v1708 = vld [vmem:[#allocation7 + $0x328] sm:$0xff]
    %v1709 = vld [vmem:[#allocation7 + $0x330] sm:$0xff]
    %v1710 = vld [vmem:[#allocation7 + $0x338] sm:$0xff]
    %v1711 = vld [vmem:[#allocation7 + $0x340] sm:$0xff]
    %v1712 = vld [vmem:[#allocation7 + $0x348] sm:$0xff]
    %v1713 = vld [vmem:[#allocation7 + $0x350] sm:$0xff]
    %v1714 = vld [vmem:[#allocation7 + $0x358] sm:$0xff]
    %v1715 = vld [vmem:[#allocation7 + $0x360] sm:$0xff]
    %v1716 = vld [vmem:[#allocation7 + $0x368] sm:$0xff]
    %v1717 = vld [vmem:[#allocation7 + $0x370] sm:$0xff]
    %v1718 = vld [vmem:[#allocation7 + $0x378] sm:$0xff]
    %v1719 = vld [vmem:[#allocation7 + $0x380] sm:$0xff]
    %v1720 = vld [vmem:[#allocation7 + $0x388] sm:$0xff]
    %v1721 = vld [vmem:[#allocation7 + $0x390] sm:$0xff]
    %v1722 = vld [vmem:[#allocation7 + $0x398] sm:$0xff]
    %v1723 = vld [vmem:[#allocation7 + $0x3a0] sm:$0xff]
    %v1724 = vld [vmem:[#allocation7 + $0x3a8] sm:$0xff]
    %v1725 = vld [vmem:[#allocation7 + $0x3b0] sm:$0xff]
    %v1726 = vld [vmem:[#allocation7 + $0x3b8] sm:$0xff]
    %v1727 = vld [vmem:[#allocation7 + $0x3c0] sm:$0xff]
    %v1728 = vld [vmem:[#allocation7 + $0x3c8] sm:$0xff]
    %v1729 = vld [vmem:[#allocation7 + $0x3d0] sm:$0xff]
    %v1730 = vld [vmem:[#allocation7 + $0x3d8] sm:$0xff]
    %v1731 = vld [vmem:[#allocation7 + $0x3e0] sm:$0xff]
    %v1732 = vld [vmem:[#allocation7 + $0x3e8] sm:$0xff]
    %v1733 = vld [vmem:[#allocation7 + $0x3f0] sm:$0xff]
    %v1734 = vld [vmem:[#allocation7 + $0x3f8] sm:$0xff]
    %v1735 = vld [vmem:[#allocation7 + $0x400] sm:$0xff]
    %v1736 = vld [vmem:[#allocation7 + $0x408] sm:$0xff]
    %v1737 = vld [vmem:[#allocation7 + $0x410] sm:$0xff]
    %v1738 = vld [vmem:[#allocation7 + $0x418] sm:$0xff]
    %v1739 = vld [vmem:[#allocation7 + $0x420] sm:$0xff]
    %v1740 = vld [vmem:[#allocation7 + $0x428] sm:$0xff]
    %v1741 = vld [vmem:[#allocation7 + $0x430] sm:$0xff]
    %v1742 = vld [vmem:[#allocation7 + $0x438] sm:$0xff]
    %v1743 = vld [vmem:[#allocation7 + $0x440] sm:$0xff]
    %v1744 = vld [vmem:[#allocation7 + $0x448] sm:$0xff]
    %v1745 = vld [vmem:[#allocation7 + $0x450] sm:$0xff]
    %v1746 = vld [vmem:[#allocation7 + $0x458] sm:$0xff]
    %v1747 = vld [vmem:[#allocation7 + $0x460] sm:$0xff]
    %v1748 = vld [vmem:[#allocation7 + $0x468] sm:$0xff]
    %v1749 = vld [vmem:[#allocation7 + $0x470] sm:$0xff]
    %v1750 = vld [vmem:[#allocation7 + $0x478] sm:$0xff]
    %v1751 = vld [vmem:[%s5] sm:$0x1]
    %v1753 = vlaneseq
    %v1754 = vshrl.u32 %v1753, 7
    %v1755 = vsub.s32 0, %v1754
    %v1756 = vrot.slane %v1751, %v1755
    %1758 = vmatprep.subr.mxu0 0.0
    %1759 = vmatpush1.msra.mxu0 %v1622
    %1760 = vmatprep.subr.mxu0 0.0
    %1761 = vmatpush1.msra.mxu0 %v1621
    %1762 = vmatprep.subr.mxu0 0.0
    %1763 = vmatpush1.msra.mxu0 %v1620
    %1764 = vmatprep.subr.mxu0 0.0
    %1765 = vmatpush1.msra.mxu0 %v1619
    %1766 = vmatprep.subr.mxu0 0.0
    %1767 = vmatpush1.msra.mxu0 %v1618
    %1768 = vmatprep.subr.mxu0 0.0
    %1769 = vmatpush1.msra.mxu0 %v1617
    %1770 = vmatprep.subr.mxu0 0.0
    %1771 = vmatpush1.msra.mxu0 %v1616
    %1772 = vmatprep.subr.mxu0 0.0
    %1773 = vmatpush1.msra.mxu0 %v1615
    %1774 = vmatprep.subr.mxu0 0.0
    %1775 = vmatpush1.msra.mxu0 %v1614
    %1776 = vmatprep.subr.mxu0 0.0
    %1777 = vmatpush1.msra.mxu0 %v1613
    %1778 = vmatprep.subr.mxu0 0.0
    %1779 = vmatpush1.msra.mxu0 %v1612
    %1780 = vmatprep.subr.mxu0 0.0
    %1781 = vmatpush1.msra.mxu0 %v1611
    %1782 = vmatprep.subr.mxu0 0.0
    %1783 = vmatpush1.msra.mxu0 %v1610
    %1784 = vmatprep.subr.mxu0 0.0
    %1785 = vmatpush1.msra.mxu0 %v1609
    %1786 = vmatprep.subr.mxu0 0.0
    %1787 = vmatpush1.msra.mxu0 %v1608
    %1788 = vmatprep.subr.mxu0 0.0
    %1789 = vmatpush1.msra.mxu0 %v1607
    %1790 = vmatprep.subr.mxu0 0.0
    %1791 = vmatpush2.msra.mxu0 %v1638
    %1792 = vmatprep.subr.mxu0 0.0
    %1793 = vmatpush2.msra.mxu0 %v1637
    %1794 = vmatprep.subr.mxu0 0.0
    %1795 = vmatpush2.msra.mxu0 %v1636
    %1796 = vmatprep.subr.mxu0 0.0
    %1797 = vmatpush2.msra.mxu0 %v1635
    %1798 = vmatprep.subr.mxu0 0.0
    %1799 = vmatpush2.msra.mxu0 %v1634
    %1800 = vmatprep.subr.mxu0 0.0
    %1801 = vmatpush2.msra.mxu0 %v1633
    %1802 = vmatprep.subr.mxu0 0.0
    %1803 = vmatpush2.msra.mxu0 %v1632
    %1804 = vmatprep.subr.mxu0 0.0
    %1805 = vmatpush2.msra.mxu0 %v1631
    %1806 = vmatprep.subr.mxu0 0.0
    %1807 = vmatpush2.msra.mxu0 %v1630
    %1808 = vmatprep.subr.mxu0 0.0
    %1809 = vmatpush2.msra.mxu0 %v1629
    %1810 = vmatprep.subr.mxu0 0.0
    %1811 = vmatpush2.msra.mxu0 %v1628
    %1812 = vmatprep.subr.mxu0 0.0
    %1813 = vmatpush2.msra.mxu0 %v1627
    %1814 = vmatprep.subr.mxu0 0.0
    %1815 = vmatpush2.msra.mxu0 %v1626
    %1816 = vmatprep.subr.mxu0 0.0
    %1817 = vmatpush2.msra.mxu0 %v1625
    %1818 = vmatprep.subr.mxu0 0.0
    %1819 = vmatpush2.msra.mxu0 %v1624
    %1820 = vmatprep.subr.mxu0 0.0
    %1821 = vmatpush2.msra.mxu0 %v1623
    %1822 = vmatprep.mubr.f32.mxu0 %v1572
    %1823 = vmatmul.mubr.f32.gmra.mxu0 %v1571
    %v1824 = vpop.f32.mrf.mxu0
    %v1825 = vadd.f32 %v1756, %v1824
    %v1826 = vpop.f32.mrf.mxu0
    %1827 = vmatprep.mubr.f32.mxu0 %v1581
    %1828 = vmatmul.mubr.f32.gmra.mxu0 %v1580
    %v1829 = vpop.f32.mrf.mxu0
    %v1830 = vadd.f32 %v1756, %v1829
    %v1831 = vpop.f32.mrf.mxu0
    %1832 = vmatprep.mubr.f32.mxu0 %v1590
    %1833 = vmatmul.mubr.f32.gmra.mxu0 %v1589
    %v1834 = vpop.f32.mrf.mxu0
    %v1835 = vadd.f32 %v1756, %v1834
    %v1836 = vpop.f32.mrf.mxu0
    %1837 = vmatprep.mubr.f32.mxu0 %v1599
    %1838 = vmatmul.mubr.f32.gmra.mxu0 %v1598
    %v1839 = vpop.f32.mrf.mxu0
    %v1840 = vadd.f32 %v1756, %v1839
    %v1841 = vpop.f32.mrf.mxu0
    %1842 = vdwg.mxu0
    %1843 = vmatprep.subr.mxu0 0.0
    %1844 = vmatpush1.msra.mxu0 %v1654
    %1845 = vmatprep.subr.mxu0 0.0
    %1846 = vmatpush1.msra.mxu0 %v1653
    %1847 = vmatprep.subr.mxu0 0.0
    %1848 = vmatpush1.msra.mxu0 %v1652
    %1849 = vmatprep.subr.mxu0 0.0
    %1850 = vmatpush1.msra.mxu0 %v1651
    %1851 = vmatprep.subr.mxu0 0.0
    %1852 = vmatpush1.msra.mxu0 %v1650
    %1853 = vmatprep.subr.mxu0 0.0
    %1854 = vmatpush1.msra.mxu0 %v1649
    %1855 = vmatprep.subr.mxu0 0.0
    %1856 = vmatpush1.msra.mxu0 %v1648
    %1857 = vmatprep.subr.mxu0 0.0
    %1858 = vmatpush1.msra.mxu0 %v1647
    %1859 = vmatprep.subr.mxu0 0.0
    %1860 = vmatpush1.msra.mxu0 %v1646
    %1861 = vmatprep.subr.mxu0 0.0
    %1862 = vmatpush1.msra.mxu0 %v1645
    %1863 = vmatprep.subr.mxu0 0.0
    %1864 = vmatpush1.msra.mxu0 %v1644
    %1865 = vmatprep.subr.mxu0 0.0
    %1866 = vmatpush1.msra.mxu0 %v1643
    %1867 = vmatprep.subr.mxu0 0.0
    %1868 = vmatpush1.msra.mxu0 %v1642
    %1869 = vmatprep.subr.mxu0 0.0
    %1870 = vmatpush1.msra.mxu0 %v1641
    %1871 = vmatprep.subr.mxu0 0.0
    %1872 = vmatpush1.msra.mxu0 %v1640
    %1873 = vmatprep.subr.mxu0 0.0
    %1874 = vmatpush1.msra.mxu0 %v1639
    %1875 = vmatprep.subr.mxu0 0.0
    %1876 = vmatpush2.msra.mxu0 %v1670
    %1877 = vmatprep.subr.mxu0 0.0
    %1878 = vmatpush2.msra.mxu0 %v1669
    %1879 = vmatprep.subr.mxu0 0.0
    %1880 = vmatpush2.msra.mxu0 %v1668
    %1881 = vmatprep.subr.mxu0 0.0
    %1882 = vmatpush2.msra.mxu0 %v1667
    %1883 = vmatprep.subr.mxu0 0.0
    %1884 = vmatpush2.msra.mxu0 %v1666
    %1885 = vmatprep.subr.mxu0 0.0
    %1886 = vmatpush2.msra.mxu0 %v1665
    %1887 = vmatprep.subr.mxu0 0.0
    %1888 = vmatpush2.msra.mxu0 %v1664
    %1889 = vmatprep.subr.mxu0 0.0
    %1890 = vmatpush2.msra.mxu0 %v1663
    %1891 = vmatprep.subr.mxu0 0.0
    %1892 = vmatpush2.msra.mxu0 %v1662
    %1893 = vmatprep.subr.mxu0 0.0
    %1894 = vmatpush2.msra.mxu0 %v1661
    %1895 = vmatprep.subr.mxu0 0.0
    %1896 = vmatpush2.msra.mxu0 %v1660
    %1897 = vmatprep.subr.mxu0 0.0
    %1898 = vmatpush2.msra.mxu0 %v1659
    %1899 = vmatprep.subr.mxu0 0.0
    %1900 = vmatpush2.msra.mxu0 %v1658
    %1901 = vmatprep.subr.mxu0 0.0
    %1902 = vmatpush2.msra.mxu0 %v1657
    %1903 = vmatprep.subr.mxu0 0.0
    %1904 = vmatpush2.msra.mxu0 %v1656
    %1905 = vmatprep.subr.mxu0 0.0
    %1906 = vmatpush2.msra.mxu0 %v1655
    %1907 = vmatprep.mubr.f32.mxu0 %v1574
    %1908 = vmatmul.mubr.f32.gmra.mxu0 %v1573
    %v1909 = vpop.f32.mrf.mxu0
    %v1910 = vadd.f32 %v1825, %v1909
    %v1911 = vpop.f32.mrf.mxu0
    %1912 = vmatprep.mubr.f32.mxu0 %v1583
    %1913 = vmatmul.mubr.f32.gmra.mxu0 %v1582
    %v1914 = vpop.f32.mrf.mxu0
    %v1915 = vadd.f32 %v1830, %v1914
    %v1916 = vpop.f32.mrf.mxu0
    %1917 = vmatprep.mubr.f32.mxu0 %v1592
    %1918 = vmatmul.mubr.f32.gmra.mxu0 %v1591
    %v1919 = vpop.f32.mrf.mxu0
    %v1920 = vadd.f32 %v1835, %v1919
    %v1921 = vpop.f32.mrf.mxu0
    %1922 = vmatprep.mubr.f32.mxu0 %v1601
    %1923 = vmatmul.mubr.f32.gmra.mxu0 %v1600
    %v1924 = vpop.f32.mrf.mxu0
    %v1925 = vadd.f32 %v1840, %v1924
    %v1926 = vpop.f32.mrf.mxu0
    %1927 = vdwg.mxu0
    %1928 = vmatprep.subr.mxu0 0.0
    %1929 = vmatpush1.msra.mxu0 %v1686
    %1930 = vmatprep.subr.mxu0 0.0
    %1931 = vmatpush1.msra.mxu0 %v1685
    %1932 = vmatprep.subr.mxu0 0.0
    %1933 = vmatpush1.msra.mxu0 %v1684
    %1934 = vmatprep.subr.mxu0 0.0
    %1935 = vmatpush1.msra.mxu0 %v1683
    %1936 = vmatprep.subr.mxu0 0.0
    %1937 = vmatpush1.msra.mxu0 %v1682
    %1938 = vmatprep.subr.mxu0 0.0
    %1939 = vmatpush1.msra.mxu0 %v1681
    %1940 = vmatprep.subr.mxu0 0.0
    %1941 = vmatpush1.msra.mxu0 %v1680
    %1942 = vmatprep.subr.mxu0 0.0
    %1943 = vmatpush1.msra.mxu0 %v1679
    %1944 = vmatprep.subr.mxu0 0.0
    %1945 = vmatpush1.msra.mxu0 %v1678
    %1946 = vmatprep.subr.mxu0 0.0
    %1947 = vmatpush1.msra.mxu0 %v1677
    %1948 = vmatprep.subr.mxu0 0.0
    %1949 = vmatpush1.msra.mxu0 %v1676
    %1950 = vmatprep.subr.mxu0 0.0
    %1951 = vmatpush1.msra.mxu0 %v1675
    %1952 = vmatprep.subr.mxu0 0.0
    %1953 = vmatpush1.msra.mxu0 %v1674
    %1954 = vmatprep.subr.mxu0 0.0
    %1955 = vmatpush1.msra.mxu0 %v1673
    %1956 = vmatprep.subr.mxu0 0.0
    %1957 = vmatpush1.msra.mxu0 %v1672
    %1958 = vmatprep.subr.mxu0 0.0
    %1959 = vmatpush1.msra.mxu0 %v1671
    %1960 = vmatprep.subr.mxu0 0.0
    %1961 = vmatpush2.msra.mxu0 %v1702
    %1962 = vmatprep.subr.mxu0 0.0
    %1963 = vmatpush2.msra.mxu0 %v1701
    %1964 = vmatprep.subr.mxu0 0.0
    %1965 = vmatpush2.msra.mxu0 %v1700
    %1966 = vmatprep.subr.mxu0 0.0
    %1967 = vmatpush2.msra.mxu0 %v1699
    %1968 = vmatprep.subr.mxu0 0.0
    %1969 = vmatpush2.msra.mxu0 %v1698
    %1970 = vmatprep.subr.mxu0 0.0
    %1971 = vmatpush2.msra.mxu0 %v1697
    %1972 = vmatprep.subr.mxu0 0.0
    %1973 = vmatpush2.msra.mxu0 %v1696
    %1974 = vmatprep.subr.mxu0 0.0
    %1975 = vmatpush2.msra.mxu0 %v1695
    %1976 = vmatprep.subr.mxu0 0.0
    %1977 = vmatpush2.msra.mxu0 %v1694
    %1978 = vmatprep.subr.mxu0 0.0
    %1979 = vmatpush2.msra.mxu0 %v1693
    %1980 = vmatprep.subr.mxu0 0.0
    %1981 = vmatpush2.msra.mxu0 %v1692
    %1982 = vmatprep.subr.mxu0 0.0
    %1983 = vmatpush2.msra.mxu0 %v1691
    %1984 = vmatprep.subr.mxu0 0.0
    %1985 = vmatpush2.msra.mxu0 %v1690
    %1986 = vmatprep.subr.mxu0 0.0
    %1987 = vmatpush2.msra.mxu0 %v1689
    %1988 = vmatprep.subr.mxu0 0.0
    %1989 = vmatpush2.msra.mxu0 %v1688
    %1990 = vmatprep.subr.mxu0 0.0
    %1991 = vmatpush2.msra.mxu0 %v1687
    %1992 = vmatprep.mubr.f32.mxu0 %v1576
    %1993 = vmatmul.mubr.f32.gmra.mxu0 %v1575
    %v1994 = vpop.f32.mrf.mxu0
    %v1995 = vadd.f32 %v1910, %v1994
    %v1996 = vpop.f32.mrf.mxu0
    %1997 = vmatprep.mubr.f32.mxu0 %v1585
    %1998 = vmatmul.mubr.f32.gmra.mxu0 %v1584
    %v1999 = vpop.f32.mrf.mxu0
    %v2000 = vadd.f32 %v1915, %v1999
    %v2001 = vpop.f32.mrf.mxu0
    %2002 = vmatprep.mubr.f32.mxu0 %v1594
    %2003 = vmatmul.mubr.f32.gmra.mxu0 %v1593
    %v2004 = vpop.f32.mrf.mxu0
    %v2005 = vadd.f32 %v1920, %v2004
    %v2006 = vpop.f32.mrf.mxu0
    %2007 = vmatprep.mubr.f32.mxu0 %v1603
    %2008 = vmatmul.mubr.f32.gmra.mxu0 %v1602
    %v2009 = vpop.f32.mrf.mxu0
    %v2010 = vadd.f32 %v1925, %v2009
    %v2011 = vpop.f32.mrf.mxu0
    %2012 = vdwg.mxu0
    %2013 = vmatprep.subr.mxu0 0.0
    %2014 = vmatpush1.msra.mxu0 %v1718
    %2015 = vmatprep.subr.mxu0 0.0
    %2016 = vmatpush1.msra.mxu0 %v1717
    %2017 = vmatprep.subr.mxu0 0.0
    %2018 = vmatpush1.msra.mxu0 %v1716
    %2019 = vmatprep.subr.mxu0 0.0
    %2020 = vmatpush1.msra.mxu0 %v1715
    %2021 = vmatprep.subr.mxu0 0.0
    %2022 = vmatpush1.msra.mxu0 %v1714
    %2023 = vmatprep.subr.mxu0 0.0
    %2024 = vmatpush1.msra.mxu0 %v1713
    %2025 = vmatprep.subr.mxu0 0.0
    %2026 = vmatpush1.msra.mxu0 %v1712
    %2027 = vmatprep.subr.mxu0 0.0
    %2028 = vmatpush1.msra.mxu0 %v1711
    %2029 = vmatprep.subr.mxu0 0.0
    %2030 = vmatpush1.msra.mxu0 %v1710
    %2031 = vmatprep.subr.mxu0 0.0
    %2032 = vmatpush1.msra.mxu0 %v1709
    %2033 = vmatprep.subr.mxu0 0.0
    %2034 = vmatpush1.msra.mxu0 %v1708
    %2035 = vmatprep.subr.mxu0 0.0
    %2036 = vmatpush1.msra.mxu0 %v1707
    %2037 = vmatprep.subr.mxu0 0.0
    %2038 = vmatpush1.msra.mxu0 %v1706
    %2039 = vmatprep.subr.mxu0 0.0
    %2040 = vmatpush1.msra.mxu0 %v1705
    %2041 = vmatprep.subr.mxu0 0.0
    %2042 = vmatpush1.msra.mxu0 %v1704
    %2043 = vmatprep.subr.mxu0 0.0
    %2044 = vmatpush1.msra.mxu0 %v1703
    %2045 = vmatprep.subr.mxu0 0.0
    %2046 = vmatpush2.msra.mxu0 %v1734
    %2047 = vmatprep.subr.mxu0 0.0
    %2048 = vmatpush2.msra.mxu0 %v1733
    %2049 = vmatprep.subr.mxu0 0.0
    %2050 = vmatpush2.msra.mxu0 %v1732
    %2051 = vmatprep.subr.mxu0 0.0
    %2052 = vmatpush2.msra.mxu0 %v1731
    %2053 = vmatprep.subr.mxu0 0.0
    %2054 = vmatpush2.msra.mxu0 %v1730
    %2055 = vmatprep.subr.mxu0 0.0
    %2056 = vmatpush2.msra.mxu0 %v1729
    %2057 = vmatprep.subr.mxu0 0.0
    %2058 = vmatpush2.msra.mxu0 %v1728
    %2059 = vmatprep.subr.mxu0 0.0
    %2060 = vmatpush2.msra.mxu0 %v1727
    %2061 = vmatprep.subr.mxu0 0.0
    %2062 = vmatpush2.msra.mxu0 %v1726
    %2063 = vmatprep.subr.mxu0 0.0
    %2064 = vmatpush2.msra.mxu0 %v1725
    %2065 = vmatprep.subr.mxu0 0.0
    %2066 = vmatpush2.msra.mxu0 %v1724
    %2067 = vmatprep.subr.mxu0 0.0
    %2068 = vmatpush2.msra.mxu0 %v1723
    %2069 = vmatprep.subr.mxu0 0.0
    %2070 = vmatpush2.msra.mxu0 %v1722
    %2071 = vmatprep.subr.mxu0 0.0
    %2072 = vmatpush2.msra.mxu0 %v1721
    %2073 = vmatprep.subr.mxu0 0.0
    %2074 = vmatpush2.msra.mxu0 %v1720
    %2075 = vmatprep.subr.mxu0 0.0
    %2076 = vmatpush2.msra.mxu0 %v1719
    %2077 = vmatprep.mubr.f32.mxu0 %v1578
    %2078 = vmatmul.mubr.f32.gmra.mxu0 %v1577
    %v2079 = vpop.f32.mrf.mxu0
    %v2080 = vadd.f32 %v1995, %v2079
    %v2081 = vpop.f32.mrf.mxu0
    %2082 = vmatprep.mubr.f32.mxu0 %v1587
    %2083 = vmatmul.mubr.f32.gmra.mxu0 %v1586
    %v2084 = vpop.f32.mrf.mxu0
    %v2085 = vadd.f32 %v2000, %v2084
    %v2086 = vpop.f32.mrf.mxu0
    %2087 = vmatprep.mubr.f32.mxu0 %v1596
    %2088 = vmatmul.mubr.f32.gmra.mxu0 %v1595
    %v2089 = vpop.f32.mrf.mxu0
    %v2090 = vadd.f32 %v2005, %v2089
    %v2091 = vpop.f32.mrf.mxu0
    %2092 = vmatprep.mubr.f32.mxu0 %v1605
    %2093 = vmatmul.mubr.f32.gmra.mxu0 %v1604
    %v2094 = vpop.f32.mrf.mxu0
    %v2095 = vadd.f32 %v2010, %v2094
    %v2096 = vpop.f32.mrf.mxu0
    %2097 = vdwg.mxu0
    %2098 = vmatprep.subr.mxu0 0.0
    %2099 = vmatpush1.msra.mxu0 %v1750
    %2100 = vmatprep.subr.mxu0 0.0
    %2101 = vmatpush1.msra.mxu0 %v1749
    %2102 = vmatprep.subr.mxu0 0.0
    %2103 = vmatpush1.msra.mxu0 %v1748
    %2104 = vmatprep.subr.mxu0 0.0
    %2105 = vmatpush1.msra.mxu0 %v1747
    %2106 = vmatprep.subr.mxu0 0.0
    %2107 = vmatpush1.msra.mxu0 %v1746
    %2108 = vmatprep.subr.mxu0 0.0
    %2109 = vmatpush1.msra.mxu0 %v1745
    %2110 = vmatprep.subr.mxu0 0.0
    %2111 = vmatpush1.msra.mxu0 %v1744
    %2112 = vmatprep.subr.mxu0 0.0
    %2113 = vmatpush1.msra.mxu0 %v1743
    %2114 = vmatprep.subr.mxu0 0.0
    %2115 = vmatpush1.msra.mxu0 %v1742
    %2116 = vmatprep.subr.mxu0 0.0
    %2117 = vmatpush1.msra.mxu0 %v1741
    %2118 = vmatprep.subr.mxu0 0.0
    %2119 = vmatpush1.msra.mxu0 %v1740
    %2120 = vmatprep.subr.mxu0 0.0
    %2121 = vmatpush1.msra.mxu0 %v1739
    %2122 = vmatprep.subr.mxu0 0.0
    %2123 = vmatpush1.msra.mxu0 %v1738
    %2124 = vmatprep.subr.mxu0 0.0
    %2125 = vmatpush1.msra.mxu0 %v1737
    %2126 = vmatprep.subr.mxu0 0.0
    %2127 = vmatpush1.msra.mxu0 %v1736
    %2128 = vmatprep.subr.mxu0 0.0
    %2129 = vmatpush1.msra.mxu0 %v1735
    %2130 = vmatprep.subr.mxu0 0.0
    %2131 = vmatpush2.msra.mxu0 0.0
    %2132 = vmatprep.subr.mxu0 0.0
    %2133 = vmatpush2.msra.mxu0 0.0
    %2134 = vmatprep.subr.mxu0 0.0
    %2135 = vmatpush2.msra.mxu0 0.0
    %2136 = vmatprep.subr.mxu0 0.0
    %2137 = vmatpush2.msra.mxu0 0.0
    %2138 = vmatprep.subr.mxu0 0.0
    %2139 = vmatpush2.msra.mxu0 0.0
    %2140 = vmatprep.subr.mxu0 0.0
    %2141 = vmatpush2.msra.mxu0 0.0
    %2142 = vmatprep.subr.mxu0 0.0
    %2143 = vmatpush2.msra.mxu0 0.0
    %2144 = vmatprep.subr.mxu0 0.0
    %2145 = vmatpush2.msra.mxu0 0.0
    %2146 = vmatprep.subr.mxu0 0.0
    %2147 = vmatpush2.msra.mxu0 0.0
    %2148 = vmatprep.subr.mxu0 0.0
    %2149 = vmatpush2.msra.mxu0 0.0
    %2150 = vmatprep.subr.mxu0 0.0
    %2151 = vmatpush2.msra.mxu0 0.0
    %2152 = vmatprep.subr.mxu0 0.0
    %2153 = vmatpush2.msra.mxu0 0.0
    %2154 = vmatprep.subr.mxu0 0.0
    %2155 = vmatpush2.msra.mxu0 0.0
    %2156 = vmatprep.subr.mxu0 0.0
    %2157 = vmatpush2.msra.mxu0 0.0
    %2158 = vmatprep.subr.mxu0 0.0
    %2159 = vmatpush2.msra.mxu0 0.0
    %2160 = vmatprep.subr.mxu0 0.0
    %2161 = vmatpush2.msra.mxu0 0.0
    %2162 = vmatprep.mubr.f32.mxu0 0.0
    %2163 = vmatmul.mubr.f32.gmra.mxu0 %v1579
    %v2164 = vpop.f32.mrf.mxu0
    %v2165 = vadd.f32 %v2080, %v2164
    %v2166 = vpop.f32.mrf.mxu0
    %2167 = vmatprep.mubr.f32.mxu0 0.0
    %2168 = vmatmul.mubr.f32.gmra.mxu0 %v1588
    %v2169 = vpop.f32.mrf.mxu0
    %v2170 = vadd.f32 %v2085, %v2169
    %v2171 = vpop.f32.mrf.mxu0
    %2172 = vmatprep.mubr.f32.mxu0 0.0
    %2173 = vmatmul.mubr.f32.gmra.mxu0 %v1597
    %v2174 = vpop.f32.mrf.mxu0
    %v2175 = vadd.f32 %v2090, %v2174
    %v2176 = vpop.f32.mrf.mxu0
    %2177 = vmatprep.mubr.f32.mxu0 0.0
    %2178 = vmatmul.mubr.f32.gmra.mxu0 %v1606
    %v2179 = vpop.f32.mrf.mxu0
    %v2180 = vadd.f32 %v2095, %v2179
    %v2181 = vpop.f32.mrf.mxu0
    %2182 = vdwg.mxu0
    %v2183 = vmax.f32 %v2165, 0.0
    %v2184 = vmax.f32 %v2170, 0.0
    %v2185 = vmax.f32 %v2175, 0.0
    %v2186 = vmax.f32 %v2180, 0.0
    %v2187 = vld [vmem:[%s1] sm:$0xff]
    %v2188 = vld [vmem:[%s1 + $0x8] sm:$0xff]
    %v2189 = vld [vmem:[%s1 + $0x10] sm:$0xff]
    %v2190 = vld [vmem:[%s1 + $0x18] sm:$0xff]
    %v2191 = vld [vmem:[%s1 + $0x20] sm:$0xff]
    %v2192 = vld [vmem:[%s1 + $0x28] sm:$0xff]
    %v2193 = vld [vmem:[%s1 + $0x30] sm:$0xff]
    %v2194 = vld [vmem:[%s1 + $0x38] sm:$0xff]
    %v2195 = vld [vmem:[%s1 + $0x40] sm:$0xff]
    %v2196 = vld [vmem:[%s1 + $0x48] sm:$0xff]
    %v2197 = vld [vmem:[%s1 + $0x50] sm:$0xff]
    %v2198 = vld [vmem:[%s1 + $0x58] sm:$0xff]
    %v2199 = vld [vmem:[%s1 + $0x60] sm:$0xff]
    %v2200 = vld [vmem:[%s1 + $0x68] sm:$0xff]
    %v2201 = vld [vmem:[%s1 + $0x70] sm:$0xff]
    %v2202 = vld [vmem:[%s1 + $0x78] sm:$0xff]
    %v2203 = vld [vmem:[%s1 + $0x80] sm:$0xff]
    %v2204 = vld [vmem:[%s1 + $0x88] sm:$0xff]
    %v2205 = vld [vmem:[%s1 + $0x90] sm:$0xff]
    %v2206 = vld [vmem:[%s1 + $0x98] sm:$0xff]
    %v2207 = vld [vmem:[%s1 + $0xa0] sm:$0xff]
    %v2208 = vld [vmem:[%s1 + $0xa8] sm:$0xff]
    %v2209 = vld [vmem:[%s1 + $0xb0] sm:$0xff]
    %v2210 = vld [vmem:[%s1 + $0xb8] sm:$0xff]
    %v2211 = vld [vmem:[%s1 + $0xc0] sm:$0xff]
    %v2212 = vld [vmem:[%s1 + $0xc8] sm:$0xff]
    %v2213 = vld [vmem:[%s1 + $0xd0] sm:$0xff]
    %v2214 = vld [vmem:[%s1 + $0xd8] sm:$0xff]
    %v2215 = vld [vmem:[%s1 + $0xe0] sm:$0xff]
    %v2216 = vld [vmem:[%s1 + $0xe8] sm:$0xff]
    %v2217 = vld [vmem:[%s1 + $0xf0] sm:$0xff]
    %v2218 = vld [vmem:[%s1 + $0xf8] sm:$0xff]
    %v2219 = vld [vmem:[%s1 + $0x100] sm:$0xff]
    %v2220 = vld [vmem:[%s1 + $0x108] sm:$0xff]
    %v2221 = vld [vmem:[%s1 + $0x110] sm:$0xff]
    %v2222 = vld [vmem:[%s1 + $0x118] sm:$0xff]
    %v2224 = vsel %vm140, %v2187, 0
    %v2227 = vsel %vm140, %v2188, 0
    %v2230 = vsel %vm140, %v2189, 0
    %v2233 = vsel %vm140, %v2190, 0
    %v2236 = vsel %vm140, %v2191, 0
    %v2239 = vsel %vm140, %v2192, 0
    %v2242 = vsel %vm140, %v2193, 0
    %v2245 = vsel %vm140, %v2194, 0
    %v2248 = vsel %vm140, %v2195, 0
    %v2251 = vsel %vm140, %v2196, 0
    %v2254 = vsel %vm140, %v2197, 0
    %v2257 = vsel %vm140, %v2198, 0
    %v2260 = vsel %vm140, %v2199, 0
    %v2263 = vsel %vm140, %v2200, 0
    %v2266 = vsel %vm140, %v2201, 0
    %v2269 = vsel %vm140, %v2202, 0
    %v2272 = vsel %vm140, %v2203, 0
    %v2275 = vsel %vm140, %v2204, 0
    %v2278 = vsel %vm140, %v2205, 0
    %v2281 = vsel %vm140, %v2206, 0
    %v2284 = vsel %vm140, %v2207, 0
    %v2287 = vsel %vm140, %v2208, 0
    %v2290 = vsel %vm140, %v2209, 0
    %v2293 = vsel %vm140, %v2210, 0
    %v2296 = vsel %vm140, %v2211, 0
    %v2299 = vsel %vm140, %v2212, 0
    %v2302 = vsel %vm140, %v2213, 0
    %v2305 = vsel %vm140, %v2214, 0
    %v2308 = vsel %vm140, %v2215, 0
    %v2311 = vsel %vm140, %v2216, 0
    %v2314 = vsel %vm140, %v2217, 0
    %v2317 = vsel %vm140, %v2218, 0
    %v2320 = vsel %vm140, %v2219, 0
    %v2323 = vsel %vm140, %v2220, 0
    %v2326 = vsel %vm140, %v2221, 0
    %v2329 = vsel %vm140, %v2222, 0
    %2331 = vmatprep.subr.mxu0 0.0
    %2332 = vmatpush1.msra.mxu0 0.0
    %2333 = vmatprep.subr.mxu0 0.0
    %2334 = vmatpush1.msra.mxu0 0.0
    %2335 = vmatprep.subr.mxu0 0.0
    %2336 = vmatpush1.msra.mxu0 0.0
    %2337 = vmatprep.subr.mxu0 0.0
    %2338 = vmatpush1.msra.mxu0 0.0
    %2339 = vmatprep.subr.mxu0 0.0
    %2340 = vmatpush1.msra.mxu0 0.0
    %2341 = vmatprep.subr.mxu0 0.0
    %2342 = vmatpush1.msra.mxu0 0.0
    %2343 = vmatprep.subr.mxu0 0.0
    %2344 = vmatpush1.msra.mxu0 0.0
    %2345 = vmatprep.subr.mxu0 0.0
    %2346 = vmatpush1.msra.mxu0 0.0
    %2347 = vmatprep.subr.mxu0 0.0
    %2348 = vmatpush1.msra.mxu0 0.0
    %2349 = vmatprep.subr.mxu0 0.0
    %2350 = vmatpush1.msra.mxu0 0.0
    %2351 = vmatprep.subr.mxu0 0.0
    %2352 = vmatpush1.msra.mxu0 0.0
    %2353 = vmatprep.subr.mxu0 0.0
    %2354 = vmatpush1.msra.mxu0 0.0
    %2355 = vmatprep.subr.mxu0 0.0
    %2356 = vmatpush1.msra.mxu0 %v2186
    %2357 = vmatprep.subr.mxu0 0.0
    %2358 = vmatpush1.msra.mxu0 %v2185
    %2359 = vmatprep.subr.mxu0 0.0
    %2360 = vmatpush1.msra.mxu0 %v2184
    %2361 = vmatprep.subr.mxu0 0.0
    %2362 = vmatpush1.msra.mxu0 %v2183
    %2363 = vmatprep.subr.mxu0 0.0
    %2364 = vmatpush2.msra.mxu0 0.0
    %2365 = vmatprep.subr.mxu0 0.0
    %2366 = vmatpush2.msra.mxu0 0.0
    %2367 = vmatprep.subr.mxu0 0.0
    %2368 = vmatpush2.msra.mxu0 0.0
    %2369 = vmatprep.subr.mxu0 0.0
    %2370 = vmatpush2.msra.mxu0 0.0
    %2371 = vmatprep.subr.mxu0 0.0
    %2372 = vmatpush2.msra.mxu0 0.0
    %2373 = vmatprep.subr.mxu0 0.0
    %2374 = vmatpush2.msra.mxu0 0.0
    %2375 = vmatprep.subr.mxu0 0.0
    %2376 = vmatpush2.msra.mxu0 0.0
    %2377 = vmatprep.subr.mxu0 0.0
    %2378 = vmatpush2.msra.mxu0 0.0
    %2379 = vmatprep.subr.mxu0 0.0
    %2380 = vmatpush2.msra.mxu0 0.0
    %2381 = vmatprep.subr.mxu0 0.0
    %2382 = vmatpush2.msra.mxu0 0.0
    %2383 = vmatprep.subr.mxu0 0.0
    %2384 = vmatpush2.msra.mxu0 0.0
    %2385 = vmatprep.subr.mxu0 0.0
    %2386 = vmatpush2.msra.mxu0 0.0
    %2387 = vmatprep.subr.mxu0 0.0
    %2388 = vmatpush2.msra.mxu0 0.0
    %2389 = vmatprep.subr.mxu0 0.0
    %2390 = vmatpush2.msra.mxu0 0.0
    %2391 = vmatprep.subr.mxu0 0.0
    %2392 = vmatpush2.msra.mxu0 0.0
    %2393 = vmatprep.subr.mxu0 0.0
    %2394 = vmatpush2.msra.mxu0 0.0
    %2395 = vmatprep.mubr.f32.mxu0 0.0
    %2396 = vmatmul.mubr.f32.gmra.mxu0 %v2224
    %v2397 = vpop.f32.mrf.mxu0
    %v2398 = vadd.f32 0.0, %v2397
    %v2399 = vpop.f32.mrf.mxu0
    %2400 = vmatprep.mubr.f32.mxu0 0.0
    %2401 = vmatmul.mubr.f32.gmra.mxu0 %v2227
    %v2402 = vpop.f32.mrf.mxu0
    %v2403 = vadd.f32 0.0, %v2402
    %v2404 = vpop.f32.mrf.mxu0
    %2405 = vmatprep.mubr.f32.mxu0 0.0
    %2406 = vmatmul.mubr.f32.gmra.mxu0 %v2230
    %v2407 = vpop.f32.mrf.mxu0
    %v2408 = vadd.f32 0.0, %v2407
    %v2409 = vpop.f32.mrf.mxu0
    %2410 = vmatprep.mubr.f32.mxu0 0.0
    %2411 = vmatmul.mubr.f32.gmra.mxu0 %v2233
    %v2412 = vpop.f32.mrf.mxu0
    %v2413 = vadd.f32 0.0, %v2412
    %v2414 = vpop.f32.mrf.mxu0
    %2415 = vmatprep.mubr.f32.mxu0 0.0
    %2416 = vmatmul.mubr.f32.gmra.mxu0 %v2236
    %v2417 = vpop.f32.mrf.mxu0
    %v2418 = vadd.f32 0.0, %v2417
    %v2419 = vpop.f32.mrf.mxu0
    %2420 = vmatprep.mubr.f32.mxu0 0.0
    %2421 = vmatmul.mubr.f32.gmra.mxu0 %v2239
    %v2422 = vpop.f32.mrf.mxu0
    %v2423 = vadd.f32 0.0, %v2422
    %v2424 = vpop.f32.mrf.mxu0
    %2425 = vmatprep.mubr.f32.mxu0 0.0
    %2426 = vmatmul.mubr.f32.gmra.mxu0 %v2242
    %v2427 = vpop.f32.mrf.mxu0
    %v2428 = vadd.f32 0.0, %v2427
    %v2429 = vpop.f32.mrf.mxu0
    %2430 = vmatprep.mubr.f32.mxu0 0.0
    %2431 = vmatmul.mubr.f32.gmra.mxu0 %v2245
    %v2432 = vpop.f32.mrf.mxu0
    %v2433 = vadd.f32 0.0, %v2432
    %v2434 = vpop.f32.mrf.mxu0
    %2435 = vmatprep.mubr.f32.mxu0 0.0
    %2436 = vmatmul.mubr.f32.gmra.mxu0 %v2248
    %v2437 = vpop.f32.mrf.mxu0
    %v2438 = vadd.f32 0.0, %v2437
    %v2439 = vpop.f32.mrf.mxu0
    %2440 = vmatprep.mubr.f32.mxu0 0.0
    %2441 = vmatmul.mubr.f32.gmra.mxu0 %v2251
    %v2442 = vpop.f32.mrf.mxu0
    %v2443 = vadd.f32 0.0, %v2442
    %v2444 = vpop.f32.mrf.mxu0
    %2445 = vmatprep.mubr.f32.mxu0 0.0
    %2446 = vmatmul.mubr.f32.gmra.mxu0 %v2254
    %v2447 = vpop.f32.mrf.mxu0
    %v2448 = vadd.f32 0.0, %v2447
    %v2449 = vpop.f32.mrf.mxu0
    %2450 = vmatprep.mubr.f32.mxu0 0.0
    %2451 = vmatmul.mubr.f32.gmra.mxu0 %v2257
    %v2452 = vpop.f32.mrf.mxu0
    %v2453 = vadd.f32 0.0, %v2452
    %v2454 = vpop.f32.mrf.mxu0
    %2455 = vmatprep.mubr.f32.mxu0 0.0
    %2456 = vmatmul.mubr.f32.gmra.mxu0 %v2260
    %v2457 = vpop.f32.mrf.mxu0
    %v2458 = vadd.f32 0.0, %v2457
    %v2459 = vpop.f32.mrf.mxu0
    %2460 = vmatprep.mubr.f32.mxu0 0.0
    %2461 = vmatmul.mubr.f32.gmra.mxu0 %v2263
    %v2462 = vpop.f32.mrf.mxu0
    %v2463 = vadd.f32 0.0, %v2462
    %v2464 = vpop.f32.mrf.mxu0
    %2465 = vmatprep.mubr.f32.mxu0 0.0
    %2466 = vmatmul.mubr.f32.gmra.mxu0 %v2266
    %v2467 = vpop.f32.mrf.mxu0
    %v2468 = vadd.f32 0.0, %v2467
    %v2469 = vpop.f32.mrf.mxu0
    %2470 = vmatprep.mubr.f32.mxu0 0.0
    %2471 = vmatmul.mubr.f32.gmra.mxu0 %v2269
    %v2472 = vpop.f32.mrf.mxu0
    %v2473 = vadd.f32 0.0, %v2472
    %v2474 = vpop.f32.mrf.mxu0
    %2475 = vmatprep.mubr.f32.mxu0 0.0
    %2476 = vmatmul.mubr.f32.gmra.mxu0 %v2272
    %v2477 = vpop.f32.mrf.mxu0
    %v2478 = vadd.f32 0.0, %v2477
    %v2479 = vpop.f32.mrf.mxu0
    %2480 = vmatprep.mubr.f32.mxu0 0.0
    %2481 = vmatmul.mubr.f32.gmra.mxu0 %v2275
    %v2482 = vpop.f32.mrf.mxu0
    %v2483 = vadd.f32 0.0, %v2482
    %v2484 = vpop.f32.mrf.mxu0
    %2485 = vmatprep.mubr.f32.mxu0 0.0
    %2486 = vmatmul.mubr.f32.gmra.mxu0 %v2278
    %v2487 = vpop.f32.mrf.mxu0
    %v2488 = vadd.f32 0.0, %v2487
    %v2489 = vpop.f32.mrf.mxu0
    %2490 = vmatprep.mubr.f32.mxu0 0.0
    %2491 = vmatmul.mubr.f32.gmra.mxu0 %v2281
    %v2492 = vpop.f32.mrf.mxu0
    %v2493 = vadd.f32 0.0, %v2492
    %v2494 = vpop.f32.mrf.mxu0
    %2495 = vmatprep.mubr.f32.mxu0 0.0
    %2496 = vmatmul.mubr.f32.gmra.mxu0 %v2284
    %v2497 = vpop.f32.mrf.mxu0
    %v2498 = vadd.f32 0.0, %v2497
    %v2499 = vpop.f32.mrf.mxu0
    %2500 = vmatprep.mubr.f32.mxu0 0.0
    %2501 = vmatmul.mubr.f32.gmra.mxu0 %v2287
    %v2502 = vpop.f32.mrf.mxu0
    %v2503 = vadd.f32 0.0, %v2502
    %v2504 = vpop.f32.mrf.mxu0
    %2505 = vmatprep.mubr.f32.mxu0 0.0
    %2506 = vmatmul.mubr.f32.gmra.mxu0 %v2290
    %v2507 = vpop.f32.mrf.mxu0
    %v2508 = vadd.f32 0.0, %v2507
    %v2509 = vpop.f32.mrf.mxu0
    %2510 = vmatprep.mubr.f32.mxu0 0.0
    %2511 = vmatmul.mubr.f32.gmra.mxu0 %v2293
    %v2512 = vpop.f32.mrf.mxu0
    %v2513 = vadd.f32 0.0, %v2512
    %v2514 = vpop.f32.mrf.mxu0
    %2515 = vmatprep.mubr.f32.mxu0 0.0
    %2516 = vmatmul.mubr.f32.gmra.mxu0 %v2296
    %v2517 = vpop.f32.mrf.mxu0
    %v2518 = vadd.f32 0.0, %v2517
    %v2519 = vpop.f32.mrf.mxu0
    %2520 = vmatprep.mubr.f32.mxu0 0.0
    %2521 = vmatmul.mubr.f32.gmra.mxu0 %v2299
    %v2522 = vpop.f32.mrf.mxu0
    %v2523 = vadd.f32 0.0, %v2522
    %v2524 = vpop.f32.mrf.mxu0
    %2525 = vmatprep.mubr.f32.mxu0 0.0
    %2526 = vmatmul.mubr.f32.gmra.mxu0 %v2302
    %v2527 = vpop.f32.mrf.mxu0
    %v2528 = vadd.f32 0.0, %v2527
    %v2529 = vpop.f32.mrf.mxu0
    %2530 = vmatprep.mubr.f32.mxu0 0.0
    %2531 = vmatmul.mubr.f32.gmra.mxu0 %v2305
    %v2532 = vpop.f32.mrf.mxu0
    %v2533 = vadd.f32 0.0, %v2532
    %v2534 = vpop.f32.mrf.mxu0
    %2535 = vmatprep.mubr.f32.mxu0 0.0
    %2536 = vmatmul.mubr.f32.gmra.mxu0 %v2308
    %v2537 = vpop.f32.mrf.mxu0
    %v2538 = vadd.f32 0.0, %v2537
    %v2539 = vpop.f32.mrf.mxu0
    %2540 = vmatprep.mubr.f32.mxu0 0.0
    %2541 = vmatmul.mubr.f32.gmra.mxu0 %v2311
    %v2542 = vpop.f32.mrf.mxu0
    %v2543 = vadd.f32 0.0, %v2542
    %v2544 = vpop.f32.mrf.mxu0
    %2545 = vmatprep.mubr.f32.mxu0 0.0
    %2546 = vmatmul.mubr.f32.gmra.mxu0 %v2314
    %v2547 = vpop.f32.mrf.mxu0
    %v2548 = vadd.f32 0.0, %v2547
    %v2549 = vpop.f32.mrf.mxu0
    %2550 = vmatprep.mubr.f32.mxu0 0.0
    %2551 = vmatmul.mubr.f32.gmra.mxu0 %v2317
    %v2552 = vpop.f32.mrf.mxu0
    %v2553 = vadd.f32 0.0, %v2552
    %v2554 = vpop.f32.mrf.mxu0
    %2555 = vmatprep.mubr.f32.mxu0 0.0
    %2556 = vmatmul.mubr.f32.gmra.mxu0 %v2320
    %v2557 = vpop.f32.mrf.mxu0
    %v2558 = vadd.f32 0.0, %v2557
    %v2559 = vpop.f32.mrf.mxu0
    %2560 = vmatprep.mubr.f32.mxu0 0.0
    %2561 = vmatmul.mubr.f32.gmra.mxu0 %v2323
    %v2562 = vpop.f32.mrf.mxu0
    %v2563 = vadd.f32 0.0, %v2562
    %v2564 = vpop.f32.mrf.mxu0
    %2565 = vmatprep.mubr.f32.mxu0 0.0
    %2566 = vmatmul.mubr.f32.gmra.mxu0 %v2326
    %v2567 = vpop.f32.mrf.mxu0
    %v2568 = vadd.f32 0.0, %v2567
    %v2569 = vpop.f32.mrf.mxu0
    %2570 = vmatprep.mubr.f32.mxu0 0.0
    %2571 = vmatmul.mubr.f32.gmra.mxu0 %v2329
    %v2572 = vpop.f32.mrf.mxu0
    %v2573 = vadd.f32 0.0, %v2572
    %v2574 = vpop.f32.mrf.mxu0
    %2575 = vdwg.mxu0
    %2576 = vst [vmem:[#allocation2] sm:$0xff] %v2398
    %2577 = vst [vmem:[#allocation2 + $0x48] sm:$0xff] %v2403
    %2578 = vst [vmem:[#allocation2 + $0x90] sm:$0xff] %v2408
    %2579 = vst [vmem:[#allocation2 + $0xd8] sm:$0xff] %v2413
    %2580 = vst [vmem:[#allocation2 + $0x8] sm:$0xff] %v2418
    %2581 = vst [vmem:[#allocation2 + $0x50] sm:$0xff] %v2423
    %2582 = vst [vmem:[#allocation2 + $0x98] sm:$0xff] %v2428
    %2583 = vst [vmem:[#allocation2 + $0xe0] sm:$0xff] %v2433
    %2584 = vst [vmem:[#allocation2 + $0x10] sm:$0xff] %v2438
    %2585 = vst [vmem:[#allocation2 + $0x58] sm:$0xff] %v2443
    %2586 = vst [vmem:[#allocation2 + $0xa0] sm:$0xff] %v2448
    %2587 = vst [vmem:[#allocation2 + $0xe8] sm:$0xff] %v2453
    %2588 = vst [vmem:[#allocation2 + $0x18] sm:$0xff] %v2458
    %2589 = vst [vmem:[#allocation2 + $0x60] sm:$0xff] %v2463
    %2590 = vst [vmem:[#allocation2 + $0xa8] sm:$0xff] %v2468
    %2591 = vst [vmem:[#allocation2 + $0xf0] sm:$0xff] %v2473
    %2592 = vst [vmem:[#allocation2 + $0x20] sm:$0xff] %v2478
    %2593 = vst [vmem:[#allocation2 + $0x68] sm:$0xff] %v2483
    %2594 = vst [vmem:[#allocation2 + $0xb0] sm:$0xff] %v2488
    %2595 = vst [vmem:[#allocation2 + $0xf8] sm:$0xff] %v2493
    %2596 = vst [vmem:[#allocation2 + $0x28] sm:$0xff] %v2498
    %2597 = vst [vmem:[#allocation2 + $0x70] sm:$0xff] %v2503
    %2598 = vst [vmem:[#allocation2 + $0xb8] sm:$0xff] %v2508
    %2599 = vst [vmem:[#allocation2 + $0x100] sm:$0xff] %v2513
    %2600 = vst [vmem:[#allocation2 + $0x30] sm:$0xff] %v2518
    %2601 = vst [vmem:[#allocation2 + $0x78] sm:$0xff] %v2523
    %2602 = vst [vmem:[#allocation2 + $0xc0] sm:$0xff] %v2528
    %2603 = vst [vmem:[#allocation2 + $0x108] sm:$0xff] %v2533
    %2604 = vst [vmem:[#allocation2 + $0x38] sm:$0xff] %v2538
    %2605 = vst [vmem:[#allocation2 + $0x80] sm:$0xff] %v2543
    %2606 = vst [vmem:[#allocation2 + $0xc8] sm:$0xff] %v2548
    %2607 = vst [vmem:[#allocation2 + $0x110] sm:$0xff] %v2553
    %2608 = vst [vmem:[#allocation2 + $0x40] sm:$0xff] %v2558
    %2609 = vst [vmem:[#allocation2 + $0x88] sm:$0xff] %v2563
    %2610 = vst [vmem:[#allocation2 + $0xd0] sm:$0xff] %v2568
    %2611 = vst [vmem:[#allocation2 + $0x118] sm:$0xff] %v2573
    %v2612 = vld [vmem:[#allocation2] sm:$0xff]
    %v2613 = vld [vmem:[#allocation2 + $0x8] sm:$0xff]
    %v2614 = vld [vmem:[#allocation2 + $0x10] sm:$0xff]
    %v2615 = vld [vmem:[#allocation2 + $0x18] sm:$0xff]
    %v2616 = vld [vmem:[#allocation2 + $0x20] sm:$0xff]
    %v2617 = vld [vmem:[#allocation2 + $0x28] sm:$0xff]
    %v2618 = vld [vmem:[#allocation2 + $0x30] sm:$0xff]
    %v2619 = vld [vmem:[#allocation2 + $0x38] sm:$0xff]
    %v2620 = vld [vmem:[#allocation2 + $0x40] sm:$0xff]
    %v2621 = vld [vmem:[#allocation2 + $0x48] sm:$0xff]
    %v2622 = vld [vmem:[#allocation2 + $0x50] sm:$0xff]
    %v2623 = vld [vmem:[#allocation2 + $0x58] sm:$0xff]
    %v2624 = vld [vmem:[#allocation2 + $0x60] sm:$0xff]
    %v2625 = vld [vmem:[#allocation2 + $0x68] sm:$0xff]
    %v2626 = vld [vmem:[#allocation2 + $0x70] sm:$0xff]
    %v2627 = vld [vmem:[#allocation2 + $0x78] sm:$0xff]
    %v2628 = vld [vmem:[#allocation2 + $0x80] sm:$0xff]
    %v2629 = vld [vmem:[#allocation2 + $0x88] sm:$0xff]
    %v2630 = vld [vmem:[#allocation2 + $0x90] sm:$0xff]
    %v2631 = vld [vmem:[#allocation2 + $0x98] sm:$0xff]
    %v2632 = vld [vmem:[#allocation2 + $0xa0] sm:$0xff]
    %v2633 = vld [vmem:[#allocation2 + $0xa8] sm:$0xff]
    %v2634 = vld [vmem:[#allocation2 + $0xb0] sm:$0xff]
    %v2635 = vld [vmem:[#allocation2 + $0xb8] sm:$0xff]
    %v2636 = vld [vmem:[#allocation2 + $0xc0] sm:$0xff]
    %v2637 = vld [vmem:[#allocation2 + $0xc8] sm:$0xff]
    %v2638 = vld [vmem:[#allocation2 + $0xd0] sm:$0xff]
    %v2639 = vld [vmem:[#allocation2 + $0xd8] sm:$0xff]
    %v2640 = vld [vmem:[#allocation2 + $0xe0] sm:$0xff]
    %v2641 = vld [vmem:[#allocation2 + $0xe8] sm:$0xff]
    %v2642 = vld [vmem:[#allocation2 + $0xf0] sm:$0xff]
    %v2643 = vld [vmem:[#allocation2 + $0xf8] sm:$0xff]
    %v2644 = vld [vmem:[#allocation2 + $0x100] sm:$0xff]
    %v2645 = vld [vmem:[#allocation2 + $0x108] sm:$0xff]
    %v2646 = vld [vmem:[#allocation2 + $0x110] sm:$0xff]
    %v2647 = vld [vmem:[#allocation2 + $0x118] sm:$0xff]
    %v2648 = vld [vmem:[#allocation9] sm:$0xff]
    %v2649 = vld [vmem:[#allocation9 + $0x8] sm:$0xff]
    %v2650 = vld [vmem:[#allocation9 + $0x10] sm:$0xff]
    %v2651 = vld [vmem:[#allocation9 + $0x18] sm:$0xff]
    %v2652 = vld [vmem:[#allocation9 + $0x20] sm:$0xff]
    %v2653 = vld [vmem:[#allocation9 + $0x28] sm:$0xff]
    %v2654 = vld [vmem:[#allocation9 + $0x30] sm:$0xff]
    %v2655 = vld [vmem:[#allocation9 + $0x38] sm:$0xff]
    %v2656 = vld [vmem:[#allocation9 + $0x40] sm:$0xff]
    %v2657 = vld [vmem:[#allocation9 + $0x48] sm:$0xff]
    %v2658 = vld [vmem:[#allocation9 + $0x50] sm:$0xff]
    %v2659 = vld [vmem:[#allocation9 + $0x58] sm:$0xff]
    %v2660 = vld [vmem:[#allocation9 + $0x60] sm:$0xff]
    %v2661 = vld [vmem:[#allocation9 + $0x68] sm:$0xff]
    %v2662 = vld [vmem:[#allocation9 + $0x70] sm:$0xff]
    %v2663 = vld [vmem:[#allocation9 + $0x78] sm:$0xff]
    %v2664 = vld [vmem:[#allocation9 + $0x80] sm:$0xff]
    %v2665 = vld [vmem:[#allocation9 + $0x88] sm:$0xff]
    %v2666 = vld [vmem:[#allocation9 + $0x90] sm:$0xff]
    %v2667 = vld [vmem:[#allocation9 + $0x98] sm:$0xff]
    %v2668 = vld [vmem:[#allocation9 + $0xa0] sm:$0xff]
    %v2669 = vld [vmem:[#allocation9 + $0xa8] sm:$0xff]
    %v2670 = vld [vmem:[#allocation9 + $0xb0] sm:$0xff]
    %v2671 = vld [vmem:[#allocation9 + $0xb8] sm:$0xff]
    %v2672 = vld [vmem:[#allocation9 + $0xc0] sm:$0xff]
    %v2673 = vld [vmem:[#allocation9 + $0xc8] sm:$0xff]
    %v2674 = vld [vmem:[#allocation9 + $0xd0] sm:$0xff]
    %v2675 = vld [vmem:[#allocation9 + $0xd8] sm:$0xff]
    %v2676 = vld [vmem:[#allocation9 + $0xe0] sm:$0xff]
    %v2677 = vld [vmem:[#allocation9 + $0xe8] sm:$0xff]
    %v2678 = vld [vmem:[#allocation9 + $0xf0] sm:$0xff]
    %v2679 = vld [vmem:[#allocation9 + $0xf8] sm:$0xff]
    %v2680 = vld [vmem:[#allocation9 + $0x100] sm:$0xff]
    %v2681 = vld [vmem:[#allocation9 + $0x108] sm:$0xff]
    %v2682 = vld [vmem:[#allocation9 + $0x110] sm:$0xff]
    %v2683 = vld [vmem:[#allocation9 + $0x118] sm:$0xff]
    %v2684 = vld [vmem:[#allocation9 + $0x120] sm:$0xff]
    %v2685 = vld [vmem:[#allocation9 + $0x128] sm:$0xff]
    %v2686 = vld [vmem:[#allocation9 + $0x130] sm:$0xff]
    %v2687 = vld [vmem:[#allocation9 + $0x138] sm:$0xff]
    %v2688 = vld [vmem:[#allocation9 + $0x140] sm:$0xff]
    %v2689 = vld [vmem:[#allocation9 + $0x148] sm:$0xff]
    %v2690 = vld [vmem:[#allocation9 + $0x150] sm:$0xff]
    %v2691 = vld [vmem:[#allocation9 + $0x158] sm:$0xff]
    %v2692 = vld [vmem:[#allocation9 + $0x160] sm:$0xff]
    %v2693 = vld [vmem:[#allocation9 + $0x168] sm:$0xff]
    %v2694 = vld [vmem:[#allocation9 + $0x170] sm:$0xff]
    %v2695 = vld [vmem:[#allocation9 + $0x178] sm:$0xff]
    %v2696 = vld [vmem:[#allocation9 + $0x180] sm:$0xff]
    %v2697 = vld [vmem:[#allocation9 + $0x188] sm:$0xff]
    %v2698 = vld [vmem:[#allocation9 + $0x190] sm:$0xff]
    %v2699 = vld [vmem:[#allocation9 + $0x198] sm:$0xff]
    %v2700 = vld [vmem:[#allocation9 + $0x1a0] sm:$0xff]
    %v2701 = vld [vmem:[#allocation9 + $0x1a8] sm:$0xff]
    %v2702 = vld [vmem:[#allocation9 + $0x1b0] sm:$0xff]
    %v2703 = vld [vmem:[#allocation9 + $0x1b8] sm:$0xff]
    %v2704 = vld [vmem:[#allocation9 + $0x1c0] sm:$0xff]
    %v2705 = vld [vmem:[#allocation9 + $0x1c8] sm:$0xff]
    %v2706 = vld [vmem:[#allocation9 + $0x1d0] sm:$0xff]
    %v2707 = vld [vmem:[#allocation9 + $0x1d8] sm:$0xff]
    %v2708 = vld [vmem:[#allocation9 + $0x1e0] sm:$0xff]
    %v2709 = vld [vmem:[#allocation9 + $0x1e8] sm:$0xff]
    %v2710 = vld [vmem:[#allocation9 + $0x1f0] sm:$0xff]
    %v2711 = vld [vmem:[#allocation9 + $0x1f8] sm:$0xff]
    %v2712 = vld [vmem:[#allocation9 + $0x200] sm:$0xff]
    %v2713 = vld [vmem:[#allocation9 + $0x208] sm:$0xff]
    %v2714 = vld [vmem:[#allocation9 + $0x210] sm:$0xff]
    %v2715 = vld [vmem:[#allocation9 + $0x218] sm:$0xff]
    %v2716 = vld [vmem:[#allocation9 + $0x220] sm:$0xff]
    %v2717 = vld [vmem:[#allocation9 + $0x228] sm:$0xff]
    %v2718 = vld [vmem:[#allocation9 + $0x230] sm:$0xff]
    %v2719 = vld [vmem:[#allocation9 + $0x238] sm:$0xff]
    %v2720 = vld [vmem:[#allocation9 + $0x240] sm:$0xff]
    %v2721 = vld [vmem:[#allocation9 + $0x248] sm:$0xff]
    %v2722 = vld [vmem:[#allocation9 + $0x250] sm:$0xff]
    %v2723 = vld [vmem:[#allocation9 + $0x258] sm:$0xff]
    %v2724 = vld [vmem:[#allocation9 + $0x260] sm:$0xff]
    %v2725 = vld [vmem:[#allocation9 + $0x268] sm:$0xff]
    %v2726 = vld [vmem:[#allocation9 + $0x270] sm:$0xff]
    %v2727 = vld [vmem:[#allocation9 + $0x278] sm:$0xff]
    %v2728 = vld [vmem:[#allocation9 + $0x280] sm:$0xff]
    %v2729 = vld [vmem:[#allocation9 + $0x288] sm:$0xff]
    %v2730 = vld [vmem:[#allocation9 + $0x290] sm:$0xff]
    %v2731 = vld [vmem:[#allocation9 + $0x298] sm:$0xff]
    %v2732 = vld [vmem:[#allocation9 + $0x2a0] sm:$0xff]
    %v2733 = vld [vmem:[#allocation9 + $0x2a8] sm:$0xff]
    %v2734 = vld [vmem:[#allocation9 + $0x2b0] sm:$0xff]
    %v2735 = vld [vmem:[#allocation9 + $0x2b8] sm:$0xff]
    %v2736 = vld [vmem:[#allocation9 + $0x2c0] sm:$0xff]
    %v2737 = vld [vmem:[#allocation9 + $0x2c8] sm:$0xff]
    %v2738 = vld [vmem:[#allocation9 + $0x2d0] sm:$0xff]
    %v2739 = vld [vmem:[#allocation9 + $0x2d8] sm:$0xff]
    %v2740 = vld [vmem:[#allocation9 + $0x2e0] sm:$0xff]
    %v2741 = vld [vmem:[#allocation9 + $0x2e8] sm:$0xff]
    %v2742 = vld [vmem:[#allocation9 + $0x2f0] sm:$0xff]
    %v2743 = vld [vmem:[#allocation9 + $0x2f8] sm:$0xff]
    %v2744 = vld [vmem:[#allocation9 + $0x300] sm:$0xff]
    %v2745 = vld [vmem:[#allocation9 + $0x308] sm:$0xff]
    %v2746 = vld [vmem:[#allocation9 + $0x310] sm:$0xff]
    %v2747 = vld [vmem:[#allocation9 + $0x318] sm:$0xff]
    %v2748 = vld [vmem:[#allocation9 + $0x320] sm:$0xff]
    %v2749 = vld [vmem:[#allocation9 + $0x328] sm:$0xff]
    %v2750 = vld [vmem:[#allocation9 + $0x330] sm:$0xff]
    %v2751 = vld [vmem:[#allocation9 + $0x338] sm:$0xff]
    %v2752 = vld [vmem:[#allocation9 + $0x340] sm:$0xff]
    %v2753 = vld [vmem:[#allocation9 + $0x348] sm:$0xff]
    %v2754 = vld [vmem:[#allocation9 + $0x350] sm:$0xff]
    %v2755 = vld [vmem:[#allocation9 + $0x358] sm:$0xff]
    %v2756 = vld [vmem:[#allocation9 + $0x360] sm:$0xff]
    %v2757 = vld [vmem:[#allocation9 + $0x368] sm:$0xff]
    %v2758 = vld [vmem:[#allocation9 + $0x370] sm:$0xff]
    %v2759 = vld [vmem:[#allocation9 + $0x378] sm:$0xff]
    %v2760 = vld [vmem:[#allocation9 + $0x380] sm:$0xff]
    %v2761 = vld [vmem:[#allocation9 + $0x388] sm:$0xff]
    %v2762 = vld [vmem:[#allocation9 + $0x390] sm:$0xff]
    %v2763 = vld [vmem:[#allocation9 + $0x398] sm:$0xff]
    %v2764 = vld [vmem:[#allocation9 + $0x3a0] sm:$0xff]
    %v2765 = vld [vmem:[#allocation9 + $0x3a8] sm:$0xff]
    %v2766 = vld [vmem:[#allocation9 + $0x3b0] sm:$0xff]
    %v2767 = vld [vmem:[#allocation9 + $0x3b8] sm:$0xff]
    %v2768 = vld [vmem:[#allocation9 + $0x3c0] sm:$0xff]
    %v2769 = vld [vmem:[#allocation9 + $0x3c8] sm:$0xff]
    %v2770 = vld [vmem:[#allocation9 + $0x3d0] sm:$0xff]
    %v2771 = vld [vmem:[#allocation9 + $0x3d8] sm:$0xff]
    %v2772 = vld [vmem:[#allocation9 + $0x3e0] sm:$0xff]
    %v2773 = vld [vmem:[#allocation9 + $0x3e8] sm:$0xff]
    %v2774 = vld [vmem:[#allocation9 + $0x3f0] sm:$0xff]
    %v2775 = vld [vmem:[#allocation9 + $0x3f8] sm:$0xff]
    %v2776 = vld [vmem:[#allocation9 + $0x400] sm:$0xff]
    %v2777 = vld [vmem:[#allocation9 + $0x408] sm:$0xff]
    %v2778 = vld [vmem:[#allocation9 + $0x410] sm:$0xff]
    %v2779 = vld [vmem:[#allocation9 + $0x418] sm:$0xff]
    %v2780 = vld [vmem:[#allocation9 + $0x420] sm:$0xff]
    %v2781 = vld [vmem:[#allocation9 + $0x428] sm:$0xff]
    %v2782 = vld [vmem:[#allocation9 + $0x430] sm:$0xff]
    %v2783 = vld [vmem:[#allocation9 + $0x438] sm:$0xff]
    %v2784 = vld [vmem:[#allocation9 + $0x440] sm:$0xff]
    %v2785 = vld [vmem:[#allocation9 + $0x448] sm:$0xff]
    %v2786 = vld [vmem:[#allocation9 + $0x450] sm:$0xff]
    %v2787 = vld [vmem:[#allocation9 + $0x458] sm:$0xff]
    %v2788 = vld [vmem:[#allocation9 + $0x460] sm:$0xff]
    %v2789 = vld [vmem:[#allocation9 + $0x468] sm:$0xff]
    %v2790 = vld [vmem:[#allocation9 + $0x470] sm:$0xff]
    %v2791 = vld [vmem:[#allocation9 + $0x478] sm:$0xff]
    %v2792 = vld [vmem:[%s7] sm:$0x1]
    %v2794 = vlaneseq
    %v2795 = vshrl.u32 %v2794, 7
    %v2796 = vsub.s32 0, %v2795
    %v2797 = vrot.slane %v2792, %v2796
    %2799 = vmatprep.subr.mxu0 0.0
    %2800 = vmatpush1.msra.mxu0 %v2663
    %2801 = vmatprep.subr.mxu0 0.0
    %2802 = vmatpush1.msra.mxu0 %v2662
    %2803 = vmatprep.subr.mxu0 0.0
    %2804 = vmatpush1.msra.mxu0 %v2661
    %2805 = vmatprep.subr.mxu0 0.0
    %2806 = vmatpush1.msra.mxu0 %v2660
    %2807 = vmatprep.subr.mxu0 0.0
    %2808 = vmatpush1.msra.mxu0 %v2659
    %2809 = vmatprep.subr.mxu0 0.0
    %2810 = vmatpush1.msra.mxu0 %v2658
    %2811 = vmatprep.subr.mxu0 0.0
    %2812 = vmatpush1.msra.mxu0 %v2657
    %2813 = vmatprep.subr.mxu0 0.0
    %2814 = vmatpush1.msra.mxu0 %v2656
    %2815 = vmatprep.subr.mxu0 0.0
    %2816 = vmatpush1.msra.mxu0 %v2655
    %2817 = vmatprep.subr.mxu0 0.0
    %2818 = vmatpush1.msra.mxu0 %v2654
    %2819 = vmatprep.subr.mxu0 0.0
    %2820 = vmatpush1.msra.mxu0 %v2653
    %2821 = vmatprep.subr.mxu0 0.0
    %2822 = vmatpush1.msra.mxu0 %v2652
    %2823 = vmatprep.subr.mxu0 0.0
    %2824 = vmatpush1.msra.mxu0 %v2651
    %2825 = vmatprep.subr.mxu0 0.0
    %2826 = vmatpush1.msra.mxu0 %v2650
    %2827 = vmatprep.subr.mxu0 0.0
    %2828 = vmatpush1.msra.mxu0 %v2649
    %2829 = vmatprep.subr.mxu0 0.0
    %2830 = vmatpush1.msra.mxu0 %v2648
    %2831 = vmatprep.subr.mxu0 0.0
    %2832 = vmatpush2.msra.mxu0 %v2679
    %2833 = vmatprep.subr.mxu0 0.0
    %2834 = vmatpush2.msra.mxu0 %v2678
    %2835 = vmatprep.subr.mxu0 0.0
    %2836 = vmatpush2.msra.mxu0 %v2677
    %2837 = vmatprep.subr.mxu0 0.0
    %2838 = vmatpush2.msra.mxu0 %v2676
    %2839 = vmatprep.subr.mxu0 0.0
    %2840 = vmatpush2.msra.mxu0 %v2675
    %2841 = vmatprep.subr.mxu0 0.0
    %2842 = vmatpush2.msra.mxu0 %v2674
    %2843 = vmatprep.subr.mxu0 0.0
    %2844 = vmatpush2.msra.mxu0 %v2673
    %2845 = vmatprep.subr.mxu0 0.0
    %2846 = vmatpush2.msra.mxu0 %v2672
    %2847 = vmatprep.subr.mxu0 0.0
    %2848 = vmatpush2.msra.mxu0 %v2671
    %2849 = vmatprep.subr.mxu0 0.0
    %2850 = vmatpush2.msra.mxu0 %v2670
    %2851 = vmatprep.subr.mxu0 0.0
    %2852 = vmatpush2.msra.mxu0 %v2669
    %2853 = vmatprep.subr.mxu0 0.0
    %2854 = vmatpush2.msra.mxu0 %v2668
    %2855 = vmatprep.subr.mxu0 0.0
    %2856 = vmatpush2.msra.mxu0 %v2667
    %2857 = vmatprep.subr.mxu0 0.0
    %2858 = vmatpush2.msra.mxu0 %v2666
    %2859 = vmatprep.subr.mxu0 0.0
    %2860 = vmatpush2.msra.mxu0 %v2665
    %2861 = vmatprep.subr.mxu0 0.0
    %2862 = vmatpush2.msra.mxu0 %v2664
    %2863 = vmatprep.mubr.f32.mxu0 %v2613
    %2864 = vmatmul.mubr.f32.gmra.mxu0 %v2612
    %v2865 = vpop.f32.mrf.mxu0
    %v2866 = vadd.f32 %v2797, %v2865
    %v2867 = vpop.f32.mrf.mxu0
    %2868 = vmatprep.mubr.f32.mxu0 %v2622
    %2869 = vmatmul.mubr.f32.gmra.mxu0 %v2621
    %v2870 = vpop.f32.mrf.mxu0
    %v2871 = vadd.f32 %v2797, %v2870
    %v2872 = vpop.f32.mrf.mxu0
    %2873 = vmatprep.mubr.f32.mxu0 %v2631
    %2874 = vmatmul.mubr.f32.gmra.mxu0 %v2630
    %v2875 = vpop.f32.mrf.mxu0
    %v2876 = vadd.f32 %v2797, %v2875
    %v2877 = vpop.f32.mrf.mxu0
    %2878 = vmatprep.mubr.f32.mxu0 %v2640
    %2879 = vmatmul.mubr.f32.gmra.mxu0 %v2639
    %v2880 = vpop.f32.mrf.mxu0
    %v2881 = vadd.f32 %v2797, %v2880
    %v2882 = vpop.f32.mrf.mxu0
    %2883 = vdwg.mxu0
    %2884 = vmatprep.subr.mxu0 0.0
    %2885 = vmatpush1.msra.mxu0 %v2695
    %2886 = vmatprep.subr.mxu0 0.0
    %2887 = vmatpush1.msra.mxu0 %v2694
    %2888 = vmatprep.subr.mxu0 0.0
    %2889 = vmatpush1.msra.mxu0 %v2693
    %2890 = vmatprep.subr.mxu0 0.0
    %2891 = vmatpush1.msra.mxu0 %v2692
    %2892 = vmatprep.subr.mxu0 0.0
    %2893 = vmatpush1.msra.mxu0 %v2691
    %2894 = vmatprep.subr.mxu0 0.0
    %2895 = vmatpush1.msra.mxu0 %v2690
    %2896 = vmatprep.subr.mxu0 0.0
    %2897 = vmatpush1.msra.mxu0 %v2689
    %2898 = vmatprep.subr.mxu0 0.0
    %2899 = vmatpush1.msra.mxu0 %v2688
    %2900 = vmatprep.subr.mxu0 0.0
    %2901 = vmatpush1.msra.mxu0 %v2687
    %2902 = vmatprep.subr.mxu0 0.0
    %2903 = vmatpush1.msra.mxu0 %v2686
    %2904 = vmatprep.subr.mxu0 0.0
    %2905 = vmatpush1.msra.mxu0 %v2685
    %2906 = vmatprep.subr.mxu0 0.0
    %2907 = vmatpush1.msra.mxu0 %v2684
    %2908 = vmatprep.subr.mxu0 0.0
    %2909 = vmatpush1.msra.mxu0 %v2683
    %2910 = vmatprep.subr.mxu0 0.0
    %2911 = vmatpush1.msra.mxu0 %v2682
    %2912 = vmatprep.subr.mxu0 0.0
    %2913 = vmatpush1.msra.mxu0 %v2681
    %2914 = vmatprep.subr.mxu0 0.0
    %2915 = vmatpush1.msra.mxu0 %v2680
    %2916 = vmatprep.subr.mxu0 0.0
    %2917 = vmatpush2.msra.mxu0 %v2711
    %2918 = vmatprep.subr.mxu0 0.0
    %2919 = vmatpush2.msra.mxu0 %v2710
    %2920 = vmatprep.subr.mxu0 0.0
    %2921 = vmatpush2.msra.mxu0 %v2709
    %2922 = vmatprep.subr.mxu0 0.0
    %2923 = vmatpush2.msra.mxu0 %v2708
    %2924 = vmatprep.subr.mxu0 0.0
    %2925 = vmatpush2.msra.mxu0 %v2707
    %2926 = vmatprep.subr.mxu0 0.0
    %2927 = vmatpush2.msra.mxu0 %v2706
    %2928 = vmatprep.subr.mxu0 0.0
    %2929 = vmatpush2.msra.mxu0 %v2705
    %2930 = vmatprep.subr.mxu0 0.0
    %2931 = vmatpush2.msra.mxu0 %v2704
    %2932 = vmatprep.subr.mxu0 0.0
    %2933 = vmatpush2.msra.mxu0 %v2703
    %2934 = vmatprep.subr.mxu0 0.0
    %2935 = vmatpush2.msra.mxu0 %v2702
    %2936 = vmatprep.subr.mxu0 0.0
    %2937 = vmatpush2.msra.mxu0 %v2701
    %2938 = vmatprep.subr.mxu0 0.0
    %2939 = vmatpush2.msra.mxu0 %v2700
    %2940 = vmatprep.subr.mxu0 0.0
    %2941 = vmatpush2.msra.mxu0 %v2699
    %2942 = vmatprep.subr.mxu0 0.0
    %2943 = vmatpush2.msra.mxu0 %v2698
    %2944 = vmatprep.subr.mxu0 0.0
    %2945 = vmatpush2.msra.mxu0 %v2697
    %2946 = vmatprep.subr.mxu0 0.0
    %2947 = vmatpush2.msra.mxu0 %v2696
    %2948 = vmatprep.mubr.f32.mxu0 %v2615
    %2949 = vmatmul.mubr.f32.gmra.mxu0 %v2614
    %v2950 = vpop.f32.mrf.mxu0
    %v2951 = vadd.f32 %v2866, %v2950
    %v2952 = vpop.f32.mrf.mxu0
    %2953 = vmatprep.mubr.f32.mxu0 %v2624
    %2954 = vmatmul.mubr.f32.gmra.mxu0 %v2623
    %v2955 = vpop.f32.mrf.mxu0
    %v2956 = vadd.f32 %v2871, %v2955
    %v2957 = vpop.f32.mrf.mxu0
    %2958 = vmatprep.mubr.f32.mxu0 %v2633
    %2959 = vmatmul.mubr.f32.gmra.mxu0 %v2632
    %v2960 = vpop.f32.mrf.mxu0
    %v2961 = vadd.f32 %v2876, %v2960
    %v2962 = vpop.f32.mrf.mxu0
    %2963 = vmatprep.mubr.f32.mxu0 %v2642
    %2964 = vmatmul.mubr.f32.gmra.mxu0 %v2641
    %v2965 = vpop.f32.mrf.mxu0
    %v2966 = vadd.f32 %v2881, %v2965
    %v2967 = vpop.f32.mrf.mxu0
    %2968 = vdwg.mxu0
    %2969 = vmatprep.subr.mxu0 0.0
    %2970 = vmatpush1.msra.mxu0 %v2727
    %2971 = vmatprep.subr.mxu0 0.0
    %2972 = vmatpush1.msra.mxu0 %v2726
    %2973 = vmatprep.subr.mxu0 0.0
    %2974 = vmatpush1.msra.mxu0 %v2725
    %2975 = vmatprep.subr.mxu0 0.0
    %2976 = vmatpush1.msra.mxu0 %v2724
    %2977 = vmatprep.subr.mxu0 0.0
    %2978 = vmatpush1.msra.mxu0 %v2723
    %2979 = vmatprep.subr.mxu0 0.0
    %2980 = vmatpush1.msra.mxu0 %v2722
    %2981 = vmatprep.subr.mxu0 0.0
    %2982 = vmatpush1.msra.mxu0 %v2721
    %2983 = vmatprep.subr.mxu0 0.0
    %2984 = vmatpush1.msra.mxu0 %v2720
    %2985 = vmatprep.subr.mxu0 0.0
    %2986 = vmatpush1.msra.mxu0 %v2719
    %2987 = vmatprep.subr.mxu0 0.0
    %2988 = vmatpush1.msra.mxu0 %v2718
    %2989 = vmatprep.subr.mxu0 0.0
    %2990 = vmatpush1.msra.mxu0 %v2717
    %2991 = vmatprep.subr.mxu0 0.0
    %2992 = vmatpush1.msra.mxu0 %v2716
    %2993 = vmatprep.subr.mxu0 0.0
    %2994 = vmatpush1.msra.mxu0 %v2715
    %2995 = vmatprep.subr.mxu0 0.0
    %2996 = vmatpush1.msra.mxu0 %v2714
    %2997 = vmatprep.subr.mxu0 0.0
    %2998 = vmatpush1.msra.mxu0 %v2713
    %2999 = vmatprep.subr.mxu0 0.0
    %3000 = vmatpush1.msra.mxu0 %v2712
    %3001 = vmatprep.subr.mxu0 0.0
    %3002 = vmatpush2.msra.mxu0 %v2743
    %3003 = vmatprep.subr.mxu0 0.0
    %3004 = vmatpush2.msra.mxu0 %v2742
    %3005 = vmatprep.subr.mxu0 0.0
    %3006 = vmatpush2.msra.mxu0 %v2741
    %3007 = vmatprep.subr.mxu0 0.0
    %3008 = vmatpush2.msra.mxu0 %v2740
    %3009 = vmatprep.subr.mxu0 0.0
    %3010 = vmatpush2.msra.mxu0 %v2739
    %3011 = vmatprep.subr.mxu0 0.0
    %3012 = vmatpush2.msra.mxu0 %v2738
    %3013 = vmatprep.subr.mxu0 0.0
    %3014 = vmatpush2.msra.mxu0 %v2737
    %3015 = vmatprep.subr.mxu0 0.0
    %3016 = vmatpush2.msra.mxu0 %v2736
    %3017 = vmatprep.subr.mxu0 0.0
    %3018 = vmatpush2.msra.mxu0 %v2735
    %3019 = vmatprep.subr.mxu0 0.0
    %3020 = vmatpush2.msra.mxu0 %v2734
    %3021 = vmatprep.subr.mxu0 0.0
    %3022 = vmatpush2.msra.mxu0 %v2733
    %3023 = vmatprep.subr.mxu0 0.0
    %3024 = vmatpush2.msra.mxu0 %v2732
    %3025 = vmatprep.subr.mxu0 0.0
    %3026 = vmatpush2.msra.mxu0 %v2731
    %3027 = vmatprep.subr.mxu0 0.0
    %3028 = vmatpush2.msra.mxu0 %v2730
    %3029 = vmatprep.subr.mxu0 0.0
    %3030 = vmatpush2.msra.mxu0 %v2729
    %3031 = vmatprep.subr.mxu0 0.0
    %3032 = vmatpush2.msra.mxu0 %v2728
    %3033 = vmatprep.mubr.f32.mxu0 %v2617
    %3034 = vmatmul.mubr.f32.gmra.mxu0 %v2616
    %v3035 = vpop.f32.mrf.mxu0
    %v3036 = vadd.f32 %v2951, %v3035
    %v3037 = vpop.f32.mrf.mxu0
    %3038 = vmatprep.mubr.f32.mxu0 %v2626
    %3039 = vmatmul.mubr.f32.gmra.mxu0 %v2625
    %v3040 = vpop.f32.mrf.mxu0
    %v3041 = vadd.f32 %v2956, %v3040
    %v3042 = vpop.f32.mrf.mxu0
    %3043 = vmatprep.mubr.f32.mxu0 %v2635
    %3044 = vmatmul.mubr.f32.gmra.mxu0 %v2634
    %v3045 = vpop.f32.mrf.mxu0
    %v3046 = vadd.f32 %v2961, %v3045
    %v3047 = vpop.f32.mrf.mxu0
    %3048 = vmatprep.mubr.f32.mxu0 %v2644
    %3049 = vmatmul.mubr.f32.gmra.mxu0 %v2643
    %v3050 = vpop.f32.mrf.mxu0
    %v3051 = vadd.f32 %v2966, %v3050
    %v3052 = vpop.f32.mrf.mxu0
    %3053 = vdwg.mxu0
    %3054 = vmatprep.subr.mxu0 0.0
    %3055 = vmatpush1.msra.mxu0 %v2759
    %3056 = vmatprep.subr.mxu0 0.0
    %3057 = vmatpush1.msra.mxu0 %v2758
    %3058 = vmatprep.subr.mxu0 0.0
    %3059 = vmatpush1.msra.mxu0 %v2757
    %3060 = vmatprep.subr.mxu0 0.0
    %3061 = vmatpush1.msra.mxu0 %v2756
    %3062 = vmatprep.subr.mxu0 0.0
    %3063 = vmatpush1.msra.mxu0 %v2755
    %3064 = vmatprep.subr.mxu0 0.0
    %3065 = vmatpush1.msra.mxu0 %v2754
    %3066 = vmatprep.subr.mxu0 0.0
    %3067 = vmatpush1.msra.mxu0 %v2753
    %3068 = vmatprep.subr.mxu0 0.0
    %3069 = vmatpush1.msra.mxu0 %v2752
    %3070 = vmatprep.subr.mxu0 0.0
    %3071 = vmatpush1.msra.mxu0 %v2751
    %3072 = vmatprep.subr.mxu0 0.0
    %3073 = vmatpush1.msra.mxu0 %v2750
    %3074 = vmatprep.subr.mxu0 0.0
    %3075 = vmatpush1.msra.mxu0 %v2749
    %3076 = vmatprep.subr.mxu0 0.0
    %3077 = vmatpush1.msra.mxu0 %v2748
    %3078 = vmatprep.subr.mxu0 0.0
    %3079 = vmatpush1.msra.mxu0 %v2747
    %3080 = vmatprep.subr.mxu0 0.0
    %3081 = vmatpush1.msra.mxu0 %v2746
    %3082 = vmatprep.subr.mxu0 0.0
    %3083 = vmatpush1.msra.mxu0 %v2745
    %3084 = vmatprep.subr.mxu0 0.0
    %3085 = vmatpush1.msra.mxu0 %v2744
    %3086 = vmatprep.subr.mxu0 0.0
    %3087 = vmatpush2.msra.mxu0 %v2775
    %3088 = vmatprep.subr.mxu0 0.0
    %3089 = vmatpush2.msra.mxu0 %v2774
    %3090 = vmatprep.subr.mxu0 0.0
    %3091 = vmatpush2.msra.mxu0 %v2773
    %3092 = vmatprep.subr.mxu0 0.0
    %3093 = vmatpush2.msra.mxu0 %v2772
    %3094 = vmatprep.subr.mxu0 0.0
    %3095 = vmatpush2.msra.mxu0 %v2771
    %3096 = vmatprep.subr.mxu0 0.0
    %3097 = vmatpush2.msra.mxu0 %v2770
    %3098 = vmatprep.subr.mxu0 0.0
    %3099 = vmatpush2.msra.mxu0 %v2769
    %3100 = vmatprep.subr.mxu0 0.0
    %3101 = vmatpush2.msra.mxu0 %v2768
    %3102 = vmatprep.subr.mxu0 0.0
    %3103 = vmatpush2.msra.mxu0 %v2767
    %3104 = vmatprep.subr.mxu0 0.0
    %3105 = vmatpush2.msra.mxu0 %v2766
    %3106 = vmatprep.subr.mxu0 0.0
    %3107 = vmatpush2.msra.mxu0 %v2765
    %3108 = vmatprep.subr.mxu0 0.0
    %3109 = vmatpush2.msra.mxu0 %v2764
    %3110 = vmatprep.subr.mxu0 0.0
    %3111 = vmatpush2.msra.mxu0 %v2763
    %3112 = vmatprep.subr.mxu0 0.0
    %3113 = vmatpush2.msra.mxu0 %v2762
    %3114 = vmatprep.subr.mxu0 0.0
    %3115 = vmatpush2.msra.mxu0 %v2761
    %3116 = vmatprep.subr.mxu0 0.0
    %3117 = vmatpush2.msra.mxu0 %v2760
    %3118 = vmatprep.mubr.f32.mxu0 %v2619
    %3119 = vmatmul.mubr.f32.gmra.mxu0 %v2618
    %v3120 = vpop.f32.mrf.mxu0
    %v3121 = vadd.f32 %v3036, %v3120
    %v3122 = vpop.f32.mrf.mxu0
    %3123 = vmatprep.mubr.f32.mxu0 %v2628
    %3124 = vmatmul.mubr.f32.gmra.mxu0 %v2627
    %v3125 = vpop.f32.mrf.mxu0
    %v3126 = vadd.f32 %v3041, %v3125
    %v3127 = vpop.f32.mrf.mxu0
    %3128 = vmatprep.mubr.f32.mxu0 %v2637
    %3129 = vmatmul.mubr.f32.gmra.mxu0 %v2636
    %v3130 = vpop.f32.mrf.mxu0
    %v3131 = vadd.f32 %v3046, %v3130
    %v3132 = vpop.f32.mrf.mxu0
    %3133 = vmatprep.mubr.f32.mxu0 %v2646
    %3134 = vmatmul.mubr.f32.gmra.mxu0 %v2645
    %v3135 = vpop.f32.mrf.mxu0
    %v3136 = vadd.f32 %v3051, %v3135
    %v3137 = vpop.f32.mrf.mxu0
    %3138 = vdwg.mxu0
    %3139 = vmatprep.subr.mxu0 0.0
    %3140 = vmatpush1.msra.mxu0 %v2791
    %3141 = vmatprep.subr.mxu0 0.0
    %3142 = vmatpush1.msra.mxu0 %v2790
    %3143 = vmatprep.subr.mxu0 0.0
    %3144 = vmatpush1.msra.mxu0 %v2789
    %3145 = vmatprep.subr.mxu0 0.0
    %3146 = vmatpush1.msra.mxu0 %v2788
    %3147 = vmatprep.subr.mxu0 0.0
    %3148 = vmatpush1.msra.mxu0 %v2787
    %3149 = vmatprep.subr.mxu0 0.0
    %3150 = vmatpush1.msra.mxu0 %v2786
    %3151 = vmatprep.subr.mxu0 0.0
    %3152 = vmatpush1.msra.mxu0 %v2785
    %3153 = vmatprep.subr.mxu0 0.0
    %3154 = vmatpush1.msra.mxu0 %v2784
    %3155 = vmatprep.subr.mxu0 0.0
    %3156 = vmatpush1.msra.mxu0 %v2783
    %3157 = vmatprep.subr.mxu0 0.0
    %3158 = vmatpush1.msra.mxu0 %v2782
    %3159 = vmatprep.subr.mxu0 0.0
    %3160 = vmatpush1.msra.mxu0 %v2781
    %3161 = vmatprep.subr.mxu0 0.0
    %3162 = vmatpush1.msra.mxu0 %v2780
    %3163 = vmatprep.subr.mxu0 0.0
    %3164 = vmatpush1.msra.mxu0 %v2779
    %3165 = vmatprep.subr.mxu0 0.0
    %3166 = vmatpush1.msra.mxu0 %v2778
    %3167 = vmatprep.subr.mxu0 0.0
    %3168 = vmatpush1.msra.mxu0 %v2777
    %3169 = vmatprep.subr.mxu0 0.0
    %3170 = vmatpush1.msra.mxu0 %v2776
    %3171 = vmatprep.subr.mxu0 0.0
    %3172 = vmatpush2.msra.mxu0 0.0
    %3173 = vmatprep.subr.mxu0 0.0
    %3174 = vmatpush2.msra.mxu0 0.0
    %3175 = vmatprep.subr.mxu0 0.0
    %3176 = vmatpush2.msra.mxu0 0.0
    %3177 = vmatprep.subr.mxu0 0.0
    %3178 = vmatpush2.msra.mxu0 0.0
    %3179 = vmatprep.subr.mxu0 0.0
    %3180 = vmatpush2.msra.mxu0 0.0
    %3181 = vmatprep.subr.mxu0 0.0
    %3182 = vmatpush2.msra.mxu0 0.0
    %3183 = vmatprep.subr.mxu0 0.0
    %3184 = vmatpush2.msra.mxu0 0.0
    %3185 = vmatprep.subr.mxu0 0.0
    %3186 = vmatpush2.msra.mxu0 0.0
    %3187 = vmatprep.subr.mxu0 0.0
    %3188 = vmatpush2.msra.mxu0 0.0
    %3189 = vmatprep.subr.mxu0 0.0
    %3190 = vmatpush2.msra.mxu0 0.0
    %3191 = vmatprep.subr.mxu0 0.0
    %3192 = vmatpush2.msra.mxu0 0.0
    %3193 = vmatprep.subr.mxu0 0.0
    %3194 = vmatpush2.msra.mxu0 0.0
    %3195 = vmatprep.subr.mxu0 0.0
    %3196 = vmatpush2.msra.mxu0 0.0
    %3197 = vmatprep.subr.mxu0 0.0
    %3198 = vmatpush2.msra.mxu0 0.0
    %3199 = vmatprep.subr.mxu0 0.0
    %3200 = vmatpush2.msra.mxu0 0.0
    %3201 = vmatprep.subr.mxu0 0.0
    %3202 = vmatpush2.msra.mxu0 0.0
    %3203 = vmatprep.mubr.f32.mxu0 0.0
    %3204 = vmatmul.mubr.f32.gmra.mxu0 %v2620
    %v3205 = vpop.f32.mrf.mxu0
    %v3206 = vadd.f32 %v3121, %v3205
    %v3207 = vpop.f32.mrf.mxu0
    %3208 = vmatprep.mubr.f32.mxu0 0.0
    %3209 = vmatmul.mubr.f32.gmra.mxu0 %v2629
    %v3210 = vpop.f32.mrf.mxu0
    %v3211 = vadd.f32 %v3126, %v3210
    %v3212 = vpop.f32.mrf.mxu0
    %3213 = vmatprep.mubr.f32.mxu0 0.0
    %3214 = vmatmul.mubr.f32.gmra.mxu0 %v2638
    %v3215 = vpop.f32.mrf.mxu0
    %v3216 = vadd.f32 %v3131, %v3215
    %v3217 = vpop.f32.mrf.mxu0
    %3218 = vmatprep.mubr.f32.mxu0 0.0
    %3219 = vmatmul.mubr.f32.gmra.mxu0 %v2647
    %v3220 = vpop.f32.mrf.mxu0
    %v3221 = vadd.f32 %v3136, %v3220
    %v3222 = vpop.f32.mrf.mxu0
    %3223 = vdwg.mxu0
    %v3224 = vmax.f32 %v3206, 0.0
    %v3225 = vmax.f32 %v3211, 0.0
    %v3226 = vmax.f32 %v3216, 0.0
    %v3227 = vmax.f32 %v3221, 0.0
    %v3228 = vld [vmem:[%s8] sm:$0xff]
    %v3229 = vld [vmem:[%s8 + $0x8] sm:$0xff]
    %v3230 = vld [vmem:[%s8 + $0x10] sm:$0xff]
    %v3231 = vld [vmem:[%s8 + $0x18] sm:$0xff]
    %v3232 = vld [vmem:[%s8 + $0x20] sm:$0xff]
    %v3233 = vld [vmem:[%s8 + $0x28] sm:$0xff]
    %v3234 = vld [vmem:[%s8 + $0x30] sm:$0xff]
    %v3235 = vld [vmem:[%s8 + $0x38] sm:$0xff]
    %v3236 = vld [vmem:[%s8 + $0x40] sm:$0xff]
    %v3237 = vld [vmem:[%s8 + $0x48] sm:$0xff]
    %v3238 = vld [vmem:[%s8 + $0x50] sm:$0xff]
    %v3239 = vld [vmem:[%s8 + $0x58] sm:$0xff]
    %v3240 = vld [vmem:[%s8 + $0x60] sm:$0xff]
    %v3241 = vld [vmem:[%s8 + $0x68] sm:$0xff]
    %v3242 = vld [vmem:[%s8 + $0x70] sm:$0xff]
    %v3243 = vld [vmem:[%s8 + $0x78] sm:$0xff]
    %v3245 = vsel %vm140, %v3228, 0
    %v3248 = vsel %vm140, %v3229, 0
    %v3251 = vsel %vm140, %v3230, 0
    %v3254 = vsel %vm140, %v3231, 0
    %v3257 = vsel %vm140, %v3232, 0
    %v3260 = vsel %vm140, %v3233, 0
    %v3263 = vsel %vm140, %v3234, 0
    %v3266 = vsel %vm140, %v3235, 0
    %v3269 = vsel %vm140, %v3236, 0
    %v3272 = vsel %vm140, %v3237, 0
    %v3275 = vsel %vm140, %v3238, 0
    %v3278 = vsel %vm140, %v3239, 0
    %v3281 = vsel %vm140, %v3240, 0
    %v3284 = vsel %vm140, %v3241, 0
    %v3287 = vsel %vm140, %v3242, 0
    %v3290 = vsel %vm140, %v3243, 0
    %3292 = vmatprep.subr.mxu0 0.0
    %3293 = vmatpush1.msra.mxu0 0.0
    %3294 = vmatprep.subr.mxu0 0.0
    %3295 = vmatpush1.msra.mxu0 0.0
    %3296 = vmatprep.subr.mxu0 0.0
    %3297 = vmatpush1.msra.mxu0 0.0
    %3298 = vmatprep.subr.mxu0 0.0
    %3299 = vmatpush1.msra.mxu0 0.0
    %3300 = vmatprep.subr.mxu0 0.0
    %3301 = vmatpush1.msra.mxu0 0.0
    %3302 = vmatprep.subr.mxu0 0.0
    %3303 = vmatpush1.msra.mxu0 0.0
    %3304 = vmatprep.subr.mxu0 0.0
    %3305 = vmatpush1.msra.mxu0 0.0
    %3306 = vmatprep.subr.mxu0 0.0
    %3307 = vmatpush1.msra.mxu0 0.0
    %3308 = vmatprep.subr.mxu0 0.0
    %3309 = vmatpush1.msra.mxu0 0.0
    %3310 = vmatprep.subr.mxu0 0.0
    %3311 = vmatpush1.msra.mxu0 0.0
    %3312 = vmatprep.subr.mxu0 0.0
    %3313 = vmatpush1.msra.mxu0 0.0
    %3314 = vmatprep.subr.mxu0 0.0
    %3315 = vmatpush1.msra.mxu0 0.0
    %3316 = vmatprep.subr.mxu0 0.0
    %3317 = vmatpush1.msra.mxu0 %v3227
    %3318 = vmatprep.subr.mxu0 0.0
    %3319 = vmatpush1.msra.mxu0 %v3226
    %3320 = vmatprep.subr.mxu0 0.0
    %3321 = vmatpush1.msra.mxu0 %v3225
    %3322 = vmatprep.subr.mxu0 0.0
    %3323 = vmatpush1.msra.mxu0 %v3224
    %3324 = vmatprep.subr.mxu0 0.0
    %3325 = vmatpush2.msra.mxu0 0.0
    %3326 = vmatprep.subr.mxu0 0.0
    %3327 = vmatpush2.msra.mxu0 0.0
    %3328 = vmatprep.subr.mxu0 0.0
    %3329 = vmatpush2.msra.mxu0 0.0
    %3330 = vmatprep.subr.mxu0 0.0
    %3331 = vmatpush2.msra.mxu0 0.0
    %3332 = vmatprep.subr.mxu0 0.0
    %3333 = vmatpush2.msra.mxu0 0.0
    %3334 = vmatprep.subr.mxu0 0.0
    %3335 = vmatpush2.msra.mxu0 0.0
    %3336 = vmatprep.subr.mxu0 0.0
    %3337 = vmatpush2.msra.mxu0 0.0
    %3338 = vmatprep.subr.mxu0 0.0
    %3339 = vmatpush2.msra.mxu0 0.0
    %3340 = vmatprep.subr.mxu0 0.0
    %3341 = vmatpush2.msra.mxu0 0.0
    %3342 = vmatprep.subr.mxu0 0.0
    %3343 = vmatpush2.msra.mxu0 0.0
    %3344 = vmatprep.subr.mxu0 0.0
    %3345 = vmatpush2.msra.mxu0 0.0
    %3346 = vmatprep.subr.mxu0 0.0
    %3347 = vmatpush2.msra.mxu0 0.0
    %3348 = vmatprep.subr.mxu0 0.0
    %3349 = vmatpush2.msra.mxu0 0.0
    %3350 = vmatprep.subr.mxu0 0.0
    %3351 = vmatpush2.msra.mxu0 0.0
    %3352 = vmatprep.subr.mxu0 0.0
    %3353 = vmatpush2.msra.mxu0 0.0
    %3354 = vmatprep.subr.mxu0 0.0
    %3355 = vmatpush2.msra.mxu0 0.0
    %3356 = vmatprep.mubr.f32.mxu0 0.0
    %3357 = vmatmul.mubr.f32.gmra.mxu0 %v3245
    %v3358 = vpop.f32.mrf.mxu0
    %v3359 = vadd.f32 0.0, %v3358
    %v3360 = vpop.f32.mrf.mxu0
    %3361 = vmatprep.mubr.f32.mxu0 0.0
    %3362 = vmatmul.mubr.f32.gmra.mxu0 %v3248
    %v3363 = vpop.f32.mrf.mxu0
    %v3364 = vadd.f32 0.0, %v3363
    %v3365 = vpop.f32.mrf.mxu0
    %3366 = vmatprep.mubr.f32.mxu0 0.0
    %3367 = vmatmul.mubr.f32.gmra.mxu0 %v3251
    %v3368 = vpop.f32.mrf.mxu0
    %v3369 = vadd.f32 0.0, %v3368
    %v3370 = vpop.f32.mrf.mxu0
    %3371 = vmatprep.mubr.f32.mxu0 0.0
    %3372 = vmatmul.mubr.f32.gmra.mxu0 %v3254
    %v3373 = vpop.f32.mrf.mxu0
    %v3374 = vadd.f32 0.0, %v3373
    %v3375 = vpop.f32.mrf.mxu0
    %3376 = vmatprep.mubr.f32.mxu0 0.0
    %3377 = vmatmul.mubr.f32.gmra.mxu0 %v3257
    %v3378 = vpop.f32.mrf.mxu0
    %v3379 = vadd.f32 0.0, %v3378
    %v3380 = vpop.f32.mrf.mxu0
    %3381 = vmatprep.mubr.f32.mxu0 0.0
    %3382 = vmatmul.mubr.f32.gmra.mxu0 %v3260
    %v3383 = vpop.f32.mrf.mxu0
    %v3384 = vadd.f32 0.0, %v3383
    %v3385 = vpop.f32.mrf.mxu0
    %3386 = vmatprep.mubr.f32.mxu0 0.0
    %3387 = vmatmul.mubr.f32.gmra.mxu0 %v3263
    %v3388 = vpop.f32.mrf.mxu0
    %v3389 = vadd.f32 0.0, %v3388
    %v3390 = vpop.f32.mrf.mxu0
    %3391 = vmatprep.mubr.f32.mxu0 0.0
    %3392 = vmatmul.mubr.f32.gmra.mxu0 %v3266
    %v3393 = vpop.f32.mrf.mxu0
    %v3394 = vadd.f32 0.0, %v3393
    %v3395 = vpop.f32.mrf.mxu0
    %3396 = vmatprep.mubr.f32.mxu0 0.0
    %3397 = vmatmul.mubr.f32.gmra.mxu0 %v3269
    %v3398 = vpop.f32.mrf.mxu0
    %v3399 = vadd.f32 0.0, %v3398
    %v3400 = vpop.f32.mrf.mxu0
    %3401 = vmatprep.mubr.f32.mxu0 0.0
    %3402 = vmatmul.mubr.f32.gmra.mxu0 %v3272
    %v3403 = vpop.f32.mrf.mxu0
    %v3404 = vadd.f32 0.0, %v3403
    %v3405 = vpop.f32.mrf.mxu0
    %3406 = vmatprep.mubr.f32.mxu0 0.0
    %3407 = vmatmul.mubr.f32.gmra.mxu0 %v3275
    %v3408 = vpop.f32.mrf.mxu0
    %v3409 = vadd.f32 0.0, %v3408
    %v3410 = vpop.f32.mrf.mxu0
    %3411 = vmatprep.mubr.f32.mxu0 0.0
    %3412 = vmatmul.mubr.f32.gmra.mxu0 %v3278
    %v3413 = vpop.f32.mrf.mxu0
    %v3414 = vadd.f32 0.0, %v3413
    %v3415 = vpop.f32.mrf.mxu0
    %3416 = vmatprep.mubr.f32.mxu0 0.0
    %3417 = vmatmul.mubr.f32.gmra.mxu0 %v3281
    %v3418 = vpop.f32.mrf.mxu0
    %v3419 = vadd.f32 0.0, %v3418
    %v3420 = vpop.f32.mrf.mxu0
    %3421 = vmatprep.mubr.f32.mxu0 0.0
    %3422 = vmatmul.mubr.f32.gmra.mxu0 %v3284
    %v3423 = vpop.f32.mrf.mxu0
    %v3424 = vadd.f32 0.0, %v3423
    %v3425 = vpop.f32.mrf.mxu0
    %3426 = vmatprep.mubr.f32.mxu0 0.0
    %3427 = vmatmul.mubr.f32.gmra.mxu0 %v3287
    %v3428 = vpop.f32.mrf.mxu0
    %v3429 = vadd.f32 0.0, %v3428
    %v3430 = vpop.f32.mrf.mxu0
    %3431 = vmatprep.mubr.f32.mxu0 0.0
    %3432 = vmatmul.mubr.f32.gmra.mxu0 %v3290
    %v3433 = vpop.f32.mrf.mxu0
    %v3434 = vadd.f32 0.0, %v3433
    %v3435 = vpop.f32.mrf.mxu0
    %3436 = vdwg.mxu0
    %3437 = vst [vmem:[#allocation3] sm:$0xff] %v3359
    %3438 = vst [vmem:[#allocation3 + $0x8] sm:$0xff] %v3364
    %3439 = vst [vmem:[#allocation3 + $0x10] sm:$0xff] %v3369
    %3440 = vst [vmem:[#allocation3 + $0x18] sm:$0xff] %v3374
    %3441 = vst [vmem:[#allocation3 + $0x20] sm:$0xff] %v3379
    %3442 = vst [vmem:[#allocation3 + $0x28] sm:$0xff] %v3384
    %3443 = vst [vmem:[#allocation3 + $0x30] sm:$0xff] %v3389
    %3444 = vst [vmem:[#allocation3 + $0x38] sm:$0xff] %v3394
    %3445 = vst [vmem:[#allocation3 + $0x40] sm:$0xff] %v3399
    %3446 = vst [vmem:[#allocation3 + $0x48] sm:$0xff] %v3404
    %3447 = vst [vmem:[#allocation3 + $0x50] sm:$0xff] %v3409
    %3448 = vst [vmem:[#allocation3 + $0x58] sm:$0xff] %v3414
    %3449 = vst [vmem:[#allocation3 + $0x60] sm:$0xff] %v3419
    %3450 = vst [vmem:[#allocation3 + $0x68] sm:$0xff] %v3424
    %3451 = vst [vmem:[#allocation3 + $0x70] sm:$0xff] %v3429
    %3452 = vst [vmem:[#allocation3 + $0x78] sm:$0xff] %v3434
    %v3453 = vld [vmem:[#allocation3] sm:$0xff]
    %v3454 = vld [vmem:[#allocation3 + $0x8] sm:$0xff]
    %v3455 = vld [vmem:[#allocation3 + $0x10] sm:$0xff]
    %v3456 = vld [vmem:[#allocation3 + $0x18] sm:$0xff]
    %v3457 = vld [vmem:[#allocation3 + $0x20] sm:$0xff]
    %v3458 = vld [vmem:[#allocation3 + $0x28] sm:$0xff]
    %v3459 = vld [vmem:[#allocation3 + $0x30] sm:$0xff]
    %v3460 = vld [vmem:[#allocation3 + $0x38] sm:$0xff]
    %v3461 = vld [vmem:[#allocation3 + $0x40] sm:$0xff]
    %v3462 = vld [vmem:[#allocation3 + $0x48] sm:$0xff]
    %v3463 = vld [vmem:[#allocation3 + $0x50] sm:$0xff]
    %v3464 = vld [vmem:[#allocation3 + $0x58] sm:$0xff]
    %v3465 = vld [vmem:[#allocation3 + $0x60] sm:$0xff]
    %v3466 = vld [vmem:[#allocation3 + $0x68] sm:$0xff]
    %v3467 = vld [vmem:[#allocation3 + $0x70] sm:$0xff]
    %v3468 = vld [vmem:[#allocation3 + $0x78] sm:$0xff]
    %v3469 = vld [vmem:[#allocation10] sm:$0xff]
    %v3470 = vld [vmem:[#allocation10 + $0x8] sm:$0xff]
    %v3471 = vld [vmem:[#allocation10 + $0x10] sm:$0xff]
    %v3472 = vld [vmem:[#allocation10 + $0x18] sm:$0xff]
    %v3473 = vld [vmem:[#allocation10 + $0x20] sm:$0xff]
    %v3474 = vld [vmem:[#allocation10 + $0x28] sm:$0xff]
    %v3475 = vld [vmem:[#allocation10 + $0x30] sm:$0xff]
    %v3476 = vld [vmem:[#allocation10 + $0x38] sm:$0xff]
    %v3477 = vld [vmem:[#allocation10 + $0x40] sm:$0xff]
    %v3478 = vld [vmem:[#allocation10 + $0x48] sm:$0xff]
    %v3479 = vld [vmem:[#allocation10 + $0x50] sm:$0xff]
    %v3480 = vld [vmem:[#allocation10 + $0x58] sm:$0xff]
    %v3481 = vld [vmem:[#allocation10 + $0x60] sm:$0xff]
    %v3482 = vld [vmem:[#allocation10 + $0x68] sm:$0xff]
    %v3483 = vld [vmem:[#allocation10 + $0x70] sm:$0xff]
    %v3484 = vld [vmem:[#allocation10 + $0x78] sm:$0xff]
    %v3485 = vld [vmem:[#allocation10 + $0x80] sm:$0xff]
    %v3486 = vld [vmem:[#allocation10 + $0x88] sm:$0xff]
    %v3487 = vld [vmem:[#allocation10 + $0x90] sm:$0xff]
    %v3488 = vld [vmem:[#allocation10 + $0x98] sm:$0xff]
    %v3489 = vld [vmem:[#allocation10 + $0xa0] sm:$0xff]
    %v3490 = vld [vmem:[#allocation10 + $0xa8] sm:$0xff]
    %v3491 = vld [vmem:[#allocation10 + $0xb0] sm:$0xff]
    %v3492 = vld [vmem:[#allocation10 + $0xb8] sm:$0xff]
    %v3493 = vld [vmem:[#allocation10 + $0xc0] sm:$0xff]
    %v3494 = vld [vmem:[#allocation10 + $0xc8] sm:$0xff]
    %v3495 = vld [vmem:[#allocation10 + $0xd0] sm:$0xff]
    %v3496 = vld [vmem:[#allocation10 + $0xd8] sm:$0xff]
    %v3497 = vld [vmem:[#allocation10 + $0xe0] sm:$0xff]
    %v3498 = vld [vmem:[#allocation10 + $0xe8] sm:$0xff]
    %v3499 = vld [vmem:[#allocation10 + $0xf0] sm:$0xff]
    %v3500 = vld [vmem:[#allocation10 + $0xf8] sm:$0xff]
    %v3501 = vld [vmem:[#allocation10 + $0x100] sm:$0xff]
    %v3502 = vld [vmem:[#allocation10 + $0x108] sm:$0xff]
    %v3503 = vld [vmem:[#allocation10 + $0x110] sm:$0xff]
    %v3504 = vld [vmem:[#allocation10 + $0x118] sm:$0xff]
    %v3505 = vld [vmem:[#allocation10 + $0x120] sm:$0xff]
    %v3506 = vld [vmem:[#allocation10 + $0x128] sm:$0xff]
    %v3507 = vld [vmem:[#allocation10 + $0x130] sm:$0xff]
    %v3508 = vld [vmem:[#allocation10 + $0x138] sm:$0xff]
    %v3509 = vld [vmem:[#allocation10 + $0x140] sm:$0xff]
    %v3510 = vld [vmem:[#allocation10 + $0x148] sm:$0xff]
    %v3511 = vld [vmem:[#allocation10 + $0x150] sm:$0xff]
    %v3512 = vld [vmem:[#allocation10 + $0x158] sm:$0xff]
    %v3513 = vld [vmem:[#allocation10 + $0x160] sm:$0xff]
    %v3514 = vld [vmem:[#allocation10 + $0x168] sm:$0xff]
    %v3515 = vld [vmem:[#allocation10 + $0x170] sm:$0xff]
    %v3516 = vld [vmem:[#allocation10 + $0x178] sm:$0xff]
    %v3517 = vld [vmem:[#allocation10 + $0x180] sm:$0xff]
    %v3518 = vld [vmem:[#allocation10 + $0x188] sm:$0xff]
    %v3519 = vld [vmem:[#allocation10 + $0x190] sm:$0xff]
    %v3520 = vld [vmem:[#allocation10 + $0x198] sm:$0xff]
    %v3521 = vld [vmem:[#allocation10 + $0x1a0] sm:$0xff]
    %v3522 = vld [vmem:[#allocation10 + $0x1a8] sm:$0xff]
    %v3523 = vld [vmem:[#allocation10 + $0x1b0] sm:$0xff]
    %v3524 = vld [vmem:[#allocation10 + $0x1b8] sm:$0xff]
    %v3525 = vld [vmem:[#allocation10 + $0x1c0] sm:$0xff]
    %v3526 = vld [vmem:[#allocation10 + $0x1c8] sm:$0xff]
    %v3527 = vld [vmem:[#allocation10 + $0x1d0] sm:$0xff]
    %v3528 = vld [vmem:[#allocation10 + $0x1d8] sm:$0xff]
    %v3529 = vld [vmem:[#allocation10 + $0x1e0] sm:$0xff]
    %v3530 = vld [vmem:[#allocation10 + $0x1e8] sm:$0xff]
    %v3531 = vld [vmem:[#allocation10 + $0x1f0] sm:$0xff]
    %v3532 = vld [vmem:[#allocation10 + $0x1f8] sm:$0xff]
    %v3533 = vld [vmem:[#allocation10 + $0x200] sm:$0xff]
    %v3534 = vld [vmem:[#allocation10 + $0x208] sm:$0xff]
    %v3535 = vld [vmem:[#allocation10 + $0x210] sm:$0xff]
    %v3536 = vld [vmem:[#allocation10 + $0x218] sm:$0xff]
    %v3537 = vld [vmem:[#allocation10 + $0x220] sm:$0xff]
    %v3538 = vld [vmem:[#allocation10 + $0x228] sm:$0xff]
    %v3539 = vld [vmem:[#allocation10 + $0x230] sm:$0xff]
    %v3540 = vld [vmem:[#allocation10 + $0x238] sm:$0xff]
    %v3541 = vld [vmem:[#allocation10 + $0x240] sm:$0xff]
    %v3542 = vld [vmem:[#allocation10 + $0x248] sm:$0xff]
    %v3543 = vld [vmem:[#allocation10 + $0x250] sm:$0xff]
    %v3544 = vld [vmem:[#allocation10 + $0x258] sm:$0xff]
    %v3545 = vld [vmem:[#allocation10 + $0x260] sm:$0xff]
    %v3546 = vld [vmem:[#allocation10 + $0x268] sm:$0xff]
    %v3547 = vld [vmem:[#allocation10 + $0x270] sm:$0xff]
    %v3548 = vld [vmem:[#allocation10 + $0x278] sm:$0xff]
    %v3549 = vld [vmem:[#allocation10 + $0x280] sm:$0xff]
    %v3550 = vld [vmem:[#allocation10 + $0x288] sm:$0xff]
    %v3551 = vld [vmem:[#allocation10 + $0x290] sm:$0xff]
    %v3552 = vld [vmem:[#allocation10 + $0x298] sm:$0xff]
    %v3553 = vld [vmem:[#allocation10 + $0x2a0] sm:$0xff]
    %v3554 = vld [vmem:[#allocation10 + $0x2a8] sm:$0xff]
    %v3555 = vld [vmem:[#allocation10 + $0x2b0] sm:$0xff]
    %v3556 = vld [vmem:[#allocation10 + $0x2b8] sm:$0xff]
    %v3557 = vld [vmem:[#allocation10 + $0x2c0] sm:$0xff]
    %v3558 = vld [vmem:[#allocation10 + $0x2c8] sm:$0xff]
    %v3559 = vld [vmem:[#allocation10 + $0x2d0] sm:$0xff]
    %v3560 = vld [vmem:[#allocation10 + $0x2d8] sm:$0xff]
    %v3561 = vld [vmem:[#allocation10 + $0x2e0] sm:$0xff]
    %v3562 = vld [vmem:[#allocation10 + $0x2e8] sm:$0xff]
    %v3563 = vld [vmem:[#allocation10 + $0x2f0] sm:$0xff]
    %v3564 = vld [vmem:[#allocation10 + $0x2f8] sm:$0xff]
    %v3565 = vld [vmem:[#allocation10 + $0x300] sm:$0xff]
    %v3566 = vld [vmem:[#allocation10 + $0x308] sm:$0xff]
    %v3567 = vld [vmem:[#allocation10 + $0x310] sm:$0xff]
    %v3568 = vld [vmem:[#allocation10 + $0x318] sm:$0xff]
    %v3569 = vld [vmem:[#allocation10 + $0x320] sm:$0xff]
    %v3570 = vld [vmem:[#allocation10 + $0x328] sm:$0xff]
    %v3571 = vld [vmem:[#allocation10 + $0x330] sm:$0xff]
    %v3572 = vld [vmem:[#allocation10 + $0x338] sm:$0xff]
    %v3573 = vld [vmem:[#allocation10 + $0x340] sm:$0xff]
    %v3574 = vld [vmem:[#allocation10 + $0x348] sm:$0xff]
    %v3575 = vld [vmem:[#allocation10 + $0x350] sm:$0xff]
    %v3576 = vld [vmem:[#allocation10 + $0x358] sm:$0xff]
    %v3577 = vld [vmem:[#allocation10 + $0x360] sm:$0xff]
    %v3578 = vld [vmem:[#allocation10 + $0x368] sm:$0xff]
    %v3579 = vld [vmem:[#allocation10 + $0x370] sm:$0xff]
    %v3580 = vld [vmem:[#allocation10 + $0x378] sm:$0xff]
    %v3581 = vld [vmem:[#allocation10 + $0x380] sm:$0xff]
    %v3582 = vld [vmem:[#allocation10 + $0x388] sm:$0xff]
    %v3583 = vld [vmem:[#allocation10 + $0x390] sm:$0xff]
    %v3584 = vld [vmem:[#allocation10 + $0x398] sm:$0xff]
    %v3585 = vld [vmem:[#allocation10 + $0x3a0] sm:$0xff]
    %v3586 = vld [vmem:[#allocation10 + $0x3a8] sm:$0xff]
    %v3587 = vld [vmem:[#allocation10 + $0x3b0] sm:$0xff]
    %v3588 = vld [vmem:[#allocation10 + $0x3b8] sm:$0xff]
    %v3589 = vld [vmem:[#allocation10 + $0x3c0] sm:$0xff]
    %v3590 = vld [vmem:[#allocation10 + $0x3c8] sm:$0xff]
    %v3591 = vld [vmem:[#allocation10 + $0x3d0] sm:$0xff]
    %v3592 = vld [vmem:[#allocation10 + $0x3d8] sm:$0xff]
    %v3593 = vld [vmem:[#allocation10 + $0x3e0] sm:$0xff]
    %v3594 = vld [vmem:[#allocation10 + $0x3e8] sm:$0xff]
    %v3595 = vld [vmem:[#allocation10 + $0x3f0] sm:$0xff]
    %v3596 = vld [vmem:[#allocation10 + $0x3f8] sm:$0xff]
    %v3597 = vld [vmem:[#allocation10 + $0x400] sm:$0xff]
    %v3598 = vld [vmem:[#allocation10 + $0x408] sm:$0xff]
    %v3599 = vld [vmem:[#allocation10 + $0x410] sm:$0xff]
    %v3600 = vld [vmem:[#allocation10 + $0x418] sm:$0xff]
    %v3601 = vld [vmem:[#allocation10 + $0x420] sm:$0xff]
    %v3602 = vld [vmem:[#allocation10 + $0x428] sm:$0xff]
    %v3603 = vld [vmem:[#allocation10 + $0x430] sm:$0xff]
    %v3604 = vld [vmem:[#allocation10 + $0x438] sm:$0xff]
    %v3605 = vld [vmem:[#allocation10 + $0x440] sm:$0xff]
    %v3606 = vld [vmem:[#allocation10 + $0x448] sm:$0xff]
    %v3607 = vld [vmem:[#allocation10 + $0x450] sm:$0xff]
    %v3608 = vld [vmem:[#allocation10 + $0x458] sm:$0xff]
    %v3609 = vld [vmem:[#allocation10 + $0x460] sm:$0xff]
    %v3610 = vld [vmem:[#allocation10 + $0x468] sm:$0xff]
    %v3611 = vld [vmem:[#allocation10 + $0x470] sm:$0xff]
    %v3612 = vld [vmem:[#allocation10 + $0x478] sm:$0xff]
    %v3613 = vld [vmem:[#allocation10 + $0x480] sm:$0xff]
    %v3614 = vld [vmem:[#allocation10 + $0x488] sm:$0xff]
    %v3615 = vld [vmem:[#allocation10 + $0x490] sm:$0xff]
    %v3616 = vld [vmem:[#allocation10 + $0x498] sm:$0xff]
    %v3617 = vld [vmem:[#allocation10 + $0x4a0] sm:$0xff]
    %v3618 = vld [vmem:[#allocation10 + $0x4a8] sm:$0xff]
    %v3619 = vld [vmem:[#allocation10 + $0x4b0] sm:$0xff]
    %v3620 = vld [vmem:[#allocation10 + $0x4b8] sm:$0xff]
    %v3621 = vld [vmem:[#allocation10 + $0x4c0] sm:$0xff]
    %v3622 = vld [vmem:[#allocation10 + $0x4c8] sm:$0xff]
    %v3623 = vld [vmem:[#allocation10 + $0x4d0] sm:$0xff]
    %v3624 = vld [vmem:[#allocation10 + $0x4d8] sm:$0xff]
    %v3625 = vld [vmem:[#allocation10 + $0x4e0] sm:$0xff]
    %v3626 = vld [vmem:[#allocation10 + $0x4e8] sm:$0xff]
    %v3627 = vld [vmem:[#allocation10 + $0x4f0] sm:$0xff]
    %v3628 = vld [vmem:[#allocation10 + $0x4f8] sm:$0xff]
    %v3629 = vld [vmem:[#allocation10 + $0x500] sm:$0xff]
    %v3630 = vld [vmem:[#allocation10 + $0x508] sm:$0xff]
    %v3631 = vld [vmem:[#allocation10 + $0x510] sm:$0xff]
    %v3632 = vld [vmem:[#allocation10 + $0x518] sm:$0xff]
    %v3633 = vld [vmem:[#allocation10 + $0x520] sm:$0xff]
    %v3634 = vld [vmem:[#allocation10 + $0x528] sm:$0xff]
    %v3635 = vld [vmem:[#allocation10 + $0x530] sm:$0xff]
    %v3636 = vld [vmem:[#allocation10 + $0x538] sm:$0xff]
    %v3637 = vld [vmem:[#allocation10 + $0x540] sm:$0xff]
    %v3638 = vld [vmem:[#allocation10 + $0x548] sm:$0xff]
    %v3639 = vld [vmem:[#allocation10 + $0x550] sm:$0xff]
    %v3640 = vld [vmem:[#allocation10 + $0x558] sm:$0xff]
    %v3641 = vld [vmem:[#allocation10 + $0x560] sm:$0xff]
    %v3642 = vld [vmem:[#allocation10 + $0x568] sm:$0xff]
    %v3643 = vld [vmem:[#allocation10 + $0x570] sm:$0xff]
    %v3644 = vld [vmem:[#allocation10 + $0x578] sm:$0xff]
    %v3645 = vld [vmem:[#allocation10 + $0x580] sm:$0xff]
    %v3646 = vld [vmem:[#allocation10 + $0x588] sm:$0xff]
    %v3647 = vld [vmem:[#allocation10 + $0x590] sm:$0xff]
    %v3648 = vld [vmem:[#allocation10 + $0x598] sm:$0xff]
    %v3649 = vld [vmem:[#allocation10 + $0x5a0] sm:$0xff]
    %v3650 = vld [vmem:[#allocation10 + $0x5a8] sm:$0xff]
    %v3651 = vld [vmem:[#allocation10 + $0x5b0] sm:$0xff]
    %v3652 = vld [vmem:[#allocation10 + $0x5b8] sm:$0xff]
    %v3653 = vld [vmem:[#allocation10 + $0x5c0] sm:$0xff]
    %v3654 = vld [vmem:[#allocation10 + $0x5c8] sm:$0xff]
    %v3655 = vld [vmem:[#allocation10 + $0x5d0] sm:$0xff]
    %v3656 = vld [vmem:[#allocation10 + $0x5d8] sm:$0xff]
    %v3657 = vld [vmem:[#allocation10 + $0x5e0] sm:$0xff]
    %v3658 = vld [vmem:[#allocation10 + $0x5e8] sm:$0xff]
    %v3659 = vld [vmem:[#allocation10 + $0x5f0] sm:$0xff]
    %v3660 = vld [vmem:[#allocation10 + $0x5f8] sm:$0xff]
    %v3661 = vld [vmem:[#allocation10 + $0x600] sm:$0xff]
    %v3662 = vld [vmem:[#allocation10 + $0x608] sm:$0xff]
    %v3663 = vld [vmem:[#allocation10 + $0x610] sm:$0xff]
    %v3664 = vld [vmem:[#allocation10 + $0x618] sm:$0xff]
    %v3665 = vld [vmem:[#allocation10 + $0x620] sm:$0xff]
    %v3666 = vld [vmem:[#allocation10 + $0x628] sm:$0xff]
    %v3667 = vld [vmem:[#allocation10 + $0x630] sm:$0xff]
    %v3668 = vld [vmem:[#allocation10 + $0x638] sm:$0xff]
    %v3669 = vld [vmem:[#allocation10 + $0x640] sm:$0xff]
    %v3670 = vld [vmem:[#allocation10 + $0x648] sm:$0xff]
    %v3671 = vld [vmem:[#allocation10 + $0x650] sm:$0xff]
    %v3672 = vld [vmem:[#allocation10 + $0x658] sm:$0xff]
    %v3673 = vld [vmem:[#allocation10 + $0x660] sm:$0xff]
    %v3674 = vld [vmem:[#allocation10 + $0x668] sm:$0xff]
    %v3675 = vld [vmem:[#allocation10 + $0x670] sm:$0xff]
    %v3676 = vld [vmem:[#allocation10 + $0x678] sm:$0xff]
    %v3677 = vld [vmem:[#allocation10 + $0x680] sm:$0xff]
    %v3678 = vld [vmem:[#allocation10 + $0x688] sm:$0xff]
    %v3679 = vld [vmem:[#allocation10 + $0x690] sm:$0xff]
    %v3680 = vld [vmem:[#allocation10 + $0x698] sm:$0xff]
    %v3681 = vld [vmem:[#allocation10 + $0x6a0] sm:$0xff]
    %v3682 = vld [vmem:[#allocation10 + $0x6a8] sm:$0xff]
    %v3683 = vld [vmem:[#allocation10 + $0x6b0] sm:$0xff]
    %v3684 = vld [vmem:[#allocation10 + $0x6b8] sm:$0xff]
    %v3685 = vld [vmem:[#allocation10 + $0x6c0] sm:$0xff]
    %v3686 = vld [vmem:[#allocation10 + $0x6c8] sm:$0xff]
    %v3687 = vld [vmem:[#allocation10 + $0x6d0] sm:$0xff]
    %v3688 = vld [vmem:[#allocation10 + $0x6d8] sm:$0xff]
    %v3689 = vld [vmem:[#allocation10 + $0x6e0] sm:$0xff]
    %v3690 = vld [vmem:[#allocation10 + $0x6e8] sm:$0xff]
    %v3691 = vld [vmem:[#allocation10 + $0x6f0] sm:$0xff]
    %v3692 = vld [vmem:[#allocation10 + $0x6f8] sm:$0xff]
    %v3693 = vld [vmem:[#allocation10 + $0x700] sm:$0xff]
    %v3694 = vld [vmem:[#allocation10 + $0x708] sm:$0xff]
    %v3695 = vld [vmem:[#allocation10 + $0x710] sm:$0xff]
    %v3696 = vld [vmem:[#allocation10 + $0x718] sm:$0xff]
    %v3697 = vld [vmem:[#allocation10 + $0x720] sm:$0xff]
    %v3698 = vld [vmem:[#allocation10 + $0x728] sm:$0xff]
    %v3699 = vld [vmem:[#allocation10 + $0x730] sm:$0xff]
    %v3700 = vld [vmem:[#allocation10 + $0x738] sm:$0xff]
    %v3701 = vld [vmem:[#allocation10 + $0x740] sm:$0xff]
    %v3702 = vld [vmem:[#allocation10 + $0x748] sm:$0xff]
    %v3703 = vld [vmem:[#allocation10 + $0x750] sm:$0xff]
    %v3704 = vld [vmem:[#allocation10 + $0x758] sm:$0xff]
    %v3705 = vld [vmem:[#allocation10 + $0x760] sm:$0xff]
    %v3706 = vld [vmem:[#allocation10 + $0x768] sm:$0xff]
    %v3707 = vld [vmem:[#allocation10 + $0x770] sm:$0xff]
    %v3708 = vld [vmem:[#allocation10 + $0x778] sm:$0xff]
    %v3709 = vld [vmem:[#allocation10 + $0x780] sm:$0xff]
    %v3710 = vld [vmem:[#allocation10 + $0x788] sm:$0xff]
    %v3711 = vld [vmem:[#allocation10 + $0x790] sm:$0xff]
    %v3712 = vld [vmem:[#allocation10 + $0x798] sm:$0xff]
    %v3713 = vld [vmem:[#allocation10 + $0x7a0] sm:$0xff]
    %v3714 = vld [vmem:[#allocation10 + $0x7a8] sm:$0xff]
    %v3715 = vld [vmem:[#allocation10 + $0x7b0] sm:$0xff]
    %v3716 = vld [vmem:[#allocation10 + $0x7b8] sm:$0xff]
    %v3717 = vld [vmem:[#allocation10 + $0x7c0] sm:$0xff]
    %v3718 = vld [vmem:[#allocation10 + $0x7c8] sm:$0xff]
    %v3719 = vld [vmem:[#allocation10 + $0x7d0] sm:$0xff]
    %v3720 = vld [vmem:[#allocation10 + $0x7d8] sm:$0xff]
    %v3721 = vld [vmem:[#allocation10 + $0x7e0] sm:$0xff]
    %v3722 = vld [vmem:[#allocation10 + $0x7e8] sm:$0xff]
    %v3723 = vld [vmem:[#allocation10 + $0x7f0] sm:$0xff]
    %v3724 = vld [vmem:[#allocation10 + $0x7f8] sm:$0xff]
    %v3725 = vld [vmem:[%s10] sm:$0x1]
    %v3727 = vlaneseq
    %v3728 = vshrl.u32 %v3727, 7
    %v3729 = vsub.s32 0, %v3728
    %v3730 = vrot.slane %v3725, %v3729
    %3732 = vmatprep.subr.mxu0 0.0
    %3733 = vmatpush1.msra.mxu0 %v3484
    %3734 = vmatprep.subr.mxu0 0.0
    %3735 = vmatpush1.msra.mxu0 %v3483
    %3736 = vmatprep.subr.mxu0 0.0
    %3737 = vmatpush1.msra.mxu0 %v3482
    %3738 = vmatprep.subr.mxu0 0.0
    %3739 = vmatpush1.msra.mxu0 %v3481
    %3740 = vmatprep.subr.mxu0 0.0
    %3741 = vmatpush1.msra.mxu0 %v3480
    %3742 = vmatprep.subr.mxu0 0.0
    %3743 = vmatpush1.msra.mxu0 %v3479
    %3744 = vmatprep.subr.mxu0 0.0
    %3745 = vmatpush1.msra.mxu0 %v3478
    %3746 = vmatprep.subr.mxu0 0.0
    %3747 = vmatpush1.msra.mxu0 %v3477
    %3748 = vmatprep.subr.mxu0 0.0
    %3749 = vmatpush1.msra.mxu0 %v3476
    %3750 = vmatprep.subr.mxu0 0.0
    %3751 = vmatpush1.msra.mxu0 %v3475
    %3752 = vmatprep.subr.mxu0 0.0
    %3753 = vmatpush1.msra.mxu0 %v3474
    %3754 = vmatprep.subr.mxu0 0.0
    %3755 = vmatpush1.msra.mxu0 %v3473
    %3756 = vmatprep.subr.mxu0 0.0
    %3757 = vmatpush1.msra.mxu0 %v3472
    %3758 = vmatprep.subr.mxu0 0.0
    %3759 = vmatpush1.msra.mxu0 %v3471
    %3760 = vmatprep.subr.mxu0 0.0
    %3761 = vmatpush1.msra.mxu0 %v3470
    %3762 = vmatprep.subr.mxu0 0.0
    %3763 = vmatpush1.msra.mxu0 %v3469
    %3764 = vmatprep.subr.mxu0 0.0
    %3765 = vmatpush2.msra.mxu0 %v3500
    %3766 = vmatprep.subr.mxu0 0.0
    %3767 = vmatpush2.msra.mxu0 %v3499
    %3768 = vmatprep.subr.mxu0 0.0
    %3769 = vmatpush2.msra.mxu0 %v3498
    %3770 = vmatprep.subr.mxu0 0.0
    %3771 = vmatpush2.msra.mxu0 %v3497
    %3772 = vmatprep.subr.mxu0 0.0
    %3773 = vmatpush2.msra.mxu0 %v3496
    %3774 = vmatprep.subr.mxu0 0.0
    %3775 = vmatpush2.msra.mxu0 %v3495
    %3776 = vmatprep.subr.mxu0 0.0
    %3777 = vmatpush2.msra.mxu0 %v3494
    %3778 = vmatprep.subr.mxu0 0.0
    %3779 = vmatpush2.msra.mxu0 %v3493
    %3780 = vmatprep.subr.mxu0 0.0
    %3781 = vmatpush2.msra.mxu0 %v3492
    %3782 = vmatprep.subr.mxu0 0.0
    %3783 = vmatpush2.msra.mxu0 %v3491
    %3784 = vmatprep.subr.mxu0 0.0
    %3785 = vmatpush2.msra.mxu0 %v3490
    %3786 = vmatprep.subr.mxu0 0.0
    %3787 = vmatpush2.msra.mxu0 %v3489
    %3788 = vmatprep.subr.mxu0 0.0
    %3789 = vmatpush2.msra.mxu0 %v3488
    %3790 = vmatprep.subr.mxu0 0.0
    %3791 = vmatpush2.msra.mxu0 %v3487
    %3792 = vmatprep.subr.mxu0 0.0
    %3793 = vmatpush2.msra.mxu0 %v3486
    %3794 = vmatprep.subr.mxu0 0.0
    %3795 = vmatpush2.msra.mxu0 %v3485
    %3796 = vmatprep.mubr.f32.mxu0 %v3454
    %3797 = vmatmul.mubr.f32.gmra.mxu0 %v3453
    %v3798 = vpop.f32.mrf.mxu0
    %v3799 = vadd.f32 %v3730, %v3798
    %v3800 = vpop.f32.mrf.mxu0
    %3801 = vdwg.mxu0
    %3802 = vmatprep.subr.mxu0 0.0
    %3803 = vmatpush1.msra.mxu0 %v3516
    %3804 = vmatprep.subr.mxu0 0.0
    %3805 = vmatpush1.msra.mxu0 %v3515
    %3806 = vmatprep.subr.mxu0 0.0
    %3807 = vmatpush1.msra.mxu0 %v3514
    %3808 = vmatprep.subr.mxu0 0.0
    %3809 = vmatpush1.msra.mxu0 %v3513
    %3810 = vmatprep.subr.mxu0 0.0
    %3811 = vmatpush1.msra.mxu0 %v3512
    %3812 = vmatprep.subr.mxu0 0.0
    %3813 = vmatpush1.msra.mxu0 %v3511
    %3814 = vmatprep.subr.mxu0 0.0
    %3815 = vmatpush1.msra.mxu0 %v3510
    %3816 = vmatprep.subr.mxu0 0.0
    %3817 = vmatpush1.msra.mxu0 %v3509
    %3818 = vmatprep.subr.mxu0 0.0
    %3819 = vmatpush1.msra.mxu0 %v3508
    %3820 = vmatprep.subr.mxu0 0.0
    %3821 = vmatpush1.msra.mxu0 %v3507
    %3822 = vmatprep.subr.mxu0 0.0
    %3823 = vmatpush1.msra.mxu0 %v3506
    %3824 = vmatprep.subr.mxu0 0.0
    %3825 = vmatpush1.msra.mxu0 %v3505
    %3826 = vmatprep.subr.mxu0 0.0
    %3827 = vmatpush1.msra.mxu0 %v3504
    %3828 = vmatprep.subr.mxu0 0.0
    %3829 = vmatpush1.msra.mxu0 %v3503
    %3830 = vmatprep.subr.mxu0 0.0
    %3831 = vmatpush1.msra.mxu0 %v3502
    %3832 = vmatprep.subr.mxu0 0.0
    %3833 = vmatpush1.msra.mxu0 %v3501
    %3834 = vmatprep.subr.mxu0 0.0
    %3835 = vmatpush2.msra.mxu0 %v3532
    %3836 = vmatprep.subr.mxu0 0.0
    %3837 = vmatpush2.msra.mxu0 %v3531
    %3838 = vmatprep.subr.mxu0 0.0
    %3839 = vmatpush2.msra.mxu0 %v3530
    %3840 = vmatprep.subr.mxu0 0.0
    %3841 = vmatpush2.msra.mxu0 %v3529
    %3842 = vmatprep.subr.mxu0 0.0
    %3843 = vmatpush2.msra.mxu0 %v3528
    %3844 = vmatprep.subr.mxu0 0.0
    %3845 = vmatpush2.msra.mxu0 %v3527
    %3846 = vmatprep.subr.mxu0 0.0
    %3847 = vmatpush2.msra.mxu0 %v3526
    %3848 = vmatprep.subr.mxu0 0.0
    %3849 = vmatpush2.msra.mxu0 %v3525
    %3850 = vmatprep.subr.mxu0 0.0
    %3851 = vmatpush2.msra.mxu0 %v3524
    %3852 = vmatprep.subr.mxu0 0.0
    %3853 = vmatpush2.msra.mxu0 %v3523
    %3854 = vmatprep.subr.mxu0 0.0
    %3855 = vmatpush2.msra.mxu0 %v3522
    %3856 = vmatprep.subr.mxu0 0.0
    %3857 = vmatpush2.msra.mxu0 %v3521
    %3858 = vmatprep.subr.mxu0 0.0
    %3859 = vmatpush2.msra.mxu0 %v3520
    %3860 = vmatprep.subr.mxu0 0.0
    %3861 = vmatpush2.msra.mxu0 %v3519
    %3862 = vmatprep.subr.mxu0 0.0
    %3863 = vmatpush2.msra.mxu0 %v3518
    %3864 = vmatprep.subr.mxu0 0.0
    %3865 = vmatpush2.msra.mxu0 %v3517
    %3866 = vmatprep.mubr.f32.mxu0 %v3456
    %3867 = vmatmul.mubr.f32.gmra.mxu0 %v3455
    %v3868 = vpop.f32.mrf.mxu0
    %v3869 = vadd.f32 %v3799, %v3868
    %v3870 = vpop.f32.mrf.mxu0
    %3871 = vdwg.mxu0
    %3872 = vmatprep.subr.mxu0 0.0
    %3873 = vmatpush1.msra.mxu0 %v3548
    %3874 = vmatprep.subr.mxu0 0.0
    %3875 = vmatpush1.msra.mxu0 %v3547
    %3876 = vmatprep.subr.mxu0 0.0
    %3877 = vmatpush1.msra.mxu0 %v3546
    %3878 = vmatprep.subr.mxu0 0.0
    %3879 = vmatpush1.msra.mxu0 %v3545
    %3880 = vmatprep.subr.mxu0 0.0
    %3881 = vmatpush1.msra.mxu0 %v3544
    %3882 = vmatprep.subr.mxu0 0.0
    %3883 = vmatpush1.msra.mxu0 %v3543
    %3884 = vmatprep.subr.mxu0 0.0
    %3885 = vmatpush1.msra.mxu0 %v3542
    %3886 = vmatprep.subr.mxu0 0.0
    %3887 = vmatpush1.msra.mxu0 %v3541
    %3888 = vmatprep.subr.mxu0 0.0
    %3889 = vmatpush1.msra.mxu0 %v3540
    %3890 = vmatprep.subr.mxu0 0.0
    %3891 = vmatpush1.msra.mxu0 %v3539
    %3892 = vmatprep.subr.mxu0 0.0
    %3893 = vmatpush1.msra.mxu0 %v3538
    %3894 = vmatprep.subr.mxu0 0.0
    %3895 = vmatpush1.msra.mxu0 %v3537
    %3896 = vmatprep.subr.mxu0 0.0
    %3897 = vmatpush1.msra.mxu0 %v3536
    %3898 = vmatprep.subr.mxu0 0.0
    %3899 = vmatpush1.msra.mxu0 %v3535
    %3900 = vmatprep.subr.mxu0 0.0
    %3901 = vmatpush1.msra.mxu0 %v3534
    %3902 = vmatprep.subr.mxu0 0.0
    %3903 = vmatpush1.msra.mxu0 %v3533
    %3904 = vmatprep.subr.mxu0 0.0
    %3905 = vmatpush2.msra.mxu0 %v3564
    %3906 = vmatprep.subr.mxu0 0.0
    %3907 = vmatpush2.msra.mxu0 %v3563
    %3908 = vmatprep.subr.mxu0 0.0
    %3909 = vmatpush2.msra.mxu0 %v3562
    %3910 = vmatprep.subr.mxu0 0.0
    %3911 = vmatpush2.msra.mxu0 %v3561
    %3912 = vmatprep.subr.mxu0 0.0
    %3913 = vmatpush2.msra.mxu0 %v3560
    %3914 = vmatprep.subr.mxu0 0.0
    %3915 = vmatpush2.msra.mxu0 %v3559
    %3916 = vmatprep.subr.mxu0 0.0
    %3917 = vmatpush2.msra.mxu0 %v3558
    %3918 = vmatprep.subr.mxu0 0.0
    %3919 = vmatpush2.msra.mxu0 %v3557
    %3920 = vmatprep.subr.mxu0 0.0
    %3921 = vmatpush2.msra.mxu0 %v3556
    %3922 = vmatprep.subr.mxu0 0.0
    %3923 = vmatpush2.msra.mxu0 %v3555
    %3924 = vmatprep.subr.mxu0 0.0
    %3925 = vmatpush2.msra.mxu0 %v3554
    %3926 = vmatprep.subr.mxu0 0.0
    %3927 = vmatpush2.msra.mxu0 %v3553
    %3928 = vmatprep.subr.mxu0 0.0
    %3929 = vmatpush2.msra.mxu0 %v3552
    %3930 = vmatprep.subr.mxu0 0.0
    %3931 = vmatpush2.msra.mxu0 %v3551
    %3932 = vmatprep.subr.mxu0 0.0
    %3933 = vmatpush2.msra.mxu0 %v3550
    %3934 = vmatprep.subr.mxu0 0.0
    %3935 = vmatpush2.msra.mxu0 %v3549
    %3936 = vmatprep.mubr.f32.mxu0 %v3458
    %3937 = vmatmul.mubr.f32.gmra.mxu0 %v3457
    %v3938 = vpop.f32.mrf.mxu0
    %v3939 = vadd.f32 %v3869, %v3938
    %v3940 = vpop.f32.mrf.mxu0
    %3941 = vdwg.mxu0
    %3942 = vmatprep.subr.mxu0 0.0
    %3943 = vmatpush1.msra.mxu0 %v3580
    %3944 = vmatprep.subr.mxu0 0.0
    %3945 = vmatpush1.msra.mxu0 %v3579
    %3946 = vmatprep.subr.mxu0 0.0
    %3947 = vmatpush1.msra.mxu0 %v3578
    %3948 = vmatprep.subr.mxu0 0.0
    %3949 = vmatpush1.msra.mxu0 %v3577
    %3950 = vmatprep.subr.mxu0 0.0
    %3951 = vmatpush1.msra.mxu0 %v3576
    %3952 = vmatprep.subr.mxu0 0.0
    %3953 = vmatpush1.msra.mxu0 %v3575
    %3954 = vmatprep.subr.mxu0 0.0
    %3955 = vmatpush1.msra.mxu0 %v3574
    %3956 = vmatprep.subr.mxu0 0.0
    %3957 = vmatpush1.msra.mxu0 %v3573
    %3958 = vmatprep.subr.mxu0 0.0
    %3959 = vmatpush1.msra.mxu0 %v3572
    %3960 = vmatprep.subr.mxu0 0.0
    %3961 = vmatpush1.msra.mxu0 %v3571
    %3962 = vmatprep.subr.mxu0 0.0
    %3963 = vmatpush1.msra.mxu0 %v3570
    %3964 = vmatprep.subr.mxu0 0.0
    %3965 = vmatpush1.msra.mxu0 %v3569
    %3966 = vmatprep.subr.mxu0 0.0
    %3967 = vmatpush1.msra.mxu0 %v3568
    %3968 = vmatprep.subr.mxu0 0.0
    %3969 = vmatpush1.msra.mxu0 %v3567
    %3970 = vmatprep.subr.mxu0 0.0
    %3971 = vmatpush1.msra.mxu0 %v3566
    %3972 = vmatprep.subr.mxu0 0.0
    %3973 = vmatpush1.msra.mxu0 %v3565
    %3974 = vmatprep.subr.mxu0 0.0
    %3975 = vmatpush2.msra.mxu0 %v3596
    %3976 = vmatprep.subr.mxu0 0.0
    %3977 = vmatpush2.msra.mxu0 %v3595
    %3978 = vmatprep.subr.mxu0 0.0
    %3979 = vmatpush2.msra.mxu0 %v3594
    %3980 = vmatprep.subr.mxu0 0.0
    %3981 = vmatpush2.msra.mxu0 %v3593
    %3982 = vmatprep.subr.mxu0 0.0
    %3983 = vmatpush2.msra.mxu0 %v3592
    %3984 = vmatprep.subr.mxu0 0.0
    %3985 = vmatpush2.msra.mxu0 %v3591
    %3986 = vmatprep.subr.mxu0 0.0
    %3987 = vmatpush2.msra.mxu0 %v3590
    %3988 = vmatprep.subr.mxu0 0.0
    %3989 = vmatpush2.msra.mxu0 %v3589
    %3990 = vmatprep.subr.mxu0 0.0
    %3991 = vmatpush2.msra.mxu0 %v3588
    %3992 = vmatprep.subr.mxu0 0.0
    %3993 = vmatpush2.msra.mxu0 %v3587
    %3994 = vmatprep.subr.mxu0 0.0
    %3995 = vmatpush2.msra.mxu0 %v3586
    %3996 = vmatprep.subr.mxu0 0.0
    %3997 = vmatpush2.msra.mxu0 %v3585
    %3998 = vmatprep.subr.mxu0 0.0
    %3999 = vmatpush2.msra.mxu0 %v3584
    %4000 = vmatprep.subr.mxu0 0.0
    %4001 = vmatpush2.msra.mxu0 %v3583
    %4002 = vmatprep.subr.mxu0 0.0
    %4003 = vmatpush2.msra.mxu0 %v3582
    %4004 = vmatprep.subr.mxu0 0.0
    %4005 = vmatpush2.msra.mxu0 %v3581
    %4006 = vmatprep.mubr.f32.mxu0 %v3460
    %4007 = vmatmul.mubr.f32.gmra.mxu0 %v3459
    %v4008 = vpop.f32.mrf.mxu0
    %v4009 = vadd.f32 %v3939, %v4008
    %v4010 = vpop.f32.mrf.mxu0
    %4011 = vdwg.mxu0
    %4012 = vmatprep.subr.mxu0 0.0
    %4013 = vmatpush1.msra.mxu0 %v3612
    %4014 = vmatprep.subr.mxu0 0.0
    %4015 = vmatpush1.msra.mxu0 %v3611
    %4016 = vmatprep.subr.mxu0 0.0
    %4017 = vmatpush1.msra.mxu0 %v3610
    %4018 = vmatprep.subr.mxu0 0.0
    %4019 = vmatpush1.msra.mxu0 %v3609
    %4020 = vmatprep.subr.mxu0 0.0
    %4021 = vmatpush1.msra.mxu0 %v3608
    %4022 = vmatprep.subr.mxu0 0.0
    %4023 = vmatpush1.msra.mxu0 %v3607
    %4024 = vmatprep.subr.mxu0 0.0
    %4025 = vmatpush1.msra.mxu0 %v3606
    %4026 = vmatprep.subr.mxu0 0.0
    %4027 = vmatpush1.msra.mxu0 %v3605
    %4028 = vmatprep.subr.mxu0 0.0
    %4029 = vmatpush1.msra.mxu0 %v3604
    %4030 = vmatprep.subr.mxu0 0.0
    %4031 = vmatpush1.msra.mxu0 %v3603
    %4032 = vmatprep.subr.mxu0 0.0
    %4033 = vmatpush1.msra.mxu0 %v3602
    %4034 = vmatprep.subr.mxu0 0.0
    %4035 = vmatpush1.msra.mxu0 %v3601
    %4036 = vmatprep.subr.mxu0 0.0
    %4037 = vmatpush1.msra.mxu0 %v3600
    %4038 = vmatprep.subr.mxu0 0.0
    %4039 = vmatpush1.msra.mxu0 %v3599
    %4040 = vmatprep.subr.mxu0 0.0
    %4041 = vmatpush1.msra.mxu0 %v3598
    %4042 = vmatprep.subr.mxu0 0.0
    %4043 = vmatpush1.msra.mxu0 %v3597
    %4044 = vmatprep.subr.mxu0 0.0
    %4045 = vmatpush2.msra.mxu0 %v3628
    %4046 = vmatprep.subr.mxu0 0.0
    %4047 = vmatpush2.msra.mxu0 %v3627
    %4048 = vmatprep.subr.mxu0 0.0
    %4049 = vmatpush2.msra.mxu0 %v3626
    %4050 = vmatprep.subr.mxu0 0.0
    %4051 = vmatpush2.msra.mxu0 %v3625
    %4052 = vmatprep.subr.mxu0 0.0
    %4053 = vmatpush2.msra.mxu0 %v3624
    %4054 = vmatprep.subr.mxu0 0.0
    %4055 = vmatpush2.msra.mxu0 %v3623
    %4056 = vmatprep.subr.mxu0 0.0
    %4057 = vmatpush2.msra.mxu0 %v3622
    %4058 = vmatprep.subr.mxu0 0.0
    %4059 = vmatpush2.msra.mxu0 %v3621
    %4060 = vmatprep.subr.mxu0 0.0
    %4061 = vmatpush2.msra.mxu0 %v3620
    %4062 = vmatprep.subr.mxu0 0.0
    %4063 = vmatpush2.msra.mxu0 %v3619
    %4064 = vmatprep.subr.mxu0 0.0
    %4065 = vmatpush2.msra.mxu0 %v3618
    %4066 = vmatprep.subr.mxu0 0.0
    %4067 = vmatpush2.msra.mxu0 %v3617
    %4068 = vmatprep.subr.mxu0 0.0
    %4069 = vmatpush2.msra.mxu0 %v3616
    %4070 = vmatprep.subr.mxu0 0.0
    %4071 = vmatpush2.msra.mxu0 %v3615
    %4072 = vmatprep.subr.mxu0 0.0
    %4073 = vmatpush2.msra.mxu0 %v3614
    %4074 = vmatprep.subr.mxu0 0.0
    %4075 = vmatpush2.msra.mxu0 %v3613
    %4076 = vmatprep.mubr.f32.mxu0 %v3462
    %4077 = vmatmul.mubr.f32.gmra.mxu0 %v3461
    %v4078 = vpop.f32.mrf.mxu0
    %v4079 = vadd.f32 %v4009, %v4078
    %v4080 = vpop.f32.mrf.mxu0
    %4081 = vdwg.mxu0
    %4082 = vmatprep.subr.mxu0 0.0
    %4083 = vmatpush1.msra.mxu0 %v3644
    %4084 = vmatprep.subr.mxu0 0.0
    %4085 = vmatpush1.msra.mxu0 %v3643
    %4086 = vmatprep.subr.mxu0 0.0
    %4087 = vmatpush1.msra.mxu0 %v3642
    %4088 = vmatprep.subr.mxu0 0.0
    %4089 = vmatpush1.msra.mxu0 %v3641
    %4090 = vmatprep.subr.mxu0 0.0
    %4091 = vmatpush1.msra.mxu0 %v3640
    %4092 = vmatprep.subr.mxu0 0.0
    %4093 = vmatpush1.msra.mxu0 %v3639
    %4094 = vmatprep.subr.mxu0 0.0
    %4095 = vmatpush1.msra.mxu0 %v3638
    %4096 = vmatprep.subr.mxu0 0.0
    %4097 = vmatpush1.msra.mxu0 %v3637
    %4098 = vmatprep.subr.mxu0 0.0
    %4099 = vmatpush1.msra.mxu0 %v3636
    %4100 = vmatprep.subr.mxu0 0.0
    %4101 = vmatpush1.msra.mxu0 %v3635
    %4102 = vmatprep.subr.mxu0 0.0
    %4103 = vmatpush1.msra.mxu0 %v3634
    %4104 = vmatprep.subr.mxu0 0.0
    %4105 = vmatpush1.msra.mxu0 %v3633
    %4106 = vmatprep.subr.mxu0 0.0
    %4107 = vmatpush1.msra.mxu0 %v3632
    %4108 = vmatprep.subr.mxu0 0.0
    %4109 = vmatpush1.msra.mxu0 %v3631
    %4110 = vmatprep.subr.mxu0 0.0
    %4111 = vmatpush1.msra.mxu0 %v3630
    %4112 = vmatprep.subr.mxu0 0.0
    %4113 = vmatpush1.msra.mxu0 %v3629
    %4114 = vmatprep.subr.mxu0 0.0
    %4115 = vmatpush2.msra.mxu0 %v3660
    %4116 = vmatprep.subr.mxu0 0.0
    %4117 = vmatpush2.msra.mxu0 %v3659
    %4118 = vmatprep.subr.mxu0 0.0
    %4119 = vmatpush2.msra.mxu0 %v3658
    %4120 = vmatprep.subr.mxu0 0.0
    %4121 = vmatpush2.msra.mxu0 %v3657
    %4122 = vmatprep.subr.mxu0 0.0
    %4123 = vmatpush2.msra.mxu0 %v3656
    %4124 = vmatprep.subr.mxu0 0.0
    %4125 = vmatpush2.msra.mxu0 %v3655
    %4126 = vmatprep.subr.mxu0 0.0
    %4127 = vmatpush2.msra.mxu0 %v3654
    %4128 = vmatprep.subr.mxu0 0.0
    %4129 = vmatpush2.msra.mxu0 %v3653
    %4130 = vmatprep.subr.mxu0 0.0
    %4131 = vmatpush2.msra.mxu0 %v3652
    %4132 = vmatprep.subr.mxu0 0.0
    %4133 = vmatpush2.msra.mxu0 %v3651
    %4134 = vmatprep.subr.mxu0 0.0
    %4135 = vmatpush2.msra.mxu0 %v3650
    %4136 = vmatprep.subr.mxu0 0.0
    %4137 = vmatpush2.msra.mxu0 %v3649
    %4138 = vmatprep.subr.mxu0 0.0
    %4139 = vmatpush2.msra.mxu0 %v3648
    %4140 = vmatprep.subr.mxu0 0.0
    %4141 = vmatpush2.msra.mxu0 %v3647
    %4142 = vmatprep.subr.mxu0 0.0
    %4143 = vmatpush2.msra.mxu0 %v3646
    %4144 = vmatprep.subr.mxu0 0.0
    %4145 = vmatpush2.msra.mxu0 %v3645
    %4146 = vmatprep.mubr.f32.mxu0 %v3464
    %4147 = vmatmul.mubr.f32.gmra.mxu0 %v3463
    %v4148 = vpop.f32.mrf.mxu0
    %v4149 = vadd.f32 %v4079, %v4148
    %v4150 = vpop.f32.mrf.mxu0
    %4151 = vdwg.mxu0
    %4152 = vmatprep.subr.mxu0 0.0
    %4153 = vmatpush1.msra.mxu0 %v3676
    %4154 = vmatprep.subr.mxu0 0.0
    %4155 = vmatpush1.msra.mxu0 %v3675
    %4156 = vmatprep.subr.mxu0 0.0
    %4157 = vmatpush1.msra.mxu0 %v3674
    %4158 = vmatprep.subr.mxu0 0.0
    %4159 = vmatpush1.msra.mxu0 %v3673
    %4160 = vmatprep.subr.mxu0 0.0
    %4161 = vmatpush1.msra.mxu0 %v3672
    %4162 = vmatprep.subr.mxu0 0.0
    %4163 = vmatpush1.msra.mxu0 %v3671
    %4164 = vmatprep.subr.mxu0 0.0
    %4165 = vmatpush1.msra.mxu0 %v3670
    %4166 = vmatprep.subr.mxu0 0.0
    %4167 = vmatpush1.msra.mxu0 %v3669
    %4168 = vmatprep.subr.mxu0 0.0
    %4169 = vmatpush1.msra.mxu0 %v3668
    %4170 = vmatprep.subr.mxu0 0.0
    %4171 = vmatpush1.msra.mxu0 %v3667
    %4172 = vmatprep.subr.mxu0 0.0
    %4173 = vmatpush1.msra.mxu0 %v3666
    %4174 = vmatprep.subr.mxu0 0.0
    %4175 = vmatpush1.msra.mxu0 %v3665
    %4176 = vmatprep.subr.mxu0 0.0
    %4177 = vmatpush1.msra.mxu0 %v3664
    %4178 = vmatprep.subr.mxu0 0.0
    %4179 = vmatpush1.msra.mxu0 %v3663
    %4180 = vmatprep.subr.mxu0 0.0
    %4181 = vmatpush1.msra.mxu0 %v3662
    %4182 = vmatprep.subr.mxu0 0.0
    %4183 = vmatpush1.msra.mxu0 %v3661
    %4184 = vmatprep.subr.mxu0 0.0
    %4185 = vmatpush2.msra.mxu0 %v3692
    %4186 = vmatprep.subr.mxu0 0.0
    %4187 = vmatpush2.msra.mxu0 %v3691
    %4188 = vmatprep.subr.mxu0 0.0
    %4189 = vmatpush2.msra.mxu0 %v3690
    %4190 = vmatprep.subr.mxu0 0.0
    %4191 = vmatpush2.msra.mxu0 %v3689
    %4192 = vmatprep.subr.mxu0 0.0
    %4193 = vmatpush2.msra.mxu0 %v3688
    %4194 = vmatprep.subr.mxu0 0.0
    %4195 = vmatpush2.msra.mxu0 %v3687
    %4196 = vmatprep.subr.mxu0 0.0
    %4197 = vmatpush2.msra.mxu0 %v3686
    %4198 = vmatprep.subr.mxu0 0.0
    %4199 = vmatpush2.msra.mxu0 %v3685
    %4200 = vmatprep.subr.mxu0 0.0
    %4201 = vmatpush2.msra.mxu0 %v3684
    %4202 = vmatprep.subr.mxu0 0.0
    %4203 = vmatpush2.msra.mxu0 %v3683
    %4204 = vmatprep.subr.mxu0 0.0
    %4205 = vmatpush2.msra.mxu0 %v3682
    %4206 = vmatprep.subr.mxu0 0.0
    %4207 = vmatpush2.msra.mxu0 %v3681
    %4208 = vmatprep.subr.mxu0 0.0
    %4209 = vmatpush2.msra.mxu0 %v3680
    %4210 = vmatprep.subr.mxu0 0.0
    %4211 = vmatpush2.msra.mxu0 %v3679
    %4212 = vmatprep.subr.mxu0 0.0
    %4213 = vmatpush2.msra.mxu0 %v3678
    %4214 = vmatprep.subr.mxu0 0.0
    %4215 = vmatpush2.msra.mxu0 %v3677
    %4216 = vmatprep.mubr.f32.mxu0 %v3466
    %4217 = vmatmul.mubr.f32.gmra.mxu0 %v3465
    %v4218 = vpop.f32.mrf.mxu0
    %v4219 = vadd.f32 %v4149, %v4218
    %v4220 = vpop.f32.mrf.mxu0
    %4221 = vdwg.mxu0
    %4222 = vmatprep.subr.mxu0 0.0
    %4223 = vmatpush1.msra.mxu0 %v3708
    %4224 = vmatprep.subr.mxu0 0.0
    %4225 = vmatpush1.msra.mxu0 %v3707
    %4226 = vmatprep.subr.mxu0 0.0
    %4227 = vmatpush1.msra.mxu0 %v3706
    %4228 = vmatprep.subr.mxu0 0.0
    %4229 = vmatpush1.msra.mxu0 %v3705
    %4230 = vmatprep.subr.mxu0 0.0
    %4231 = vmatpush1.msra.mxu0 %v3704
    %4232 = vmatprep.subr.mxu0 0.0
    %4233 = vmatpush1.msra.mxu0 %v3703
    %4234 = vmatprep.subr.mxu0 0.0
    %4235 = vmatpush1.msra.mxu0 %v3702
    %4236 = vmatprep.subr.mxu0 0.0
    %4237 = vmatpush1.msra.mxu0 %v3701
    %4238 = vmatprep.subr.mxu0 0.0
    %4239 = vmatpush1.msra.mxu0 %v3700
    %4240 = vmatprep.subr.mxu0 0.0
    %4241 = vmatpush1.msra.mxu0 %v3699
    %4242 = vmatprep.subr.mxu0 0.0
    %4243 = vmatpush1.msra.mxu0 %v3698
    %4244 = vmatprep.subr.mxu0 0.0
    %4245 = vmatpush1.msra.mxu0 %v3697
    %4246 = vmatprep.subr.mxu0 0.0
    %4247 = vmatpush1.msra.mxu0 %v3696
    %4248 = vmatprep.subr.mxu0 0.0
    %4249 = vmatpush1.msra.mxu0 %v3695
    %4250 = vmatprep.subr.mxu0 0.0
    %4251 = vmatpush1.msra.mxu0 %v3694
    %4252 = vmatprep.subr.mxu0 0.0
    %4253 = vmatpush1.msra.mxu0 %v3693
    %4254 = vmatprep.subr.mxu0 0.0
    %4255 = vmatpush2.msra.mxu0 %v3724
    %4256 = vmatprep.subr.mxu0 0.0
    %4257 = vmatpush2.msra.mxu0 %v3723
    %4258 = vmatprep.subr.mxu0 0.0
    %4259 = vmatpush2.msra.mxu0 %v3722
    %4260 = vmatprep.subr.mxu0 0.0
    %4261 = vmatpush2.msra.mxu0 %v3721
    %4262 = vmatprep.subr.mxu0 0.0
    %4263 = vmatpush2.msra.mxu0 %v3720
    %4264 = vmatprep.subr.mxu0 0.0
    %4265 = vmatpush2.msra.mxu0 %v3719
    %4266 = vmatprep.subr.mxu0 0.0
    %4267 = vmatpush2.msra.mxu0 %v3718
    %4268 = vmatprep.subr.mxu0 0.0
    %4269 = vmatpush2.msra.mxu0 %v3717
    %4270 = vmatprep.subr.mxu0 0.0
    %4271 = vmatpush2.msra.mxu0 %v3716
    %4272 = vmatprep.subr.mxu0 0.0
    %4273 = vmatpush2.msra.mxu0 %v3715
    %4274 = vmatprep.subr.mxu0 0.0
    %4275 = vmatpush2.msra.mxu0 %v3714
    %4276 = vmatprep.subr.mxu0 0.0
    %4277 = vmatpush2.msra.mxu0 %v3713
    %4278 = vmatprep.subr.mxu0 0.0
    %4279 = vmatpush2.msra.mxu0 %v3712
    %4280 = vmatprep.subr.mxu0 0.0
    %4281 = vmatpush2.msra.mxu0 %v3711
    %4282 = vmatprep.subr.mxu0 0.0
    %4283 = vmatpush2.msra.mxu0 %v3710
    %4284 = vmatprep.subr.mxu0 0.0
    %4285 = vmatpush2.msra.mxu0 %v3709
    %4286 = vmatprep.mubr.f32.mxu0 %v3468
    %4287 = vmatmul.mubr.f32.gmra.mxu0 %v3467
    %v4288 = vpop.f32.mrf.mxu0
    %v4289 = vadd.f32 %v4219, %v4288
    %v4290 = vpop.f32.mrf.mxu0
    %4291 = vdwg.mxu0
    %v4292 = vmax.f32 %v4289, 0.0
    %v4293 = vld [vmem:[%s11] sm:$0xff]
    %v4294 = vld [vmem:[%s11 + $0x8] sm:$0xff]
    %v4295 = vld [vmem:[%s11 + $0x10] sm:$0xff]
    %v4296 = vld [vmem:[%s11 + $0x18] sm:$0xff]
    %v4297 = vld [vmem:[%s11 + $0x20] sm:$0xff]
    %v4298 = vld [vmem:[%s11 + $0x28] sm:$0xff]
    %v4299 = vld [vmem:[%s11 + $0x30] sm:$0xff]
    %v4300 = vld [vmem:[%s11 + $0x38] sm:$0xff]
    %v4301 = vld [vmem:[%s11 + $0x40] sm:$0xff]
    %v4302 = vld [vmem:[%s11 + $0x48] sm:$0xff]
    %v4303 = vld [vmem:[%s11 + $0x50] sm:$0xff]
    %v4304 = vld [vmem:[%s11 + $0x58] sm:$0xff]
    %v4305 = vld [vmem:[%s11 + $0x60] sm:$0xff]
    %v4306 = vld [vmem:[%s11 + $0x68] sm:$0xff]
    %v4307 = vld [vmem:[%s11 + $0x70] sm:$0xff]
    %v4308 = vld [vmem:[%s11 + $0x78] sm:$0xff]
    %v4309 = vld [vmem:[%s12] sm:$0x1]
    %v4311 = vlaneseq
    %v4312 = vshrl.u32 %v4311, 7
    %v4313 = vsub.s32 0, %v4312
    %v4314 = vrot.slane %v4309, %v4313
    %4316 = vmatprep.subr.mxu0 0.0
    %4317 = vmatpush1.msra.mxu0 %v4308
    %4318 = vmatprep.subr.mxu0 0.0
    %4319 = vmatpush1.msra.mxu0 %v4307
    %4320 = vmatprep.subr.mxu0 0.0
    %4321 = vmatpush1.msra.mxu0 %v4306
    %4322 = vmatprep.subr.mxu0 0.0
    %4323 = vmatpush1.msra.mxu0 %v4305
    %4324 = vmatprep.subr.mxu0 0.0
    %4325 = vmatpush1.msra.mxu0 %v4304
    %4326 = vmatprep.subr.mxu0 0.0
    %4327 = vmatpush1.msra.mxu0 %v4303
    %4328 = vmatprep.subr.mxu0 0.0
    %4329 = vmatpush1.msra.mxu0 %v4302
    %4330 = vmatprep.subr.mxu0 0.0
    %4331 = vmatpush1.msra.mxu0 %v4301
    %4332 = vmatprep.subr.mxu0 0.0
    %4333 = vmatpush1.msra.mxu0 %v4300
    %4334 = vmatprep.subr.mxu0 0.0
    %4335 = vmatpush1.msra.mxu0 %v4299
    %4336 = vmatprep.subr.mxu0 0.0
    %4337 = vmatpush1.msra.mxu0 %v4298
    %4338 = vmatprep.subr.mxu0 0.0
    %4339 = vmatpush1.msra.mxu0 %v4297
    %4340 = vmatprep.subr.mxu0 0.0
    %4341 = vmatpush1.msra.mxu0 %v4296
    %4342 = vmatprep.subr.mxu0 0.0
    %4343 = vmatpush1.msra.mxu0 %v4295
    %4344 = vmatprep.subr.mxu0 0.0
    %4345 = vmatpush1.msra.mxu0 %v4294
    %4346 = vmatprep.subr.mxu0 0.0
    %4347 = vmatpush1.msra.mxu0 %v4293
    %4348 = vmatprep.subr.mxu0 0.0
    %4349 = vmatpush2.msra.mxu0 0.0
    %4350 = vmatprep.subr.mxu0 0.0
    %4351 = vmatpush2.msra.mxu0 0.0
    %4352 = vmatprep.subr.mxu0 0.0
    %4353 = vmatpush2.msra.mxu0 0.0
    %4354 = vmatprep.subr.mxu0 0.0
    %4355 = vmatpush2.msra.mxu0 0.0
    %4356 = vmatprep.subr.mxu0 0.0
    %4357 = vmatpush2.msra.mxu0 0.0
    %4358 = vmatprep.subr.mxu0 0.0
    %4359 = vmatpush2.msra.mxu0 0.0
    %4360 = vmatprep.subr.mxu0 0.0
    %4361 = vmatpush2.msra.mxu0 0.0
    %4362 = vmatprep.subr.mxu0 0.0
    %4363 = vmatpush2.msra.mxu0 0.0
    %4364 = vmatprep.subr.mxu0 0.0
    %4365 = vmatpush2.msra.mxu0 0.0
    %4366 = vmatprep.subr.mxu0 0.0
    %4367 = vmatpush2.msra.mxu0 0.0
    %4368 = vmatprep.subr.mxu0 0.0
    %4369 = vmatpush2.msra.mxu0 0.0
    %4370 = vmatprep.subr.mxu0 0.0
    %4371 = vmatpush2.msra.mxu0 0.0
    %4372 = vmatprep.subr.mxu0 0.0
    %4373 = vmatpush2.msra.mxu0 0.0
    %4374 = vmatprep.subr.mxu0 0.0
    %4375 = vmatpush2.msra.mxu0 0.0
    %4376 = vmatprep.subr.mxu0 0.0
    %4377 = vmatpush2.msra.mxu0 0.0
    %4378 = vmatprep.subr.mxu0 0.0
    %4379 = vmatpush2.msra.mxu0 0.0
    %4380 = vmatprep.mubr.f32.mxu0 0.0
    %4381 = vmatmul.mubr.f32.gmra.mxu0 %v4292
    %v4382 = vpop.f32.mrf.mxu0
    %v4383 = vadd.f32 %v4314, %v4382
    %v4384 = vpop.f32.mrf.mxu0
    %4385 = vdwg.mxu0
    %v4386 = vlaneseq
    %v4387 = vand.u32 %v4386, 127
    %vm4388 = vcmp.eq.s32.totalorder %v4387, 2
    %v4389 = vxor.u32 %v4383, 2147483648
    %v4390 = vmul.f32 %v4389, 1.442695
    %v4391 = vpow.pop %v4390
    %v4392 = vadd.f32 %v4391, 1.0
    %v4393 = vrcp.pop %v4392
    %v4394 = vmul.f32 1.0, %v4393
    %v4395 = vsel %vm4388, %v4394, %v4383
    %4396 = vst [vmem:[#allocation12] sm:$0xff] %v4395
    // Predicated region
    $region70: #{tpu_custom_call.1} parent=1 // pred_check
      _
    $region71: #{tpu_custom_call.1} parent=1 // pred_check_branch
      %4398 = sbr.rel (0) target = $region73
    $region72: #{tpu_custom_call.1} parent=1 // pred_region
      %s4400 = ssub.s32 128, 128
      %4401 = vsyncadd [#allocation6], %s4400
      %s4403 = sshll.u32 [#allocation12], 4
      %s4404 = int_to_ptr.vmem [resolvable:$true] %s4403
      %4406 = dma.vmem_to_hbm [thread:$0]  %s4404, 128, %s13, [#allocation6]
    $region73: #{tpu_custom_call.1} parent=1 // pred_fallthru
      _
    // Predicated region
    $region74: #{tpu_custom_call.1} parent=1 // pred_check
      _
    $region75: #{tpu_custom_call.1} parent=1 // pred_check_branch
      %4408 = sbr.rel (0) target = $region77
    $region76: #{tpu_custom_call.1} parent=1 // pred_region
      %4409 = dma.done [#allocation6], 128
    $region77: #{tpu_custom_call.1} parent=1 // pred_fallthru
      _
    %4410 = vsyncpa [#allocation5], 1
    %4411 = vsyncpa [#allocation8], 1
    %4412 = vsyncpa [#allocation11], 1
    %4413 = vsyncpa [#allocation6], 1

</llo_original>
